<compile_context>
chip_gen: v7x
topology: tpu7x:2x2x1
jax: 0.10.0
libtpu: 0.0.40
codegen_flags: <defaults>
</compile_context>

<pallas_src>
import jax
import jax.numpy as jnp
from jax.experimental import pallas as pl
from jax.experimental.pallas import tpu as pltpu


# ----------------------------------------------------------------------------
# Static geometry helpers.
# ----------------------------------------------------------------------------
def _conv_size_out(size, kernel_size=3, stride=1):
    return (size - (kernel_size - 1) - 1) // stride + 1


def _round_up(v, m=8):
    return ((v + m - 1) // m) * m


def _dims(h, w):
    convw = _conv_size_out(_conv_size_out(_conv_size_out(w)))
    convh = _conv_size_out(_conv_size_out(_conv_size_out(h)))
    smax = 2 * w + 2                # largest 3x3 tap shift in flat (y*w + x) coords
    m3 = _round_up(convh * w)       # rows computed by conv layer 3 (covers valid region)
    m2 = _round_up(m3 + smax)       # rows computed by conv layer 2
    m1 = _round_up(m2 + smax)       # rows computed by conv layer 1
    n0 = _round_up(m1 + smax)       # zero-padded input-frame rows
    return convh, convw, m1, m2, m3, n0


# ----------------------------------------------------------------------------
# Synthetic parameters in PyTorch-equivalent layout (per branch).
# ----------------------------------------------------------------------------
def init_params(key, h, w, outputs):
    convw = _conv_size_out(_conv_size_out(_conv_size_out(w)))
    convh = _conv_size_out(_conv_size_out(_conv_size_out(h)))
    lin_in = convw * convh * 32

    params = {}
    conv_dims = [(5, 16), (16, 32), (32, 32)]
    keys = jax.random.split(key, 16)
    ki = 0
    for prefix in ("actor_", "critic_"):
        for li, (cin, cout) in enumerate(conv_dims, start=1):
            bound = 1.0 / jnp.sqrt(9.0 * cin)
            params[f"{prefix}w{li}"] = jax.random.uniform(
                keys[ki], (9, cin, cout), jnp.float32, -bound, bound)
            params[f"{prefix}b{li}"] = jax.random.uniform(
                keys[ki + 1], (cout,), jnp.float32, -bound, bound)
            ki += 2
    bound = 1.0 / jnp.sqrt(float(lin_in))
    params["actor_fc_w"] = jax.random.uniform(
        keys[ki], (lin_in, outputs), jnp.float32, -bound, bound)
    params["actor_fc_b"] = jax.random.uniform(
        keys[ki + 1], (outputs,), jnp.float32, -bound, bound)
    params["critic_fc_w"] = jax.random.uniform(
        keys[ki + 2], (lin_in, 1), jnp.float32, -bound, bound)
    params["critic_fc_b"] = jax.random.uniform(
        keys[ki + 3], (1,), jnp.float32, -bound, bound)
    return params


# ----------------------------------------------------------------------------
# One-time fusion of actor/critic parameters into the kernel's layout.
# ----------------------------------------------------------------------------
def fuse_params(params, h, w, outputs):
    convh, convw, m1, m2, m3, n0 = _dims(h, w)
    n_heads = outputs + 1

    # Layer 1: concat actor/critic output channels and fold the 9 taps into the
    # contraction dim (matches the wrapper-built im2col column order: tap-major).
    w1 = jnp.concatenate([params["actor_w1"], params["critic_w1"]], axis=-1)    # (9, 5, 32)
    w1 = w1.reshape(9 * 5, 32).astype(jnp.bfloat16)                              # (45, 32)
    b1 = jnp.concatenate([params["actor_b1"], params["critic_b1"]]).reshape(1, 32)

    # Layers 2/3: block-diagonal per-tap weights so one matmul drives both branches.
    w2 = jnp.zeros((9, 32, 64), jnp.float32)
    w2 = w2.at[:, 0:16, 0:32].set(params["actor_w2"])
    w2 = w2.at[:, 16:32, 32:64].set(params["critic_w2"])
    b2 = jnp.concatenate([params["actor_b2"], params["critic_b2"]]).reshape(1, 64)

    w3 = jnp.zeros((9, 64, 64), jnp.float32)
    w3 = w3.at[:, 0:32, 0:32].set(params["actor_w3"])
    w3 = w3.at[:, 32:64, 32:64].set(params["critic_w3"])
    b3 = jnp.concatenate([params["actor_b3"], params["critic_b3"]]).reshape(1, 64)

    # FC heads: fold PyTorch's NCHW flatten (idx = c*convh*convw + y*convw + x) into
    # per-head weight maps over the conv-3 slab rows (row = y*w + x).  Zeros at
    # invalid rows mask the wrap-around garbage; only the 32 branch-local channels
    # are kept per head; stored pre-transposed so the head matmul is standard.
    def head_block(fc_w, n_out):
        w4 = fc_w.reshape(32, convh, convw, n_out)      # [c, y, x, o]
        w4 = jnp.transpose(w4, (1, 2, 3, 0))            # [y, x, o, c]
        buf = jnp.zeros((convh, w, n_out, 32), jnp.float32)
        buf = buf.at[:, :convw].set(w4)
        buf = buf.reshape(convh * w, n_out * 32)        # row = y*w + x, col = o*32 + c
        full = jnp.zeros((m3, n_out * 32), jnp.float32)
        return full.at[:convh * w].set(buf)

    wh = jnp.concatenate([head_block(params["actor_fc_w"], outputs),
                          head_block(params["critic_fc_w"], 1)], axis=1)         # (m3, J)
    wht = jnp.transpose(wh).astype(jnp.bfloat16)                                  # (J, m3)

    # Group-sum matrix: heads[o] = sum over the o-th 32-wide column block.
    j_idx = jnp.arange(32 * n_heads)
    gt = (j_idx[None, :] // 32 == jnp.arange(n_heads)[:, None]).astype(jnp.float32)  # (n_heads, J)

    bh = jnp.concatenate([params["actor_fc_b"], params["critic_fc_b"]]).reshape(n_heads, 1)

    return dict(w1=w1, b1=b1, w2=w2.astype(jnp.bfloat16), b2=b2,
                w3=w3.astype(jnp.bfloat16), b3=b3, wht=wht, gt=gt, bh=bh)


# ----------------------------------------------------------------------------
# The fused Pallas kernel: 3 fused conv layers + both FC heads, all in VMEM.
# ----------------------------------------------------------------------------
def make_forward(h, w, outputs):
    convh, convw, m1, m2, m3, n0 = _dims(h, w)
    win = w
    n_heads = outputs + 1
    shifts = [dy * w + dx for dy in range(3) for dx in range(3)]

    def kernel(x_ref, w1_ref, b1_ref, w2_ref, b2_ref, w3_ref, b3_ref,
               wht_ref, gt_ref, bh_ref, probs_ref, value_ref, f1_ref, f2_ref):
        # ---- conv layer 1: single K=45 matmul over the wrapper-built im2col slab.
        z1 = jnp.dot(x_ref[...], w1_ref[...], preferred_element_type=jnp.float32)
        f1_ref[...] = jnp.maximum(z1 + b1_ref[...], 0.0)   # ch 0:16 actor | 16:32 critic

        # ---- conv layers 2/3: 9 shifted-slab bf16 matmuls, grouped per-dy into 3
        # independent partial sums (shorter MXU-pop -> VPU-add dependency chain,
        # modest vreg liveness).
        def conv_relu(src_ref, w_ref, b_ref, m):
            partials = []
            for dy in range(3):
                acc = None
                for dx in range(3):
                    s = dy * win + dx
                    lhs = src_ref[s:s + m, :].astype(jnp.bfloat16)
                    d = jnp.dot(lhs, w_ref[dy * 3 + dx],
                                preferred_element_type=jnp.float32)
                    acc = d if acc is None else acc + d
                partials.append(acc)
            return jnp.maximum(partials[0] + partials[1] + partials[2] + b_ref[...], 0.0)

        f2_ref[...] = conv_relu(f1_ref, w2_ref, b2_ref, m2)   # ch 0:32 actor | 32:64 critic
        a3 = conv_relu(f2_ref, w3_ref, b3_ref, m3)            # (m3, 64) f32, stays in vregs

        # ---- fused FC heads on the MXU.
        # bt[j, c'] = sum_r wht[j, r] * a3[r, c']  (zero weights at invalid rows
        # keep the wrap-around garbage rows out of the contraction).
        bt = jnp.dot(wht_ref[...], a3.astype(jnp.bfloat16),
                     preferred_element_type=jnp.float32)       # (J, 64)
        # Head j = o*32 + c only reads its branch's channel: actor -> c, critic -> 32 + c.
        row = jax.lax.broadcasted_iota(jnp.int32, bt.shape, 0)
        col = jax.lax.broadcasted_iota(jnp.int32, bt.shape, 1)
        want = (row & 31) + jnp.where(row >= 32 * outputs, 32, 0)
        masked = jnp.where(col == want, bt, 0.0)
        heads = jnp.dot(gt_ref[...], masked, preferred_element_type=jnp.float32)  # (n_heads, 64)
        heads = jnp.sum(heads, axis=1, keepdims=True) + bh_ref[...]               # (n_heads, 1)

        # Actor softmax (exact division keeps sum(probs) == 1 tightly).
        logits = heads[:outputs, :]
        logits = logits - jnp.max(logits, axis=0, keepdims=True)
        e = jnp.exp(logits)
        probs_ref[...] = e / jnp.sum(e, axis=0, keepdims=True)

        # Critic value.
        value_ref[...] = jnp.maximum(heads[outputs:, :], 0.0)

    vmem = pl.BlockSpec(memory_space=pltpu.MemorySpace.VMEM)
    fused_call = pl.pallas_call(
        kernel,
        out_shape=(jax.ShapeDtypeStruct((outputs, 1), jnp.float32),
                   jax.ShapeDtypeStruct((1, 1), jnp.float32)),
        in_specs=[vmem] * 10,
        out_specs=(vmem, vmem),
        scratch_shapes=[pltpu.VMEM((m1, 32), jnp.float32),
                        pltpu.VMEM((m2, 64), jnp.float32)],
    )

    def forward(x_chw, fused):
        c = x_chw.shape[0]
        # CHW -> flat (row = y*w + x, channel) frame, zero-padded so every shifted
        # slab slice stays in bounds, then the 9-tap im2col slab for conv layer 1
        # (depends only on the input, so it is built here, outside the kernel).
        flat = jnp.transpose(x_chw, (1, 2, 0)).reshape(h * w, c)
        frame = jnp.zeros((n0, c), jnp.float32).at[:h * w, :].set(flat)
        im2col = jnp.concatenate([frame[s:s + m1, :] for s in shifts],
                                 axis=1).astype(jnp.bfloat16)        # (m1, 9*c)
        probs_col, value = fused_call(
            im2col, fused["w1"], fused["b1"], fused["w2"], fused["b2"],
            fused["w3"], fused["b3"], fused["wht"], fused["gt"], fused["bh"])
        probs = probs_col.reshape(1, outputs)
        return value, probs   # same return order as the PyTorch module

    return forward


# ----------------------------------------------------------------------------
# Pure-JAX reference (mirrors the PyTorch forward) for a correctness check.
# ----------------------------------------------------------------------------
def reference_forward(x_chw, params):
    hp = jax.lax.Precision.HIGHEST
    x = jnp.transpose(x_chw, (1, 2, 0))  # HWC

    def conv_relu(xh, w9, b):
        ho, wo = xh.shape[0] - 2, xh.shape[1] - 2
        acc = jnp.zeros((ho, wo, w9.shape[-1]), jnp.float32)
        for dy in range(3):
            for dx in range(3):
                acc = acc + jnp.einsum("hwc,co->hwo", xh[dy:dy + ho, dx:dx + wo, :],
                                       w9[dy * 3 + dx], precision=hp)
        return jnp.maximum(acc + b, 0.0)

    def branch(prefix):
        a = conv_relu(x, params[f"{prefix}w1"], params[f"{prefix}b1"])
        a = conv_relu(a, params[f"{prefix}w2"], params[f"{prefix}b2"])
        a = conv_relu(a, params[f"{prefix}w3"], params[f"{prefix}b3"])
        return jnp.transpose(a, (2, 0, 1)).reshape(1, -1)   # PyTorch NCHW flatten

    logits = jnp.dot(branch("actor_"), params["actor_fc_w"],
                     precision=hp) + params["actor_fc_b"]
    probs = jax.nn.softmax(logits, axis=1)
    value = jnp.maximum(jnp.dot(branch("critic_"), params["critic_fc_w"],
                                precision=hp) + params["critic_fc_b"], 0.0)
    return value, probs


if __name__ == "__main__":
    h = w = 16
    outputs = 4

    key = jax.random.PRNGKey(0)
    k_params, k_x = jax.random.split(key)
    params = init_params(k_params, h, w, outputs)
    fused = fuse_params(params, h, w, outputs)
    forward = make_forward(h, w, outputs)

    # Module input: a single CHW observation with 5 channels (forward unsqueezes batch).
    x = jax.random.normal(k_x, (5, h, w), jnp.float32)

    fwd = jax.jit(lambda xx: forward(xx, fused))
    value, probs = fwd(x)
    jax.block_until_ready((value, probs))

    assert value.shape == (1, 1)
    assert probs.shape == (1, outputs)
    assert jnp.allclose(jnp.sum(probs, axis=1), 1.0, atol=1e-5)

    v_ref, p_ref = reference_forward(x, params)
    assert jnp.allclose(value, v_ref, rtol=2e-2, atol=2e-2)
    assert jnp.allclose(probs, p_ref, rtol=2e-2, atol=2e-2)

    print("KERNEL_OK")
</pallas_src>

<mosaic_0001>
module attributes {stable_mosaic.version = 11 : i64} {
  func.func @kernel(%arg0: memref<240x45xbf16, #tpu.memory_space<vmem>>, %arg1: memref<45x32xbf16, #tpu.memory_space<vmem>>, %arg2: memref<1x32xf32, #tpu.memory_space<vmem>>, %arg3: memref<9x32x64xbf16, #tpu.memory_space<vmem>>, %arg4: memref<1x64xf32, #tpu.memory_space<vmem>>, %arg5: memref<9x64x64xbf16, #tpu.memory_space<vmem>>, %arg6: memref<1x64xf32, #tpu.memory_space<vmem>>, %arg7: memref<160x160xbf16, #tpu.memory_space<vmem>>, %arg8: memref<5x160xf32, #tpu.memory_space<vmem>>, %arg9: memref<5x1xf32, #tpu.memory_space<vmem>>, %arg10: memref<4x1xf32, #tpu.memory_space<vmem>>, %arg11: memref<1x1xf32, #tpu.memory_space<vmem>>, %arg12: memref<240x32xf32, #tpu.memory_space<vmem>>, %arg13: memref<200x64xf32, #tpu.memory_space<vmem>>) attributes {dimension_semantics = [], scalar_prefetch = 0 : i64, scratch_operands = 2 : i64, tpu.core_type = #tpu.core_type<tc>} {
    %c0 = arith.constant 0 : index
    %c0_0 = arith.constant 0 : index
    %0 = vector.load %arg0[%c0, %c0_0] : memref<240x45xbf16, #tpu.memory_space<vmem>>, vector<240x45xbf16>
    %c0_1 = arith.constant 0 : index
    %c0_2 = arith.constant 0 : index
    %1 = vector.load %arg1[%c0_1, %c0_2] : memref<45x32xbf16, #tpu.memory_space<vmem>>, vector<45x32xbf16>
    %cst = arith.constant dense<0.000000e+00> : vector<240x32xf32>
    %2 = tpu.matmul %0, %1, %cst {dimension_numbers = #tpu.dot_dimension_numbers<[1], [0], [0], [1], [0, 0, 1, 1], [], []>} : vector<240x45xbf16>, vector<45x32xbf16>, vector<240x32xf32> -> vector<240x32xf32>
    %c0_3 = arith.constant 0 : index
    %c0_4 = arith.constant 0 : index
    %3 = vector.load %arg2[%c0_3, %c0_4] : memref<1x32xf32, #tpu.memory_space<vmem>>, vector<1x32xf32>
    %4 = vector.broadcast %3 : vector<1x32xf32> to vector<240x32xf32>
    %5 = arith.addf %2, %4 : vector<240x32xf32>
    %cst_5 = arith.constant 0.000000e+00 : f32
    %6 = vector.broadcast %cst_5 : f32 to vector<240x32xf32>
    %7 = arith.maximumf %5, %6 : vector<240x32xf32>
    %c0_6 = arith.constant 0 : index
    %c0_7 = arith.constant 0 : index
    %8 = vector.load %arg12[%c0_6, %c0_7] : memref<240x32xf32, #tpu.memory_space<vmem>>, vector<240x32xf32>
    tpu.vector_store %arg12[%c0_6, %c0_7], %7 {strides = array<i32>} : memref<240x32xf32, #tpu.memory_space<vmem>>, vector<240x32xf32>,
    %c0_8 = arith.constant 0 : index
    %c0_9 = arith.constant 0 : index
    %9 = vector.load %arg12[%c0_8, %c0_9] : memref<240x32xf32, #tpu.memory_space<vmem>>, vector<200x32xf32>
    %10 = arith.truncf %9 : vector<200x32xf32> to vector<200x32xbf16>
    %c0_10 = arith.constant 0 : index
    %c0_11 = arith.constant 0 : index
    %c0_12 = arith.constant 0 : index
    %11 = vector.load %arg3[%c0_10, %c0_11, %c0_12] : memref<9x32x64xbf16, #tpu.memory_space<vmem>>, vector<1x32x64xbf16>
    %12 = vector.shape_cast %11 : vector<1x32x64xbf16> to vector<32x64xbf16>
    %cst_13 = arith.constant dense<0.000000e+00> : vector<200x64xf32>
    %13 = tpu.matmul %10, %12, %cst_13 {dimension_numbers = #tpu.dot_dimension_numbers<[1], [0], [0], [1], [0, 0, 1, 1], [], []>} : vector<200x32xbf16>, vector<32x64xbf16>, vector<200x64xf32> -> vector<200x64xf32>
    %c1 = arith.constant 1 : index
    %c0_14 = arith.constant 0 : index
    %14 = vector.load %arg12[%c1, %c0_14] : memref<240x32xf32, #tpu.memory_space<vmem>>, vector<200x32xf32>
    %15 = arith.truncf %14 : vector<200x32xf32> to vector<200x32xbf16>
    %c1_15 = arith.constant 1 : index
    %c0_16 = arith.constant 0 : index
    %c0_17 = arith.constant 0 : index
    %16 = vector.load %arg3[%c1_15, %c0_16, %c0_17] : memref<9x32x64xbf16, #tpu.memory_space<vmem>>, vector<1x32x64xbf16>
    %17 = vector.shape_cast %16 : vector<1x32x64xbf16> to vector<32x64xbf16>
    %cst_18 = arith.constant dense<0.000000e+00> : vector<200x64xf32>
    %18 = tpu.matmul %15, %17, %cst_18 {dimension_numbers = #tpu.dot_dimension_numbers<[1], [0], [0], [1], [0, 0, 1, 1], [], []>} : vector<200x32xbf16>, vector<32x64xbf16>, vector<200x64xf32> -> vector<200x64xf32>
    %19 = arith.addf %13, %18 : vector<200x64xf32>
    %c2 = arith.constant 2 : index
    %c0_19 = arith.constant 0 : index
    %20 = vector.load %arg12[%c2, %c0_19] : memref<240x32xf32, #tpu.memory_space<vmem>>, vector<200x32xf32>
    %21 = arith.truncf %20 : vector<200x32xf32> to vector<200x32xbf16>
    %c2_20 = arith.constant 2 : index
    %c0_21 = arith.constant 0 : index
    %c0_22 = arith.constant 0 : index
    %22 = vector.load %arg3[%c2_20, %c0_21, %c0_22] : memref<9x32x64xbf16, #tpu.memory_space<vmem>>, vector<1x32x64xbf16>
    %23 = vector.shape_cast %22 : vector<1x32x64xbf16> to vector<32x64xbf16>
    %cst_23 = arith.constant dense<0.000000e+00> : vector<200x64xf32>
    %24 = tpu.matmul %21, %23, %cst_23 {dimension_numbers = #tpu.dot_dimension_numbers<[1], [0], [0], [1], [0, 0, 1, 1], [], []>} : vector<200x32xbf16>, vector<32x64xbf16>, vector<200x64xf32> -> vector<200x64xf32>
    %25 = arith.addf %19, %24 : vector<200x64xf32>
    %c16 = arith.constant 16 : index
    %c0_24 = arith.constant 0 : index
    %26 = vector.load %arg12[%c16, %c0_24] : memref<240x32xf32, #tpu.memory_space<vmem>>, vector<200x32xf32>
    %27 = arith.truncf %26 : vector<200x32xf32> to vector<200x32xbf16>
    %c3 = arith.constant 3 : index
    %c0_25 = arith.constant 0 : index
    %c0_26 = arith.constant 0 : index
    %28 = vector.load %arg3[%c3, %c0_25, %c0_26] : memref<9x32x64xbf16, #tpu.memory_space<vmem>>, vector<1x32x64xbf16>
    %29 = vector.shape_cast %28 : vector<1x32x64xbf16> to vector<32x64xbf16>
    %cst_27 = arith.constant dense<0.000000e+00> : vector<200x64xf32>
    %30 = tpu.matmul %27, %29, %cst_27 {dimension_numbers = #tpu.dot_dimension_numbers<[1], [0], [0], [1], [0, 0, 1, 1], [], []>} : vector<200x32xbf16>, vector<32x64xbf16>, vector<200x64xf32> -> vector<200x64xf32>
    %c17 = arith.constant 17 : index
    %c0_28 = arith.constant 0 : index
    %31 = vector.load %arg12[%c17, %c0_28] : memref<240x32xf32, #tpu.memory_space<vmem>>, vector<200x32xf32>
    %32 = arith.truncf %31 : vector<200x32xf32> to vector<200x32xbf16>
    %c4 = arith.constant 4 : index
    %c0_29 = arith.constant 0 : index
    %c0_30 = arith.constant 0 : index
    %33 = vector.load %arg3[%c4, %c0_29, %c0_30] : memref<9x32x64xbf16, #tpu.memory_space<vmem>>, vector<1x32x64xbf16>
    %34 = vector.shape_cast %33 : vector<1x32x64xbf16> to vector<32x64xbf16>
    %cst_31 = arith.constant dense<0.000000e+00> : vector<200x64xf32>
    %35 = tpu.matmul %32, %34, %cst_31 {dimension_numbers = #tpu.dot_dimension_numbers<[1], [0], [0], [1], [0, 0, 1, 1], [], []>} : vector<200x32xbf16>, vector<32x64xbf16>, vector<200x64xf32> -> vector<200x64xf32>
    %36 = arith.addf %30, %35 : vector<200x64xf32>
    %c18 = arith.constant 18 : index
    %c0_32 = arith.constant 0 : index
    %37 = vector.load %arg12[%c18, %c0_32] : memref<240x32xf32, #tpu.memory_space<vmem>>, vector<200x32xf32>
    %38 = arith.truncf %37 : vector<200x32xf32> to vector<200x32xbf16>
    %c5 = arith.constant 5 : index
    %c0_33 = arith.constant 0 : index
    %c0_34 = arith.constant 0 : index
    %39 = vector.load %arg3[%c5, %c0_33, %c0_34] : memref<9x32x64xbf16, #tpu.memory_space<vmem>>, vector<1x32x64xbf16>
    %40 = vector.shape_cast %39 : vector<1x32x64xbf16> to vector<32x64xbf16>
    %cst_35 = arith.constant dense<0.000000e+00> : vector<200x64xf32>
    %41 = tpu.matmul %38, %40, %cst_35 {dimension_numbers = #tpu.dot_dimension_numbers<[1], [0], [0], [1], [0, 0, 1, 1], [], []>} : vector<200x32xbf16>, vector<32x64xbf16>, vector<200x64xf32> -> vector<200x64xf32>
    %42 = arith.addf %36, %41 : vector<200x64xf32>
    %c32 = arith.constant 32 : index
    %c0_36 = arith.constant 0 : index
    %43 = vector.load %arg12[%c32, %c0_36] : memref<240x32xf32, #tpu.memory_space<vmem>>, vector<200x32xf32>
    %44 = arith.truncf %43 : vector<200x32xf32> to vector<200x32xbf16>
    %c6 = arith.constant 6 : index
    %c0_37 = arith.constant 0 : index
    %c0_38 = arith.constant 0 : index
    %45 = vector.load %arg3[%c6, %c0_37, %c0_38] : memref<9x32x64xbf16, #tpu.memory_space<vmem>>, vector<1x32x64xbf16>
    %46 = vector.shape_cast %45 : vector<1x32x64xbf16> to vector<32x64xbf16>
    %cst_39 = arith.constant dense<0.000000e+00> : vector<200x64xf32>
    %47 = tpu.matmul %44, %46, %cst_39 {dimension_numbers = #tpu.dot_dimension_numbers<[1], [0], [0], [1], [0, 0, 1, 1], [], []>} : vector<200x32xbf16>, vector<32x64xbf16>, vector<200x64xf32> -> vector<200x64xf32>
    %c33 = arith.constant 33 : index
    %c0_40 = arith.constant 0 : index
    %48 = vector.load %arg12[%c33, %c0_40] : memref<240x32xf32, #tpu.memory_space<vmem>>, vector<200x32xf32>
    %49 = arith.truncf %48 : vector<200x32xf32> to vector<200x32xbf16>
    %c7 = arith.constant 7 : index
    %c0_41 = arith.constant 0 : index
    %c0_42 = arith.constant 0 : index
    %50 = vector.load %arg3[%c7, %c0_41, %c0_42] : memref<9x32x64xbf16, #tpu.memory_space<vmem>>, vector<1x32x64xbf16>
    %51 = vector.shape_cast %50 : vector<1x32x64xbf16> to vector<32x64xbf16>
    %cst_43 = arith.constant dense<0.000000e+00> : vector<200x64xf32>
    %52 = tpu.matmul %49, %51, %cst_43 {dimension_numbers = #tpu.dot_dimension_numbers<[1], [0], [0], [1], [0, 0, 1, 1], [], []>} : vector<200x32xbf16>, vector<32x64xbf16>, vector<200x64xf32> -> vector<200x64xf32>
    %53 = arith.addf %47, %52 : vector<200x64xf32>
    %c34 = arith.constant 34 : index
    %c0_44 = arith.constant 0 : index
    %54 = vector.load %arg12[%c34, %c0_44] : memref<240x32xf32, #tpu.memory_space<vmem>>, vector<200x32xf32>
    %55 = arith.truncf %54 : vector<200x32xf32> to vector<200x32xbf16>
    %c8 = arith.constant 8 : index
    %c0_45 = arith.constant 0 : index
    %c0_46 = arith.constant 0 : index
    %56 = vector.load %arg3[%c8, %c0_45, %c0_46] : memref<9x32x64xbf16, #tpu.memory_space<vmem>>, vector<1x32x64xbf16>
    %57 = vector.shape_cast %56 : vector<1x32x64xbf16> to vector<32x64xbf16>
    %cst_47 = arith.constant dense<0.000000e+00> : vector<200x64xf32>
    %58 = tpu.matmul %55, %57, %cst_47 {dimension_numbers = #tpu.dot_dimension_numbers<[1], [0], [0], [1], [0, 0, 1, 1], [], []>} : vector<200x32xbf16>, vector<32x64xbf16>, vector<200x64xf32> -> vector<200x64xf32>
    %59 = arith.addf %53, %58 : vector<200x64xf32>
    %60 = arith.addf %25, %42 : vector<200x64xf32>
    %61 = arith.addf %60, %59 : vector<200x64xf32>
    %c0_48 = arith.constant 0 : index
    %c0_49 = arith.constant 0 : index
    %62 = vector.load %arg4[%c0_48, %c0_49] : memref<1x64xf32, #tpu.memory_space<vmem>>, vector<1x64xf32>
    %63 = vector.broadcast %62 : vector<1x64xf32> to vector<200x64xf32>
    %64 = arith.addf %61, %63 : vector<200x64xf32>
    %cst_50 = arith.constant 0.000000e+00 : f32
    %65 = vector.broadcast %cst_50 : f32 to vector<200x64xf32>
    %66 = arith.maximumf %64, %65 : vector<200x64xf32>
    %c0_51 = arith.constant 0 : index
    %c0_52 = arith.constant 0 : index
    %67 = vector.load %arg13[%c0_51, %c0_52] : memref<200x64xf32, #tpu.memory_space<vmem>>, vector<200x64xf32>
    tpu.vector_store %arg13[%c0_51, %c0_52], %66 {strides = array<i32>} : memref<200x64xf32, #tpu.memory_space<vmem>>, vector<200x64xf32>,
    %c0_53 = arith.constant 0 : index
    %c0_54 = arith.constant 0 : index
    %68 = vector.load %arg13[%c0_53, %c0_54] : memref<200x64xf32, #tpu.memory_space<vmem>>, vector<160x64xf32>
    %69 = arith.truncf %68 : vector<160x64xf32> to vector<160x64xbf16>
    %c0_55 = arith.constant 0 : index
    %c0_56 = arith.constant 0 : index
    %c0_57 = arith.constant 0 : index
    %70 = vector.load %arg5[%c0_55, %c0_56, %c0_57] : memref<9x64x64xbf16, #tpu.memory_space<vmem>>, vector<1x64x64xbf16>
    %71 = vector.shape_cast %70 : vector<1x64x64xbf16> to vector<64x64xbf16>
    %cst_58 = arith.constant dense<0.000000e+00> : vector<160x64xf32>
    %72 = tpu.matmul %69, %71, %cst_58 {dimension_numbers = #tpu.dot_dimension_numbers<[1], [0], [0], [1], [0, 0, 1, 1], [], []>} : vector<160x64xbf16>, vector<64x64xbf16>, vector<160x64xf32> -> vector<160x64xf32>
    %c1_59 = arith.constant 1 : index
    %c0_60 = arith.constant 0 : index
    %73 = vector.load %arg13[%c1_59, %c0_60] : memref<200x64xf32, #tpu.memory_space<vmem>>, vector<160x64xf32>
    %74 = arith.truncf %73 : vector<160x64xf32> to vector<160x64xbf16>
    %c1_61 = arith.constant 1 : index
    %c0_62 = arith.constant 0 : index
    %c0_63 = arith.constant 0 : index
    %75 = vector.load %arg5[%c1_61, %c0_62, %c0_63] : memref<9x64x64xbf16, #tpu.memory_space<vmem>>, vector<1x64x64xbf16>
    %76 = vector.shape_cast %75 : vector<1x64x64xbf16> to vector<64x64xbf16>
    %cst_64 = arith.constant dense<0.000000e+00> : vector<160x64xf32>
    %77 = tpu.matmul %74, %76, %cst_64 {dimension_numbers = #tpu.dot_dimension_numbers<[1], [0], [0], [1], [0, 0, 1, 1], [], []>} : vector<160x64xbf16>, vector<64x64xbf16>, vector<160x64xf32> -> vector<160x64xf32>
    %78 = arith.addf %72, %77 : vector<160x64xf32>
    %c2_65 = arith.constant 2 : index
    %c0_66 = arith.constant 0 : index
    %79 = vector.load %arg13[%c2_65, %c0_66] : memref<200x64xf32, #tpu.memory_space<vmem>>, vector<160x64xf32>
    %80 = arith.truncf %79 : vector<160x64xf32> to vector<160x64xbf16>
    %c2_67 = arith.constant 2 : index
    %c0_68 = arith.constant 0 : index
    %c0_69 = arith.constant 0 : index
    %81 = vector.load %arg5[%c2_67, %c0_68, %c0_69] : memref<9x64x64xbf16, #tpu.memory_space<vmem>>, vector<1x64x64xbf16>
    %82 = vector.shape_cast %81 : vector<1x64x64xbf16> to vector<64x64xbf16>
    %cst_70 = arith.constant dense<0.000000e+00> : vector<160x64xf32>
    %83 = tpu.matmul %80, %82, %cst_70 {dimension_numbers = #tpu.dot_dimension_numbers<[1], [0], [0], [1], [0, 0, 1, 1], [], []>} : vector<160x64xbf16>, vector<64x64xbf16>, vector<160x64xf32> -> vector<160x64xf32>
    %84 = arith.addf %78, %83 : vector<160x64xf32>
    %c16_71 = arith.constant 16 : index
    %c0_72 = arith.constant 0 : index
    %85 = vector.load %arg13[%c16_71, %c0_72] : memref<200x64xf32, #tpu.memory_space<vmem>>, vector<160x64xf32>
    %86 = arith.truncf %85 : vector<160x64xf32> to vector<160x64xbf16>
    %c3_73 = arith.constant 3 : index
    %c0_74 = arith.constant 0 : index
    %c0_75 = arith.constant 0 : index
    %87 = vector.load %arg5[%c3_73, %c0_74, %c0_75] : memref<9x64x64xbf16, #tpu.memory_space<vmem>>, vector<1x64x64xbf16>
    %88 = vector.shape_cast %87 : vector<1x64x64xbf16> to vector<64x64xbf16>
    %cst_76 = arith.constant dense<0.000000e+00> : vector<160x64xf32>
    %89 = tpu.matmul %86, %88, %cst_76 {dimension_numbers = #tpu.dot_dimension_numbers<[1], [0], [0], [1], [0, 0, 1, 1], [], []>} : vector<160x64xbf16>, vector<64x64xbf16>, vector<160x64xf32> -> vector<160x64xf32>
    %c17_77 = arith.constant 17 : index
    %c0_78 = arith.constant 0 : index
    %90 = vector.load %arg13[%c17_77, %c0_78] : memref<200x64xf32, #tpu.memory_space<vmem>>, vector<160x64xf32>
    %91 = arith.truncf %90 : vector<160x64xf32> to vector<160x64xbf16>
    %c4_79 = arith.constant 4 : index
    %c0_80 = arith.constant 0 : index
    %c0_81 = arith.constant 0 : index
    %92 = vector.load %arg5[%c4_79, %c0_80, %c0_81] : memref<9x64x64xbf16, #tpu.memory_space<vmem>>, vector<1x64x64xbf16>
    %93 = vector.shape_cast %92 : vector<1x64x64xbf16> to vector<64x64xbf16>
    %cst_82 = arith.constant dense<0.000000e+00> : vector<160x64xf32>
    %94 = tpu.matmul %91, %93, %cst_82 {dimension_numbers = #tpu.dot_dimension_numbers<[1], [0], [0], [1], [0, 0, 1, 1], [], []>} : vector<160x64xbf16>, vector<64x64xbf16>, vector<160x64xf32> -> vector<160x64xf32>
    %95 = arith.addf %89, %94 : vector<160x64xf32>
    %c18_83 = arith.constant 18 : index
    %c0_84 = arith.constant 0 : index
    %96 = vector.load %arg13[%c18_83, %c0_84] : memref<200x64xf32, #tpu.memory_space<vmem>>, vector<160x64xf32>
    %97 = arith.truncf %96 : vector<160x64xf32> to vector<160x64xbf16>
    %c5_85 = arith.constant 5 : index
    %c0_86 = arith.constant 0 : index
    %c0_87 = arith.constant 0 : index
    %98 = vector.load %arg5[%c5_85, %c0_86, %c0_87] : memref<9x64x64xbf16, #tpu.memory_space<vmem>>, vector<1x64x64xbf16>
    %99 = vector.shape_cast %98 : vector<1x64x64xbf16> to vector<64x64xbf16>
    %cst_88 = arith.constant dense<0.000000e+00> : vector<160x64xf32>
    %100 = tpu.matmul %97, %99, %cst_88 {dimension_numbers = #tpu.dot_dimension_numbers<[1], [0], [0], [1], [0, 0, 1, 1], [], []>} : vector<160x64xbf16>, vector<64x64xbf16>, vector<160x64xf32> -> vector<160x64xf32>
    %101 = arith.addf %95, %100 : vector<160x64xf32>
    %c32_89 = arith.constant 32 : index
    %c0_90 = arith.constant 0 : index
    %102 = vector.load %arg13[%c32_89, %c0_90] : memref<200x64xf32, #tpu.memory_space<vmem>>, vector<160x64xf32>
    %103 = arith.truncf %102 : vector<160x64xf32> to vector<160x64xbf16>
    %c6_91 = arith.constant 6 : index
    %c0_92 = arith.constant 0 : index
    %c0_93 = arith.constant 0 : index
    %104 = vector.load %arg5[%c6_91, %c0_92, %c0_93] : memref<9x64x64xbf16, #tpu.memory_space<vmem>>, vector<1x64x64xbf16>
    %105 = vector.shape_cast %104 : vector<1x64x64xbf16> to vector<64x64xbf16>
    %cst_94 = arith.constant dense<0.000000e+00> : vector<160x64xf32>
    %106 = tpu.matmul %103, %105, %cst_94 {dimension_numbers = #tpu.dot_dimension_numbers<[1], [0], [0], [1], [0, 0, 1, 1], [], []>} : vector<160x64xbf16>, vector<64x64xbf16>, vector<160x64xf32> -> vector<160x64xf32>
    %c33_95 = arith.constant 33 : index
    %c0_96 = arith.constant 0 : index
    %107 = vector.load %arg13[%c33_95, %c0_96] : memref<200x64xf32, #tpu.memory_space<vmem>>, vector<160x64xf32>
    %108 = arith.truncf %107 : vector<160x64xf32> to vector<160x64xbf16>
    %c7_97 = arith.constant 7 : index
    %c0_98 = arith.constant 0 : index
    %c0_99 = arith.constant 0 : index
    %109 = vector.load %arg5[%c7_97, %c0_98, %c0_99] : memref<9x64x64xbf16, #tpu.memory_space<vmem>>, vector<1x64x64xbf16>
    %110 = vector.shape_cast %109 : vector<1x64x64xbf16> to vector<64x64xbf16>
    %cst_100 = arith.constant dense<0.000000e+00> : vector<160x64xf32>
    %111 = tpu.matmul %108, %110, %cst_100 {dimension_numbers = #tpu.dot_dimension_numbers<[1], [0], [0], [1], [0, 0, 1, 1], [], []>} : vector<160x64xbf16>, vector<64x64xbf16>, vector<160x64xf32> -> vector<160x64xf32>
    %112 = arith.addf %106, %111 : vector<160x64xf32>
    %c34_101 = arith.constant 34 : index
    %c0_102 = arith.constant 0 : index
    %113 = vector.load %arg13[%c34_101, %c0_102] : memref<200x64xf32, #tpu.memory_space<vmem>>, vector<160x64xf32>
    %114 = arith.truncf %113 : vector<160x64xf32> to vector<160x64xbf16>
    %c8_103 = arith.constant 8 : index
    %c0_104 = arith.constant 0 : index
    %c0_105 = arith.constant 0 : index
    %115 = vector.load %arg5[%c8_103, %c0_104, %c0_105] : memref<9x64x64xbf16, #tpu.memory_space<vmem>>, vector<1x64x64xbf16>
    %116 = vector.shape_cast %115 : vector<1x64x64xbf16> to vector<64x64xbf16>
    %cst_106 = arith.constant dense<0.000000e+00> : vector<160x64xf32>
    %117 = tpu.matmul %114, %116, %cst_106 {dimension_numbers = #tpu.dot_dimension_numbers<[1], [0], [0], [1], [0, 0, 1, 1], [], []>} : vector<160x64xbf16>, vector<64x64xbf16>, vector<160x64xf32> -> vector<160x64xf32>
    %118 = arith.addf %112, %117 : vector<160x64xf32>
    %119 = arith.addf %84, %101 : vector<160x64xf32>
    %120 = arith.addf %119, %118 : vector<160x64xf32>
    %c0_107 = arith.constant 0 : index
    %c0_108 = arith.constant 0 : index
    %121 = vector.load %arg6[%c0_107, %c0_108] : memref<1x64xf32, #tpu.memory_space<vmem>>, vector<1x64xf32>
    %122 = vector.broadcast %121 : vector<1x64xf32> to vector<160x64xf32>
    %123 = arith.addf %120, %122 : vector<160x64xf32>
    %cst_109 = arith.constant 0.000000e+00 : f32
    %124 = vector.broadcast %cst_109 : f32 to vector<160x64xf32>
    %125 = arith.maximumf %123, %124 : vector<160x64xf32>
    %c0_110 = arith.constant 0 : index
    %c0_111 = arith.constant 0 : index
    %126 = vector.load %arg7[%c0_110, %c0_111] : memref<160x160xbf16, #tpu.memory_space<vmem>>, vector<160x160xbf16>
    %127 = arith.truncf %125 : vector<160x64xf32> to vector<160x64xbf16>
    %cst_112 = arith.constant dense<0.000000e+00> : vector<160x64xf32>
    %128 = tpu.matmul %126, %127, %cst_112 {dimension_numbers = #tpu.dot_dimension_numbers<[1], [0], [0], [1], [0, 0, 1, 1], [], []>} : vector<160x160xbf16>, vector<160x64xbf16>, vector<160x64xf32> -> vector<160x64xf32>
    %129 = tpu.iota {dimensions = array<i32: 0>} : vector<160x64xi32>
    %130 = tpu.iota {dimensions = array<i32: 1>} : vector<160x64xi32>
    %c31_i32 = arith.constant 31 : i32
    %131 = vector.broadcast %c31_i32 : i32 to vector<160x64xi32>
    %132 = arith.andi %129, %131 : vector<160x64xi32>
    %c128_i32 = arith.constant 128 : i32
    %133 = vector.broadcast %c128_i32 : i32 to vector<160x64xi32>
    %134 = arith.cmpi sge, %129, %133 : vector<160x64xi32>
    %c32_i32 = arith.constant 32 : i32
    %c0_i32 = arith.constant 0 : i32
    %135 = vector.broadcast %c32_i32 : i32 to vector<160x64xi32>
    %136 = vector.broadcast %c0_i32 : i32 to vector<160x64xi32>
    %137 = arith.select %134, %135, %136 : vector<160x64xi1>, vector<160x64xi32>
    %138 = arith.addi %132, %137 : vector<160x64xi32>
    %139 = arith.cmpi eq, %130, %138 : vector<160x64xi32>
    %cst_113 = arith.constant 0.000000e+00 : f32
    %140 = vector.broadcast %cst_113 : f32 to vector<160x64xf32>
    %141 = arith.select %139, %128, %140 : vector<160x64xi1>, vector<160x64xf32>
    %c0_114 = arith.constant 0 : index
    %c0_115 = arith.constant 0 : index
    %142 = vector.load %arg8[%c0_114, %c0_115] : memref<5x160xf32, #tpu.memory_space<vmem>>, vector<5x160xf32>
    %cst_116 = arith.constant dense<0.000000e+00> : vector<5x64xf32>
    %143 = tpu.matmul %142, %141, %cst_116 {dimension_numbers = #tpu.dot_dimension_numbers<[1], [0], [0], [1], [0, 0, 1, 1], [], []>} : vector<5x160xf32>, vector<160x64xf32>, vector<5x64xf32> -> vector<5x64xf32>
    %cst_117 = arith.constant dense<0.000000e+00> : vector<5xf32>
    %144 = vector.multi_reduction <add>, %143, %cst_117 [1] : vector<5x64xf32> to vector<5xf32>
    %145 = vector.shape_cast %144 : vector<5xf32> to vector<5x1xf32>
    %c0_118 = arith.constant 0 : index
    %c0_119 = arith.constant 0 : index
    %146 = vector.load %arg9[%c0_118, %c0_119] : memref<5x1xf32, #tpu.memory_space<vmem>>, vector<5x1xf32>
    %147 = arith.addf %145, %146 : vector<5x1xf32>
    %148 = vector.extract_strided_slice %147 {offsets = [0, 0], sizes = [4, 1], strides = [1, 1]} : vector<5x1xf32> to vector<4x1xf32>
    %cst_120 = arith.constant dense<0xFF800000> : vector<1xf32>
    %149 = vector.multi_reduction <maximumf>, %148, %cst_120 [0] : vector<4x1xf32> to vector<1xf32>
    %150 = vector.shape_cast %149 : vector<1xf32> to vector<1x1xf32>
    %151 = vector.broadcast %150 : vector<1x1xf32> to vector<4x1xf32>
    %152 = arith.subf %148, %151 : vector<4x1xf32>
    %153 = math.exp %152 : vector<4x1xf32>
    %cst_121 = arith.constant dense<0.000000e+00> : vector<1xf32>
    %154 = vector.multi_reduction <add>, %153, %cst_121 [0] : vector<4x1xf32> to vector<1xf32>
    %155 = vector.shape_cast %154 : vector<1xf32> to vector<1x1xf32>
    %156 = vector.broadcast %155 : vector<1x1xf32> to vector<4x1xf32>
    %157 = arith.divf %153, %156 : vector<4x1xf32>
    %c0_122 = arith.constant 0 : index
    %c0_123 = arith.constant 0 : index
    %158 = vector.load %arg10[%c0_122, %c0_123] : memref<4x1xf32, #tpu.memory_space<vmem>>, vector<4x1xf32>
    tpu.vector_store %arg10[%c0_122, %c0_123], %157 {strides = array<i32>} : memref<4x1xf32, #tpu.memory_space<vmem>>, vector<4x1xf32>,
    %159 = vector.extract_strided_slice %147 {offsets = [4, 0], sizes = [1, 1], strides = [1, 1]} : vector<5x1xf32> to vector<1x1xf32>
    %cst_124 = arith.constant 0.000000e+00 : f32
    %160 = vector.broadcast %cst_124 : f32 to vector<1x1xf32>
    %161 = arith.maximumf %159, %160 : vector<1x1xf32>
    %c0_125 = arith.constant 0 : index
    %c0_126 = arith.constant 0 : index
    %162 = vector.load %arg11[%c0_125, %c0_126] : memref<1x1xf32, #tpu.memory_space<vmem>>, vector<1x1xf32>
    tpu.vector_store %arg11[%c0_125, %c0_126], %161 {strides = array<i32>} : memref<1x1xf32, #tpu.memory_space<vmem>>, vector<1x1xf32>,
    return
  }
}

</mosaic_0001>

<llo_original>
// kernel: _lambda_.1
$region0: #{_lambda_.1}
  #allocation0 [shape = 'u32[]', space=smem, size = 0x4, offset = 0x4, fixed_abs, tag = 'smem constant byte address 0x4 - core index']
  #allocation1 [shape = 'u32[144,128]{1,0:T(1,128)}', space=vmem, size = 0x12000, scoped, tag = 'internal scratch']
  #allocation2 [shape = 'f32[240,32]{1,0:T(8,128)}', space=vmem, size = 0x1e000, scoped, tag = 'scratch operand']
  #allocation3 [shape = 'f32[200,64]{1,0:T(8,128)}', space=vmem, size = 0x19000, scoped, tag = 'scratch operand']
  %s0 = inlined_call_operand.vmem [shape: bf16[240,45], index: 0, kind: input, shape index: {}]
  %s1 = inlined_call_operand.vmem [shape: bf16[45,32], index: 1, kind: input, shape index: {}]
  %s2 = inlined_call_operand.vmem [shape: f32[1,32], index: 2, kind: input, shape index: {}]
  %s3 = inlined_call_operand.vmem [shape: bf16[9,32,64], index: 3, kind: input, shape index: {}]
  %s4 = inlined_call_operand.vmem [shape: f32[1,64], index: 4, kind: input, shape index: {}]
  %s5 = inlined_call_operand.vmem [shape: bf16[9,64,64], index: 5, kind: input, shape index: {}]
  %s6 = inlined_call_operand.vmem [shape: f32[1,64], index: 6, kind: input, shape index: {}]
  %s7 = inlined_call_operand.vmem [shape: bf16[160,160], index: 7, kind: input, shape index: {}]
  %s8 = inlined_call_operand.vmem [shape: f32[5,160], index: 8, kind: input, shape index: {}]
  %s9 = inlined_call_operand.vmem [shape: f32[5,1], index: 9, kind: input, shape index: {}]
  %s10 = inlined_call_operand.vmem [shape: f32[4,1], index: 10, kind: output, shape index: {0}]
  %s11 = inlined_call_operand.hbm [shape: f32[1,1], index: 11, kind: output, shape index: {1}]
  %12 = xla_tuple %s10, %s11
  %s13 = sld [smem:[#allocation0]]
  $region58: #{_lambda_.1} parent=0
    _
  %s15 = ssub.s32 1, %s13
  %s16 = scalar_select 0, %s15, %s13
  $region1: #{_lambda_.1} parent=0
    #allocation4 [shape = 'u8[512]{0}', space=vmem, size = 0x400, scoped, tag = 'output window, operand 1, single buffered']
    #allocation5 [shape = 's32[1]{0}', space=sflag, size = 0x4, scoped, tag = 'scoped memory for _lambda_.1']
    %17 = vsyncpa [#allocation5], 0
    // Predicated region
    $region2: #{_lambda_.1} parent=1 // pred_check
      _
    $region3: #{_lambda_.1} parent=1 // pred_check_branch
      %19 = sbr.rel (0) target = $region5
    $region4: #{_lambda_.1} parent=1 // pred_region
      _
    $region5: #{_lambda_.1} parent=1 // pred_fallthru
      _
    // Predicated region
    $region6: #{_lambda_.1} parent=1 // pred_check
      _
    $region7: #{_lambda_.1} parent=1 // pred_check_branch
      %21 = sbr.rel (0) target = $region9
    $region8: #{_lambda_.1} parent=1 // pred_region
      _
    $region9: #{_lambda_.1} parent=1 // pred_fallthru
      _
    // Predicated region
    $region10: #{_lambda_.1} parent=1 // pred_check
      _
    $region11: #{_lambda_.1} parent=1 // pred_check_branch
      %23 = sbr.rel (0) target = $region13
    $region12: #{_lambda_.1} parent=1 // pred_region
      _
    $region13: #{_lambda_.1} parent=1 // pred_fallthru
      _
    // Predicated region
    $region14: #{_lambda_.1} parent=1 // pred_check
      _
    $region15: #{_lambda_.1} parent=1 // pred_check_branch
      %25 = sbr.rel (0) target = $region17
    $region16: #{_lambda_.1} parent=1 // pred_region
      _
    $region17: #{_lambda_.1} parent=1 // pred_fallthru
      _
    // Predicated region
    $region18: #{_lambda_.1} parent=1 // pred_check
      _
    $region19: #{_lambda_.1} parent=1 // pred_check_branch
      %27 = sbr.rel (0) target = $region21
    $region20: #{_lambda_.1} parent=1 // pred_region
      _
    $region21: #{_lambda_.1} parent=1 // pred_fallthru
      _
    // Predicated region
    $region22: #{_lambda_.1} parent=1 // pred_check
      _
    $region23: #{_lambda_.1} parent=1 // pred_check_branch
      %29 = sbr.rel (0) target = $region25
    $region24: #{_lambda_.1} parent=1 // pred_region
      _
    $region25: #{_lambda_.1} parent=1 // pred_fallthru
      _
    // Predicated region
    $region26: #{_lambda_.1} parent=1 // pred_check
      _
    $region27: #{_lambda_.1} parent=1 // pred_check_branch
      %31 = sbr.rel (0) target = $region29
    $region28: #{_lambda_.1} parent=1 // pred_region
      _
    $region29: #{_lambda_.1} parent=1 // pred_fallthru
      _
    // Predicated region
    $region30: #{_lambda_.1} parent=1 // pred_check
      _
    $region31: #{_lambda_.1} parent=1 // pred_check_branch
      %33 = sbr.rel (0) target = $region33
    $region32: #{_lambda_.1} parent=1 // pred_region
      _
    $region33: #{_lambda_.1} parent=1 // pred_fallthru
      _
    // Predicated region
    $region34: #{_lambda_.1} parent=1 // pred_check
      _
    $region35: #{_lambda_.1} parent=1 // pred_check_branch
      %35 = sbr.rel (0) target = $region37
    $region36: #{_lambda_.1} parent=1 // pred_region
      _
    $region37: #{_lambda_.1} parent=1 // pred_fallthru
      _
    // Predicated region
    $region38: #{_lambda_.1} parent=1 // pred_check
      _
    $region39: #{_lambda_.1} parent=1 // pred_check_branch
      %37 = sbr.rel (0) target = $region41
    $region40: #{_lambda_.1} parent=1 // pred_region
      _
    $region41: #{_lambda_.1} parent=1 // pred_fallthru
      _
    %v39 = vld [vmem:[%s0] sm:$0xf]
    %v40 = vld [vmem:[%s0 + $0x4] sm:$0xf]
    %v41 = vld [vmem:[%s0 + $0x8] sm:$0xf]
    %v42 = vld [vmem:[%s0 + $0xc] sm:$0xf]
    %v43 = vld [vmem:[%s0 + $0x10] sm:$0xf]
    %v44 = vld [vmem:[%s0 + $0x14] sm:$0xf]
    %v45 = vld [vmem:[%s0 + $0x18] sm:$0xf]
    %v46 = vld [vmem:[%s0 + $0x1c] sm:$0xf]
    %v47 = vld [vmem:[%s0 + $0x20] sm:$0xf]
    %v48 = vld [vmem:[%s0 + $0x24] sm:$0xf]
    %v49 = vld [vmem:[%s0 + $0x28] sm:$0xf]
    %v50 = vld [vmem:[%s0 + $0x2c] sm:$0xf]
    %v51 = vld [vmem:[%s0 + $0x30] sm:$0xf]
    %v52 = vld [vmem:[%s0 + $0x34] sm:$0xf]
    %v53 = vld [vmem:[%s0 + $0x38] sm:$0xf]
    %v54 = vld [vmem:[%s0 + $0x3c] sm:$0xf]
    %v55 = vld [vmem:[%s0 + $0x40] sm:$0xf]
    %v56 = vld [vmem:[%s0 + $0x44] sm:$0xf]
    %v57 = vld [vmem:[%s0 + $0x48] sm:$0xf]
    %v58 = vld [vmem:[%s0 + $0x4c] sm:$0xf]
    %v59 = vld [vmem:[%s0 + $0x50] sm:$0xf]
    %v60 = vld [vmem:[%s0 + $0x54] sm:$0xf]
    %v61 = vld [vmem:[%s0 + $0x58] sm:$0xf]
    %v62 = vld [vmem:[%s0 + $0x5c] sm:$0xf]
    %v63 = vld [vmem:[%s0 + $0x60] sm:$0xf]
    %v64 = vld [vmem:[%s0 + $0x64] sm:$0xf]
    %v65 = vld [vmem:[%s0 + $0x68] sm:$0xf]
    %v66 = vld [vmem:[%s0 + $0x6c] sm:$0xf]
    %v67 = vld [vmem:[%s0 + $0x70] sm:$0xf]
    %v68 = vld [vmem:[%s0 + $0x74] sm:$0xf]
    %v69 = vld [vmem:[%s1] sm:$0xf]
    %v70 = vld [vmem:[%s1 + $0x4] sm:$0xf]
    %v71 = vld [vmem:[%s1 + $0x8] sm:$0xf]
    %v72 = vld [vmem:[%s1 + $0xc] sm:$0xf]
    %v73 = vld [vmem:[%s1 + $0x10] sm:$0xf]
    %v74 = vld [vmem:[%s1 + $0x14] sm:$0x7]
    %v75 = vld [vmem:[%s2] sm:$0x1]
    %v77 = vlaneseq
    %v78 = vshrl.u32 %v77, 7
    %v79 = vsub.s32 0, %v78
    %v80 = vrot.slane %v75, %v79
    %v112 = vunpack.c.l.b16 %v39
    %v113 = vunpack.c.l.b16 %v40
    %v114 = vunpack.c.l.b16 %v41
    %v115 = vunpack.c.l.b16 %v42
    %v116 = vunpack.c.l.b16 %v43
    %v117 = vunpack.c.l.b16 %v44
    %v118 = vunpack.c.l.b16 %v45
    %v119 = vunpack.c.l.b16 %v46
    %v120 = vunpack.c.l.b16 %v47
    %v121 = vunpack.c.l.b16 %v48
    %v122 = vunpack.c.l.b16 %v49
    %v123 = vunpack.c.l.b16 %v50
    %v124 = vunpack.c.l.b16 %v51
    %v125 = vunpack.c.l.b16 %v52
    %v126 = vunpack.c.l.b16 %v53
    %v127 = vunpack.c.l.b16 %v54
    %v128 = vunpack.c.l.b16 %v55
    %v129 = vunpack.c.l.b16 %v56
    %v130 = vunpack.c.l.b16 %v57
    %v131 = vunpack.c.l.b16 %v58
    %v132 = vunpack.c.l.b16 %v59
    %v133 = vunpack.c.l.b16 %v60
    %v134 = vunpack.c.l.b16 %v61
    %v135 = vunpack.c.l.b16 %v62
    %v136 = vunpack.c.l.b16 %v63
    %v137 = vunpack.c.l.b16 %v64
    %v138 = vunpack.c.l.b16 %v65
    %v139 = vunpack.c.l.b16 %v66
    %v140 = vunpack.c.l.b16 %v67
    %v141 = vunpack.c.l.b16 %v68
    %v142 = vpack.c.b16 %v113, %v112
    %v143 = vpack.c.b16 %v115, %v114
    %v144 = vpack.c.b16 %v117, %v116
    %v145 = vpack.c.b16 %v119, %v118
    %v146 = vpack.c.b16 %v121, %v120
    %v147 = vpack.c.b16 %v123, %v122
    %v148 = vpack.c.b16 %v125, %v124
    %v149 = vpack.c.b16 %v127, %v126
    %v150 = vpack.c.b16 %v129, %v128
    %v151 = vpack.c.b16 %v131, %v130
    %v152 = vpack.c.b16 %v133, %v132
    %v153 = vpack.c.b16 %v135, %v134
    %v154 = vpack.c.b16 %v137, %v136
    %v155 = vpack.c.b16 %v139, %v138
    %v156 = vpack.c.b16 %v141, %v140
    %v163 = vunpack.c.l.b16 %v69
    %v164 = vunpack.c.l.b16 %v70
    %v165 = vunpack.c.l.b16 %v71
    %v166 = vunpack.c.l.b16 %v72
    %v167 = vunpack.c.l.b16 %v73
    %v168 = vunpack.c.l.b16 %v74
    %v169 = vpack.c.b16 %v164, %v163
    %v170 = vpack.c.b16 %v166, %v165
    %v171 = vpack.c.b16 %v168, %v167
    %vm174 = vcmask 367616
    %v176 = vsel %vm174, %v142, 0
    %v179 = vsel %vm174, %v143, 0
    %v182 = vsel %vm174, %v144, 0
    %v185 = vsel %vm174, %v145, 0
    %v188 = vsel %vm174, %v146, 0
    %v191 = vsel %vm174, %v147, 0
    %v194 = vsel %vm174, %v148, 0
    %v197 = vsel %vm174, %v149, 0
    %v200 = vsel %vm174, %v150, 0
    %v203 = vsel %vm174, %v151, 0
    %v206 = vsel %vm174, %v152, 0
    %v209 = vsel %vm174, %v153, 0
    %v212 = vsel %vm174, %v154, 0
    %v215 = vsel %vm174, %v155, 0
    %v218 = vsel %vm174, %v156, 0
    %vm220 = vcmask 1045504
    %vm221 = vcmask 1046528
    %v222 = vsel %vm220, 4294967295, 65535
    %v223 = vsel %vm221, %v222, 0
    %v225 = vand.u32 %v171, %v223
    %227 = vmatprep.subr.bf16.mxu0 0
    %228 = vmatpush1.bf16.msra.mxu0 %v169
    %229 = vmatprep.subr.bf16.mxu0 0
    %230 = vmatpush1.bf16.msra.mxu0 %v170
    %231 = vmatprep.subr.bf16.mxu0 0
    %232 = vmatpush1.bf16.msra.mxu0 %v225
    %233 = vmatprep.subr.bf16.mxu0 0
    %234 = vmatpush1.bf16.msra.mxu0 0
    %235 = vmatprep.subr.bf16.mxu0 0
    %236 = vmatpush1.bf16.msra.mxu0 0
    %237 = vmatprep.subr.bf16.mxu0 0
    %238 = vmatpush1.bf16.msra.mxu0 0
    %239 = vmatprep.subr.bf16.mxu0 0
    %240 = vmatpush1.bf16.msra.mxu0 0
    %241 = vmatprep.subr.bf16.mxu0 0
    %242 = vmatpush1.bf16.msra.mxu0 0
    %243 = vmatprep.subr.bf16.mxu0 0
    %244 = vmatpush1.bf16.msra.mxu0 0
    %245 = vmatprep.subr.bf16.mxu0 0
    %246 = vmatpush1.bf16.msra.mxu0 0
    %247 = vmatprep.subr.bf16.mxu0 0
    %248 = vmatpush1.bf16.msra.mxu0 0
    %249 = vmatprep.subr.bf16.mxu0 0
    %250 = vmatpush1.bf16.msra.mxu0 0
    %251 = vmatprep.subr.bf16.mxu0 0
    %252 = vmatpush1.bf16.msra.mxu0 0
    %253 = vmatprep.subr.bf16.mxu0 0
    %254 = vmatpush1.bf16.msra.mxu0 0
    %255 = vmatprep.subr.bf16.mxu0 0
    %256 = vmatpush1.bf16.msra.mxu0 0
    %257 = vmatprep.subr.bf16.mxu0 0
    %258 = vmatpush1.bf16.msra.mxu0 0
    %259 = vmatprep.mubr.bf16.mxu0 0
    %260 = vmatmul.mubr.bf16.gmra.mrb[0].mxu0 %v176
    %v261 = vpop.f32.mrb[0].mxu0
    %v262 = vadd.f32 %v80, %v261
    %v263 = vpop.f32.mrb[0].mxu0
    %v264 = vpop.f32.mrb[0].mxu0
    %v265 = vadd.f32 %v80, %v264
    %v266 = vpop.f32.mrb[0].mxu0
    %267 = vmatprep.mubr.bf16.mxu0 0
    %268 = vmatmul.mubr.bf16.gmra.mrb[0].mxu0 %v179
    %v269 = vpop.f32.mrb[0].mxu0
    %v270 = vadd.f32 %v80, %v269
    %v271 = vpop.f32.mrb[0].mxu0
    %v272 = vpop.f32.mrb[0].mxu0
    %v273 = vadd.f32 %v80, %v272
    %v274 = vpop.f32.mrb[0].mxu0
    %275 = vmatprep.mubr.bf16.mxu0 0
    %276 = vmatmul.mubr.bf16.gmra.mrb[0].mxu0 %v182
    %v277 = vpop.f32.mrb[0].mxu0
    %v278 = vadd.f32 %v80, %v277
    %v279 = vpop.f32.mrb[0].mxu0
    %v280 = vpop.f32.mrb[0].mxu0
    %v281 = vadd.f32 %v80, %v280
    %v282 = vpop.f32.mrb[0].mxu0
    %283 = vmatprep.mubr.bf16.mxu0 0
    %284 = vmatmul.mubr.bf16.gmra.mrb[0].mxu0 %v185
    %v285 = vpop.f32.mrb[0].mxu0
    %v286 = vadd.f32 %v80, %v285
    %v287 = vpop.f32.mrb[0].mxu0
    %v288 = vpop.f32.mrb[0].mxu0
    %v289 = vadd.f32 %v80, %v288
    %v290 = vpop.f32.mrb[0].mxu0
    %291 = vmatprep.mubr.bf16.mxu0 0
    %292 = vmatmul.mubr.bf16.gmra.mrb[0].mxu0 %v188
    %v293 = vpop.f32.mrb[0].mxu0
    %v294 = vadd.f32 %v80, %v293
    %v295 = vpop.f32.mrb[0].mxu0
    %v296 = vpop.f32.mrb[0].mxu0
    %v297 = vadd.f32 %v80, %v296
    %v298 = vpop.f32.mrb[0].mxu0
    %299 = vmatprep.mubr.bf16.mxu0 0
    %300 = vmatmul.mubr.bf16.gmra.mrb[0].mxu0 %v191
    %v301 = vpop.f32.mrb[0].mxu0
    %v302 = vadd.f32 %v80, %v301
    %v303 = vpop.f32.mrb[0].mxu0
    %v304 = vpop.f32.mrb[0].mxu0
    %v305 = vadd.f32 %v80, %v304
    %v306 = vpop.f32.mrb[0].mxu0
    %307 = vmatprep.mubr.bf16.mxu0 0
    %308 = vmatmul.mubr.bf16.gmra.mrb[0].mxu0 %v194
    %v309 = vpop.f32.mrb[0].mxu0
    %v310 = vadd.f32 %v80, %v309
    %v311 = vpop.f32.mrb[0].mxu0
    %v312 = vpop.f32.mrb[0].mxu0
    %v313 = vadd.f32 %v80, %v312
    %v314 = vpop.f32.mrb[0].mxu0
    %315 = vmatprep.mubr.bf16.mxu0 0
    %316 = vmatmul.mubr.bf16.gmra.mrb[0].mxu0 %v197
    %v317 = vpop.f32.mrb[0].mxu0
    %v318 = vadd.f32 %v80, %v317
    %v319 = vpop.f32.mrb[0].mxu0
    %v320 = vpop.f32.mrb[0].mxu0
    %v321 = vadd.f32 %v80, %v320
    %v322 = vpop.f32.mrb[0].mxu0
    %323 = vmatprep.mubr.bf16.mxu0 0
    %324 = vmatmul.mubr.bf16.gmra.mrb[0].mxu0 %v200
    %v325 = vpop.f32.mrb[0].mxu0
    %v326 = vadd.f32 %v80, %v325
    %v327 = vpop.f32.mrb[0].mxu0
    %v328 = vpop.f32.mrb[0].mxu0
    %v329 = vadd.f32 %v80, %v328
    %v330 = vpop.f32.mrb[0].mxu0
    %331 = vmatprep.mubr.bf16.mxu0 0
    %332 = vmatmul.mubr.bf16.gmra.mrb[0].mxu0 %v203
    %v333 = vpop.f32.mrb[0].mxu0
    %v334 = vadd.f32 %v80, %v333
    %v335 = vpop.f32.mrb[0].mxu0
    %v336 = vpop.f32.mrb[0].mxu0
    %v337 = vadd.f32 %v80, %v336
    %v338 = vpop.f32.mrb[0].mxu0
    %339 = vmatprep.mubr.bf16.mxu0 0
    %340 = vmatmul.mubr.bf16.gmra.mrb[0].mxu0 %v206
    %v341 = vpop.f32.mrb[0].mxu0
    %v342 = vadd.f32 %v80, %v341
    %v343 = vpop.f32.mrb[0].mxu0
    %v344 = vpop.f32.mrb[0].mxu0
    %v345 = vadd.f32 %v80, %v344
    %v346 = vpop.f32.mrb[0].mxu0
    %347 = vmatprep.mubr.bf16.mxu0 0
    %348 = vmatmul.mubr.bf16.gmra.mrb[0].mxu0 %v209
    %v349 = vpop.f32.mrb[0].mxu0
    %v350 = vadd.f32 %v80, %v349
    %v351 = vpop.f32.mrb[0].mxu0
    %v352 = vpop.f32.mrb[0].mxu0
    %v353 = vadd.f32 %v80, %v352
    %v354 = vpop.f32.mrb[0].mxu0
    %355 = vmatprep.mubr.bf16.mxu0 0
    %356 = vmatmul.mubr.bf16.gmra.mrb[0].mxu0 %v212
    %v357 = vpop.f32.mrb[0].mxu0
    %v358 = vadd.f32 %v80, %v357
    %v359 = vpop.f32.mrb[0].mxu0
    %v360 = vpop.f32.mrb[0].mxu0
    %v361 = vadd.f32 %v80, %v360
    %v362 = vpop.f32.mrb[0].mxu0
    %363 = vmatprep.mubr.bf16.mxu0 0
    %364 = vmatmul.mubr.bf16.gmra.mrb[0].mxu0 %v215
    %v365 = vpop.f32.mrb[0].mxu0
    %v366 = vadd.f32 %v80, %v365
    %v367 = vpop.f32.mrb[0].mxu0
    %v368 = vpop.f32.mrb[0].mxu0
    %v369 = vadd.f32 %v80, %v368
    %v370 = vpop.f32.mrb[0].mxu0
    %371 = vmatprep.mubr.bf16.mxu0 0
    %372 = vmatmul.mubr.bf16.gmra.mrb[0].mxu0 %v218
    %v373 = vpop.f32.mrb[0].mxu0
    %v374 = vadd.f32 %v80, %v373
    %v375 = vpop.f32.mrb[0].mxu0
    %v376 = vpop.f32.mrb[0].mxu0
    %v377 = vadd.f32 %v80, %v376
    %v378 = vpop.f32.mrb[0].mxu0
    %379 = vdwg.mxu0
    %v380 = vmax.f32 %v262, 0.0
    %v381 = vmax.f32 %v265, 0.0
    %v382 = vmax.f32 %v270, 0.0
    %v383 = vmax.f32 %v273, 0.0
    %v384 = vmax.f32 %v278, 0.0
    %v385 = vmax.f32 %v281, 0.0
    %v386 = vmax.f32 %v286, 0.0
    %v387 = vmax.f32 %v289, 0.0
    %v388 = vmax.f32 %v294, 0.0
    %v389 = vmax.f32 %v297, 0.0
    %v390 = vmax.f32 %v302, 0.0
    %v391 = vmax.f32 %v305, 0.0
    %v392 = vmax.f32 %v310, 0.0
    %v393 = vmax.f32 %v313, 0.0
    %v394 = vmax.f32 %v318, 0.0
    %v395 = vmax.f32 %v321, 0.0
    %v396 = vmax.f32 %v326, 0.0
    %v397 = vmax.f32 %v329, 0.0
    %v398 = vmax.f32 %v334, 0.0
    %v399 = vmax.f32 %v337, 0.0
    %v400 = vmax.f32 %v342, 0.0
    %v401 = vmax.f32 %v345, 0.0
    %v402 = vmax.f32 %v350, 0.0
    %v403 = vmax.f32 %v353, 0.0
    %v404 = vmax.f32 %v358, 0.0
    %v405 = vmax.f32 %v361, 0.0
    %v406 = vmax.f32 %v366, 0.0
    %v407 = vmax.f32 %v369, 0.0
    %v408 = vmax.f32 %v374, 0.0
    %v409 = vmax.f32 %v377, 0.0
    %vm410 = vcmask 261120
    %411 = vst.msk [vmem:[#allocation2] sm:$0xff] %vm410, %v380
    %412 = vst.msk [vmem:[#allocation2 + $0x8] sm:$0xff] %vm410, %v381
    %413 = vst.msk [vmem:[#allocation2 + $0x10] sm:$0xff] %vm410, %v382
    %414 = vst.msk [vmem:[#allocation2 + $0x18] sm:$0xff] %vm410, %v383
    %415 = vst.msk [vmem:[#allocation2 + $0x20] sm:$0xff] %vm410, %v384
    %416 = vst.msk [vmem:[#allocation2 + $0x28] sm:$0xff] %vm410, %v385
    %417 = vst.msk [vmem:[#allocation2 + $0x30] sm:$0xff] %vm410, %v386
    %418 = vst.msk [vmem:[#allocation2 + $0x38] sm:$0xff] %vm410, %v387
    %419 = vst.msk [vmem:[#allocation2 + $0x40] sm:$0xff] %vm410, %v388
    %420 = vst.msk [vmem:[#allocation2 + $0x48] sm:$0xff] %vm410, %v389
    %421 = vst.msk [vmem:[#allocation2 + $0x50] sm:$0xff] %vm410, %v390
    %422 = vst.msk [vmem:[#allocation2 + $0x58] sm:$0xff] %vm410, %v391
    %423 = vst.msk [vmem:[#allocation2 + $0x60] sm:$0xff] %vm410, %v392
    %424 = vst.msk [vmem:[#allocation2 + $0x68] sm:$0xff] %vm410, %v393
    %425 = vst.msk [vmem:[#allocation2 + $0x70] sm:$0xff] %vm410, %v394
    %426 = vst.msk [vmem:[#allocation2 + $0x78] sm:$0xff] %vm410, %v395
    %427 = vst.msk [vmem:[#allocation2 + $0x80] sm:$0xff] %vm410, %v396
    %428 = vst.msk [vmem:[#allocation2 + $0x88] sm:$0xff] %vm410, %v397
    %429 = vst.msk [vmem:[#allocation2 + $0x90] sm:$0xff] %vm410, %v398
    %430 = vst.msk [vmem:[#allocation2 + $0x98] sm:$0xff] %vm410, %v399
    %431 = vst.msk [vmem:[#allocation2 + $0xa0] sm:$0xff] %vm410, %v400
    %432 = vst.msk [vmem:[#allocation2 + $0xa8] sm:$0xff] %vm410, %v401
    %433 = vst.msk [vmem:[#allocation2 + $0xb0] sm:$0xff] %vm410, %v402
    %434 = vst.msk [vmem:[#allocation2 + $0xb8] sm:$0xff] %vm410, %v403
    %435 = vst.msk [vmem:[#allocation2 + $0xc0] sm:$0xff] %vm410, %v404
    %436 = vst.msk [vmem:[#allocation2 + $0xc8] sm:$0xff] %vm410, %v405
    %437 = vst.msk [vmem:[#allocation2 + $0xd0] sm:$0xff] %vm410, %v406
    %438 = vst.msk [vmem:[#allocation2 + $0xd8] sm:$0xff] %vm410, %v407
    %439 = vst.msk [vmem:[#allocation2 + $0xe0] sm:$0xff] %vm410, %v408
    %440 = vst.msk [vmem:[#allocation2 + $0xe8] sm:$0xff] %vm410, %v409
    %v441 = vld [vmem:[#allocation2] sm:$0xff]
    %v442 = vld [vmem:[#allocation2 + $0x8] sm:$0xff]
    %v443 = vld [vmem:[#allocation2 + $0x10] sm:$0xff]
    %v444 = vld [vmem:[#allocation2 + $0x18] sm:$0xff]
    %v445 = vld [vmem:[#allocation2 + $0x20] sm:$0xff]
    %v446 = vld [vmem:[#allocation2 + $0x28] sm:$0xff]
    %v447 = vld [vmem:[#allocation2 + $0x30] sm:$0xff]
    %v448 = vld [vmem:[#allocation2 + $0x38] sm:$0xff]
    %v449 = vld [vmem:[#allocation2 + $0x40] sm:$0xff]
    %v450 = vld [vmem:[#allocation2 + $0x48] sm:$0xff]
    %v451 = vld [vmem:[#allocation2 + $0x50] sm:$0xff]
    %v452 = vld [vmem:[#allocation2 + $0x58] sm:$0xff]
    %v453 = vld [vmem:[#allocation2 + $0x60] sm:$0xff]
    %v454 = vld [vmem:[#allocation2 + $0x68] sm:$0xff]
    %v455 = vld [vmem:[#allocation2 + $0x70] sm:$0xff]
    %v456 = vld [vmem:[#allocation2 + $0x78] sm:$0xff]
    %v457 = vld [vmem:[#allocation2 + $0x80] sm:$0xff]
    %v458 = vld [vmem:[#allocation2 + $0x88] sm:$0xff]
    %v459 = vld [vmem:[#allocation2 + $0x90] sm:$0xff]
    %v460 = vld [vmem:[#allocation2 + $0x98] sm:$0xff]
    %v461 = vld [vmem:[#allocation2 + $0xa0] sm:$0xff]
    %v462 = vld [vmem:[#allocation2 + $0xa8] sm:$0xff]
    %v463 = vld [vmem:[#allocation2 + $0xb0] sm:$0xff]
    %v464 = vld [vmem:[#allocation2 + $0xb8] sm:$0xff]
    %v465 = vld [vmem:[#allocation2 + $0xc0] sm:$0xff]
    %v466 = vpack.c.bf16 %v442, %v441
    %v467 = vpack.c.bf16 %v444, %v443
    %v468 = vpack.c.bf16 %v446, %v445
    %v469 = vpack.c.bf16 %v448, %v447
    %v470 = vpack.c.bf16 %v450, %v449
    %v471 = vpack.c.bf16 %v452, %v451
    %v472 = vpack.c.bf16 %v454, %v453
    %v473 = vpack.c.bf16 %v456, %v455
    %v474 = vpack.c.bf16 %v458, %v457
    %v475 = vpack.c.bf16 %v460, %v459
    %v476 = vpack.c.bf16 %v462, %v461
    %v477 = vpack.c.bf16 %v464, %v463
    %v478 = vpack.c.bf16 %v465, %v465
    %v479 = vld [vmem:[%s3] sm:$0xf]
    %v480 = vld [vmem:[%s3 + $0x4] sm:$0xf]
    %v481 = vld [vmem:[%s3 + $0x8] sm:$0xf]
    %v482 = vld [vmem:[%s3 + $0xc] sm:$0xf]
    %v483 = vld [vmem:[#allocation2 + $0x1] sm:$0xff]
    %v484 = vld [vmem:[#allocation2 + $0x9] sm:$0xff]
    %v485 = vld [vmem:[#allocation2 + $0x11] sm:$0xff]
    %v486 = vld [vmem:[#allocation2 + $0x19] sm:$0xff]
    %v487 = vld [vmem:[#allocation2 + $0x21] sm:$0xff]
    %v488 = vld [vmem:[#allocation2 + $0x29] sm:$0xff]
    %v489 = vld [vmem:[#allocation2 + $0x31] sm:$0xff]
    %v490 = vld [vmem:[#allocation2 + $0x39] sm:$0xff]
    %v491 = vld [vmem:[#allocation2 + $0x41] sm:$0xff]
    %v492 = vld [vmem:[#allocation2 + $0x49] sm:$0xff]
    %v493 = vld [vmem:[#allocation2 + $0x51] sm:$0xff]
    %v494 = vld [vmem:[#allocation2 + $0x59] sm:$0xff]
    %v495 = vld [vmem:[#allocation2 + $0x61] sm:$0xff]
    %v496 = vld [vmem:[#allocation2 + $0x69] sm:$0xff]
    %v497 = vld [vmem:[#allocation2 + $0x71] sm:$0xff]
    %v498 = vld [vmem:[#allocation2 + $0x79] sm:$0xff]
    %v499 = vld [vmem:[#allocation2 + $0x81] sm:$0xff]
    %v500 = vld [vmem:[#allocation2 + $0x89] sm:$0xff]
    %v501 = vld [vmem:[#allocation2 + $0x91] sm:$0xff]
    %v502 = vld [vmem:[#allocation2 + $0x99] sm:$0xff]
    %v503 = vld [vmem:[#allocation2 + $0xa1] sm:$0xff]
    %v504 = vld [vmem:[#allocation2 + $0xa9] sm:$0xff]
    %v505 = vld [vmem:[#allocation2 + $0xb1] sm:$0xff]
    %v506 = vld [vmem:[#allocation2 + $0xb9] sm:$0xff]
    %v507 = vld [vmem:[#allocation2 + $0xc1] sm:$0xff]
    %v508 = vpack.c.bf16 %v484, %v483
    %v509 = vpack.c.bf16 %v486, %v485
    %v510 = vpack.c.bf16 %v488, %v487
    %v511 = vpack.c.bf16 %v490, %v489
    %v512 = vpack.c.bf16 %v492, %v491
    %v513 = vpack.c.bf16 %v494, %v493
    %v514 = vpack.c.bf16 %v496, %v495
    %v515 = vpack.c.bf16 %v498, %v497
    %v516 = vpack.c.bf16 %v500, %v499
    %v517 = vpack.c.bf16 %v502, %v501
    %v518 = vpack.c.bf16 %v504, %v503
    %v519 = vpack.c.bf16 %v506, %v505
    %v520 = vpack.c.bf16 %v507, %v507
    %s521 = scalar_lea.vmem %s3, 16
    %v522 = vld [vmem:[%s521] sm:$0xf]
    %v523 = vld [vmem:[%s521 + $0x4] sm:$0xf]
    %v524 = vld [vmem:[%s521 + $0x8] sm:$0xf]
    %v525 = vld [vmem:[%s521 + $0xc] sm:$0xf]
    %v530 = vunpack.c.l.b16 %v522
    %v531 = vunpack.c.l.b16 %v523
    %v532 = vunpack.c.l.b16 %v524
    %v533 = vunpack.c.l.b16 %v525
    %v534 = vpack.c.b16 %v531, %v530
    %v535 = vpack.c.b16 %v533, %v532
    %v539 = vsel %vm410, %v508, 0
    %v542 = vsel %vm410, %v509, 0
    %v545 = vsel %vm410, %v510, 0
    %v548 = vsel %vm410, %v511, 0
    %v551 = vsel %vm410, %v512, 0
    %v554 = vsel %vm410, %v513, 0
    %v557 = vsel %vm410, %v514, 0
    %v560 = vsel %vm410, %v515, 0
    %v563 = vsel %vm410, %v516, 0
    %v566 = vsel %vm410, %v517, 0
    %v569 = vsel %vm410, %v518, 0
    %v572 = vsel %vm410, %v519, 0
    %v575 = vsel %vm410, %v520, 0
    %577 = vmatprep.subr.bf16.mxu0 0
    %578 = vmatpush1.bf16.msra.mxu0 %v534
    %579 = vmatprep.subr.bf16.mxu0 0
    %580 = vmatpush1.bf16.msra.mxu0 %v535
    %581 = vmatprep.subr.bf16.mxu0 0
    %582 = vmatpush1.bf16.msra.mxu0 0
    %583 = vmatprep.subr.bf16.mxu0 0
    %584 = vmatpush1.bf16.msra.mxu0 0
    %585 = vmatprep.subr.bf16.mxu0 0
    %586 = vmatpush1.bf16.msra.mxu0 0
    %587 = vmatprep.subr.bf16.mxu0 0
    %588 = vmatpush1.bf16.msra.mxu0 0
    %589 = vmatprep.subr.bf16.mxu0 0
    %590 = vmatpush1.bf16.msra.mxu0 0
    %591 = vmatprep.subr.bf16.mxu0 0
    %592 = vmatpush1.bf16.msra.mxu0 0
    %593 = vmatprep.subr.bf16.mxu0 0
    %594 = vmatpush1.bf16.msra.mxu0 0
    %595 = vmatprep.subr.bf16.mxu0 0
    %596 = vmatpush1.bf16.msra.mxu0 0
    %597 = vmatprep.subr.bf16.mxu0 0
    %598 = vmatpush1.bf16.msra.mxu0 0
    %599 = vmatprep.subr.bf16.mxu0 0
    %600 = vmatpush1.bf16.msra.mxu0 0
    %601 = vmatprep.subr.bf16.mxu0 0
    %602 = vmatpush1.bf16.msra.mxu0 0
    %603 = vmatprep.subr.bf16.mxu0 0
    %604 = vmatpush1.bf16.msra.mxu0 0
    %605 = vmatprep.subr.bf16.mxu0 0
    %606 = vmatpush1.bf16.msra.mxu0 0
    %607 = vmatprep.subr.bf16.mxu0 0
    %608 = vmatpush1.bf16.msra.mxu0 0
    %609 = vmatprep.mubr.bf16.mxu0 0
    %610 = vmatmul.mubr.bf16.gmra.mrb[0].mxu0 %v539
    %v611 = vpop.f32.mrb[0].mxu0
    %v612 = vadd.f32 0.0, %v611
    %v613 = vpop.f32.mrb[0].mxu0
    %v614 = vpop.f32.mrb[0].mxu0
    %v615 = vadd.f32 0.0, %v614
    %v616 = vpop.f32.mrb[0].mxu0
    %617 = vmatprep.mubr.bf16.mxu0 0
    %618 = vmatmul.mubr.bf16.gmra.mrb[0].mxu0 %v542
    %v619 = vpop.f32.mrb[0].mxu0
    %v620 = vadd.f32 0.0, %v619
    %v621 = vpop.f32.mrb[0].mxu0
    %v622 = vpop.f32.mrb[0].mxu0
    %v623 = vadd.f32 0.0, %v622
    %v624 = vpop.f32.mrb[0].mxu0
    %625 = vmatprep.mubr.bf16.mxu0 0
    %626 = vmatmul.mubr.bf16.gmra.mrb[0].mxu0 %v545
    %v627 = vpop.f32.mrb[0].mxu0
    %v628 = vadd.f32 0.0, %v627
    %v629 = vpop.f32.mrb[0].mxu0
    %v630 = vpop.f32.mrb[0].mxu0
    %v631 = vadd.f32 0.0, %v630
    %v632 = vpop.f32.mrb[0].mxu0
    %633 = vmatprep.mubr.bf16.mxu0 0
    %634 = vmatmul.mubr.bf16.gmra.mrb[0].mxu0 %v548
    %v635 = vpop.f32.mrb[0].mxu0
    %v636 = vadd.f32 0.0, %v635
    %v637 = vpop.f32.mrb[0].mxu0
    %v638 = vpop.f32.mrb[0].mxu0
    %v639 = vadd.f32 0.0, %v638
    %v640 = vpop.f32.mrb[0].mxu0
    %641 = vmatprep.mubr.bf16.mxu0 0
    %642 = vmatmul.mubr.bf16.gmra.mrb[0].mxu0 %v551
    %v643 = vpop.f32.mrb[0].mxu0
    %v644 = vadd.f32 0.0, %v643
    %v645 = vpop.f32.mrb[0].mxu0
    %v646 = vpop.f32.mrb[0].mxu0
    %v647 = vadd.f32 0.0, %v646
    %v648 = vpop.f32.mrb[0].mxu0
    %649 = vmatprep.mubr.bf16.mxu0 0
    %650 = vmatmul.mubr.bf16.gmra.mrb[0].mxu0 %v554
    %v651 = vpop.f32.mrb[0].mxu0
    %v652 = vadd.f32 0.0, %v651
    %v653 = vpop.f32.mrb[0].mxu0
    %v654 = vpop.f32.mrb[0].mxu0
    %v655 = vadd.f32 0.0, %v654
    %v656 = vpop.f32.mrb[0].mxu0
    %657 = vmatprep.mubr.bf16.mxu0 0
    %658 = vmatmul.mubr.bf16.gmra.mrb[0].mxu0 %v557
    %v659 = vpop.f32.mrb[0].mxu0
    %v660 = vadd.f32 0.0, %v659
    %v661 = vpop.f32.mrb[0].mxu0
    %v662 = vpop.f32.mrb[0].mxu0
    %v663 = vadd.f32 0.0, %v662
    %v664 = vpop.f32.mrb[0].mxu0
    %665 = vmatprep.mubr.bf16.mxu0 0
    %666 = vmatmul.mubr.bf16.gmra.mrb[0].mxu0 %v560
    %v667 = vpop.f32.mrb[0].mxu0
    %v668 = vadd.f32 0.0, %v667
    %v669 = vpop.f32.mrb[0].mxu0
    %v670 = vpop.f32.mrb[0].mxu0
    %v671 = vadd.f32 0.0, %v670
    %v672 = vpop.f32.mrb[0].mxu0
    %673 = vmatprep.mubr.bf16.mxu0 0
    %674 = vmatmul.mubr.bf16.gmra.mrb[0].mxu0 %v563
    %v675 = vpop.f32.mrb[0].mxu0
    %v676 = vadd.f32 0.0, %v675
    %v677 = vpop.f32.mrb[0].mxu0
    %v678 = vpop.f32.mrb[0].mxu0
    %v679 = vadd.f32 0.0, %v678
    %v680 = vpop.f32.mrb[0].mxu0
    %681 = vmatprep.mubr.bf16.mxu0 0
    %682 = vmatmul.mubr.bf16.gmra.mrb[0].mxu0 %v566
    %v683 = vpop.f32.mrb[0].mxu0
    %v684 = vadd.f32 0.0, %v683
    %v685 = vpop.f32.mrb[0].mxu0
    %v686 = vpop.f32.mrb[0].mxu0
    %v687 = vadd.f32 0.0, %v686
    %v688 = vpop.f32.mrb[0].mxu0
    %689 = vmatprep.mubr.bf16.mxu0 0
    %690 = vmatmul.mubr.bf16.gmra.mrb[0].mxu0 %v569
    %v691 = vpop.f32.mrb[0].mxu0
    %v692 = vadd.f32 0.0, %v691
    %v693 = vpop.f32.mrb[0].mxu0
    %v694 = vpop.f32.mrb[0].mxu0
    %v695 = vadd.f32 0.0, %v694
    %v696 = vpop.f32.mrb[0].mxu0
    %697 = vmatprep.mubr.bf16.mxu0 0
    %698 = vmatmul.mubr.bf16.gmra.mrb[0].mxu0 %v572
    %v699 = vpop.f32.mrb[0].mxu0
    %v700 = vadd.f32 0.0, %v699
    %v701 = vpop.f32.mrb[0].mxu0
    %v702 = vpop.f32.mrb[0].mxu0
    %v703 = vadd.f32 0.0, %v702
    %v704 = vpop.f32.mrb[0].mxu0
    %705 = vmatprep.mubr.bf16.mxu0 0
    %706 = vmatmul.mubr.bf16.gmra.mrb[0].mxu0 %v575
    %v707 = vpop.f32.mrb[0].mxu0
    %v708 = vadd.f32 0.0, %v707
    %v709 = vpop.f32.mrb[0].mxu0
    %v710 = vpop.f32.mrb[0].mxu0
    %v711 = vpop.f32.mrb[0].mxu0
    %712 = vdwg.mxu0
    %v717 = vunpack.c.l.b16 %v479
    %v718 = vunpack.c.l.b16 %v480
    %v719 = vunpack.c.l.b16 %v481
    %v720 = vunpack.c.l.b16 %v482
    %v721 = vpack.c.b16 %v718, %v717
    %v722 = vpack.c.b16 %v720, %v719
    %v726 = vsel %vm410, %v466, 0
    %v729 = vsel %vm410, %v467, 0
    %v732 = vsel %vm410, %v468, 0
    %v735 = vsel %vm410, %v469, 0
    %v738 = vsel %vm410, %v470, 0
    %v741 = vsel %vm410, %v471, 0
    %v744 = vsel %vm410, %v472, 0
    %v747 = vsel %vm410, %v473, 0
    %v750 = vsel %vm410, %v474, 0
    %v753 = vsel %vm410, %v475, 0
    %v756 = vsel %vm410, %v476, 0
    %v759 = vsel %vm410, %v477, 0
    %v762 = vsel %vm410, %v478, 0
    %764 = vmatprep.subr.bf16.mxu0 0
    %765 = vmatpush1.bf16.msra.mxu0 %v721
    %766 = vmatprep.subr.bf16.mxu0 0
    %767 = vmatpush1.bf16.msra.mxu0 %v722
    %768 = vmatprep.subr.bf16.mxu0 0
    %769 = vmatpush1.bf16.msra.mxu0 0
    %770 = vmatprep.subr.bf16.mxu0 0
    %771 = vmatpush1.bf16.msra.mxu0 0
    %772 = vmatprep.subr.bf16.mxu0 0
    %773 = vmatpush1.bf16.msra.mxu0 0
    %774 = vmatprep.subr.bf16.mxu0 0
    %775 = vmatpush1.bf16.msra.mxu0 0
    %776 = vmatprep.subr.bf16.mxu0 0
    %777 = vmatpush1.bf16.msra.mxu0 0
    %778 = vmatprep.subr.bf16.mxu0 0
    %779 = vmatpush1.bf16.msra.mxu0 0
    %780 = vmatprep.subr.bf16.mxu0 0
    %781 = vmatpush1.bf16.msra.mxu0 0
    %782 = vmatprep.subr.bf16.mxu0 0
    %783 = vmatpush1.bf16.msra.mxu0 0
    %784 = vmatprep.subr.bf16.mxu0 0
    %785 = vmatpush1.bf16.msra.mxu0 0
    %786 = vmatprep.subr.bf16.mxu0 0
    %787 = vmatpush1.bf16.msra.mxu0 0
    %788 = vmatprep.subr.bf16.mxu0 0
    %789 = vmatpush1.bf16.msra.mxu0 0
    %790 = vmatprep.subr.bf16.mxu0 0
    %791 = vmatpush1.bf16.msra.mxu0 0
    %792 = vmatprep.subr.bf16.mxu0 0
    %793 = vmatpush1.bf16.msra.mxu0 0
    %794 = vmatprep.subr.bf16.mxu0 0
    %795 = vmatpush1.bf16.msra.mxu0 0
    %796 = vmatprep.mubr.bf16.mxu0 0
    %797 = vmatmul.mubr.bf16.gmra.mrb[0].mxu0 %v726
    %v798 = vpop.f32.mrb[0].mxu0
    %v799 = vadd.f32 %v612, %v798
    %v800 = vpop.f32.mrb[0].mxu0
    %v801 = vpop.f32.mrb[0].mxu0
    %v802 = vadd.f32 %v615, %v801
    %v803 = vpop.f32.mrb[0].mxu0
    %804 = vmatprep.mubr.bf16.mxu0 0
    %805 = vmatmul.mubr.bf16.gmra.mrb[0].mxu0 %v729
    %v806 = vpop.f32.mrb[0].mxu0
    %v807 = vadd.f32 %v620, %v806
    %v808 = vpop.f32.mrb[0].mxu0
    %v809 = vpop.f32.mrb[0].mxu0
    %v810 = vadd.f32 %v623, %v809
    %v811 = vpop.f32.mrb[0].mxu0
    %812 = vmatprep.mubr.bf16.mxu0 0
    %813 = vmatmul.mubr.bf16.gmra.mrb[0].mxu0 %v732
    %v814 = vpop.f32.mrb[0].mxu0
    %v815 = vadd.f32 %v628, %v814
    %v816 = vpop.f32.mrb[0].mxu0
    %v817 = vpop.f32.mrb[0].mxu0
    %v818 = vadd.f32 %v631, %v817
    %v819 = vpop.f32.mrb[0].mxu0
    %820 = vmatprep.mubr.bf16.mxu0 0
    %821 = vmatmul.mubr.bf16.gmra.mrb[0].mxu0 %v735
    %v822 = vpop.f32.mrb[0].mxu0
    %v823 = vadd.f32 %v636, %v822
    %v824 = vpop.f32.mrb[0].mxu0
    %v825 = vpop.f32.mrb[0].mxu0
    %v826 = vadd.f32 %v639, %v825
    %v827 = vpop.f32.mrb[0].mxu0
    %828 = vmatprep.mubr.bf16.mxu0 0
    %829 = vmatmul.mubr.bf16.gmra.mrb[0].mxu0 %v738
    %v830 = vpop.f32.mrb[0].mxu0
    %v831 = vadd.f32 %v644, %v830
    %v832 = vpop.f32.mrb[0].mxu0
    %v833 = vpop.f32.mrb[0].mxu0
    %v834 = vadd.f32 %v647, %v833
    %v835 = vpop.f32.mrb[0].mxu0
    %836 = vmatprep.mubr.bf16.mxu0 0
    %837 = vmatmul.mubr.bf16.gmra.mrb[0].mxu0 %v741
    %v838 = vpop.f32.mrb[0].mxu0
    %v839 = vadd.f32 %v652, %v838
    %v840 = vpop.f32.mrb[0].mxu0
    %v841 = vpop.f32.mrb[0].mxu0
    %v842 = vadd.f32 %v655, %v841
    %v843 = vpop.f32.mrb[0].mxu0
    %844 = vmatprep.mubr.bf16.mxu0 0
    %845 = vmatmul.mubr.bf16.gmra.mrb[0].mxu0 %v744
    %v846 = vpop.f32.mrb[0].mxu0
    %v847 = vadd.f32 %v660, %v846
    %v848 = vpop.f32.mrb[0].mxu0
    %v849 = vpop.f32.mrb[0].mxu0
    %v850 = vadd.f32 %v663, %v849
    %v851 = vpop.f32.mrb[0].mxu0
    %852 = vmatprep.mubr.bf16.mxu0 0
    %853 = vmatmul.mubr.bf16.gmra.mrb[0].mxu0 %v747
    %v854 = vpop.f32.mrb[0].mxu0
    %v855 = vadd.f32 %v668, %v854
    %v856 = vpop.f32.mrb[0].mxu0
    %v857 = vpop.f32.mrb[0].mxu0
    %v858 = vadd.f32 %v671, %v857
    %v859 = vpop.f32.mrb[0].mxu0
    %860 = vmatprep.mubr.bf16.mxu0 0
    %861 = vmatmul.mubr.bf16.gmra.mrb[0].mxu0 %v750
    %v862 = vpop.f32.mrb[0].mxu0
    %v863 = vadd.f32 %v676, %v862
    %v864 = vpop.f32.mrb[0].mxu0
    %v865 = vpop.f32.mrb[0].mxu0
    %v866 = vadd.f32 %v679, %v865
    %v867 = vpop.f32.mrb[0].mxu0
    %868 = vmatprep.mubr.bf16.mxu0 0
    %869 = vmatmul.mubr.bf16.gmra.mrb[0].mxu0 %v753
    %v870 = vpop.f32.mrb[0].mxu0
    %v871 = vadd.f32 %v684, %v870
    %v872 = vpop.f32.mrb[0].mxu0
    %v873 = vpop.f32.mrb[0].mxu0
    %v874 = vadd.f32 %v687, %v873
    %v875 = vpop.f32.mrb[0].mxu0
    %876 = vmatprep.mubr.bf16.mxu0 0
    %877 = vmatmul.mubr.bf16.gmra.mrb[0].mxu0 %v756
    %v878 = vpop.f32.mrb[0].mxu0
    %v879 = vadd.f32 %v692, %v878
    %v880 = vpop.f32.mrb[0].mxu0
    %v881 = vpop.f32.mrb[0].mxu0
    %v882 = vadd.f32 %v695, %v881
    %v883 = vpop.f32.mrb[0].mxu0
    %884 = vmatprep.mubr.bf16.mxu0 0
    %885 = vmatmul.mubr.bf16.gmra.mrb[0].mxu0 %v759
    %v886 = vpop.f32.mrb[0].mxu0
    %v887 = vadd.f32 %v700, %v886
    %v888 = vpop.f32.mrb[0].mxu0
    %v889 = vpop.f32.mrb[0].mxu0
    %v890 = vadd.f32 %v703, %v889
    %v891 = vpop.f32.mrb[0].mxu0
    %892 = vmatprep.mubr.bf16.mxu0 0
    %893 = vmatmul.mubr.bf16.gmra.mrb[0].mxu0 %v762
    %v894 = vpop.f32.mrb[0].mxu0
    %v895 = vadd.f32 %v708, %v894
    %v896 = vpop.f32.mrb[0].mxu0
    %v897 = vpop.f32.mrb[0].mxu0
    %v898 = vpop.f32.mrb[0].mxu0
    %899 = vdwg.mxu0
    %v900 = vld [vmem:[#allocation2 + $0x2] sm:$0xff]
    %v901 = vld [vmem:[#allocation2 + $0xa] sm:$0xff]
    %v902 = vld [vmem:[#allocation2 + $0x12] sm:$0xff]
    %v903 = vld [vmem:[#allocation2 + $0x1a] sm:$0xff]
    %v904 = vld [vmem:[#allocation2 + $0x22] sm:$0xff]
    %v905 = vld [vmem:[#allocation2 + $0x2a] sm:$0xff]
    %v906 = vld [vmem:[#allocation2 + $0x32] sm:$0xff]
    %v907 = vld [vmem:[#allocation2 + $0x3a] sm:$0xff]
    %v908 = vld [vmem:[#allocation2 + $0x42] sm:$0xff]
    %v909 = vld [vmem:[#allocation2 + $0x4a] sm:$0xff]
    %v910 = vld [vmem:[#allocation2 + $0x52] sm:$0xff]
    %v911 = vld [vmem:[#allocation2 + $0x5a] sm:$0xff]
    %v912 = vld [vmem:[#allocation2 + $0x62] sm:$0xff]
    %v913 = vld [vmem:[#allocation2 + $0x6a] sm:$0xff]
    %v914 = vld [vmem:[#allocation2 + $0x72] sm:$0xff]
    %v915 = vld [vmem:[#allocation2 + $0x7a] sm:$0xff]
    %v916 = vld [vmem:[#allocation2 + $0x82] sm:$0xff]
    %v917 = vld [vmem:[#allocation2 + $0x8a] sm:$0xff]
    %v918 = vld [vmem:[#allocation2 + $0x92] sm:$0xff]
    %v919 = vld [vmem:[#allocation2 + $0x9a] sm:$0xff]
    %v920 = vld [vmem:[#allocation2 + $0xa2] sm:$0xff]
    %v921 = vld [vmem:[#allocation2 + $0xaa] sm:$0xff]
    %v922 = vld [vmem:[#allocation2 + $0xb2] sm:$0xff]
    %v923 = vld [vmem:[#allocation2 + $0xba] sm:$0xff]
    %v924 = vld [vmem:[#allocation2 + $0xc2] sm:$0xff]
    %v925 = vpack.c.bf16 %v901, %v900
    %v926 = vpack.c.bf16 %v903, %v902
    %v927 = vpack.c.bf16 %v905, %v904
    %v928 = vpack.c.bf16 %v907, %v906
    %v929 = vpack.c.bf16 %v909, %v908
    %v930 = vpack.c.bf16 %v911, %v910
    %v931 = vpack.c.bf16 %v913, %v912
    %v932 = vpack.c.bf16 %v915, %v914
    %v933 = vpack.c.bf16 %v917, %v916
    %v934 = vpack.c.bf16 %v919, %v918
    %v935 = vpack.c.bf16 %v921, %v920
    %v936 = vpack.c.bf16 %v923, %v922
    %v937 = vpack.c.bf16 %v924, %v924
    %s938 = scalar_lea.vmem %s3, 32
    %v939 = vld [vmem:[%s938] sm:$0xf]
    %v940 = vld [vmem:[%s938 + $0x4] sm:$0xf]
    %v941 = vld [vmem:[%s938 + $0x8] sm:$0xf]
    %v942 = vld [vmem:[%s938 + $0xc] sm:$0xf]
    %v947 = vunpack.c.l.b16 %v939
    %v948 = vunpack.c.l.b16 %v940
    %v949 = vunpack.c.l.b16 %v941
    %v950 = vunpack.c.l.b16 %v942
    %v951 = vpack.c.b16 %v948, %v947
    %v952 = vpack.c.b16 %v950, %v949
    %v956 = vsel %vm410, %v925, 0
    %v959 = vsel %vm410, %v926, 0
    %v962 = vsel %vm410, %v927, 0
    %v965 = vsel %vm410, %v928, 0
    %v968 = vsel %vm410, %v929, 0
    %v971 = vsel %vm410, %v930, 0
    %v974 = vsel %vm410, %v931, 0
    %v977 = vsel %vm410, %v932, 0
    %v980 = vsel %vm410, %v933, 0
    %v983 = vsel %vm410, %v934, 0
    %v986 = vsel %vm410, %v935, 0
    %v989 = vsel %vm410, %v936, 0
    %v992 = vsel %vm410, %v937, 0
    %994 = vmatprep.subr.bf16.mxu0 0
    %995 = vmatpush1.bf16.msra.mxu0 %v951
    %996 = vmatprep.subr.bf16.mxu0 0
    %997 = vmatpush1.bf16.msra.mxu0 %v952
    %998 = vmatprep.subr.bf16.mxu0 0
    %999 = vmatpush1.bf16.msra.mxu0 0
    %1000 = vmatprep.subr.bf16.mxu0 0
    %1001 = vmatpush1.bf16.msra.mxu0 0
    %1002 = vmatprep.subr.bf16.mxu0 0
    %1003 = vmatpush1.bf16.msra.mxu0 0
    %1004 = vmatprep.subr.bf16.mxu0 0
    %1005 = vmatpush1.bf16.msra.mxu0 0
    %1006 = vmatprep.subr.bf16.mxu0 0
    %1007 = vmatpush1.bf16.msra.mxu0 0
    %1008 = vmatprep.subr.bf16.mxu0 0
    %1009 = vmatpush1.bf16.msra.mxu0 0
    %1010 = vmatprep.subr.bf16.mxu0 0
    %1011 = vmatpush1.bf16.msra.mxu0 0
    %1012 = vmatprep.subr.bf16.mxu0 0
    %1013 = vmatpush1.bf16.msra.mxu0 0
    %1014 = vmatprep.subr.bf16.mxu0 0
    %1015 = vmatpush1.bf16.msra.mxu0 0
    %1016 = vmatprep.subr.bf16.mxu0 0
    %1017 = vmatpush1.bf16.msra.mxu0 0
    %1018 = vmatprep.subr.bf16.mxu0 0
    %1019 = vmatpush1.bf16.msra.mxu0 0
    %1020 = vmatprep.subr.bf16.mxu0 0
    %1021 = vmatpush1.bf16.msra.mxu0 0
    %1022 = vmatprep.subr.bf16.mxu0 0
    %1023 = vmatpush1.bf16.msra.mxu0 0
    %1024 = vmatprep.subr.bf16.mxu0 0
    %1025 = vmatpush1.bf16.msra.mxu0 0
    %1026 = vmatprep.mubr.bf16.mxu0 0
    %1027 = vmatmul.mubr.bf16.gmra.mrb[0].mxu0 %v956
    %v1028 = vpop.f32.mrb[0].mxu0
    %v1029 = vadd.f32 0.0, %v1028
    %v1030 = vpop.f32.mrb[0].mxu0
    %v1031 = vpop.f32.mrb[0].mxu0
    %v1032 = vadd.f32 0.0, %v1031
    %v1033 = vpop.f32.mrb[0].mxu0
    %1034 = vmatprep.mubr.bf16.mxu0 0
    %1035 = vmatmul.mubr.bf16.gmra.mrb[0].mxu0 %v959
    %v1036 = vpop.f32.mrb[0].mxu0
    %v1037 = vadd.f32 0.0, %v1036
    %v1038 = vpop.f32.mrb[0].mxu0
    %v1039 = vpop.f32.mrb[0].mxu0
    %v1040 = vadd.f32 0.0, %v1039
    %v1041 = vpop.f32.mrb[0].mxu0
    %1042 = vmatprep.mubr.bf16.mxu0 0
    %1043 = vmatmul.mubr.bf16.gmra.mrb[0].mxu0 %v962
    %v1044 = vpop.f32.mrb[0].mxu0
    %v1045 = vadd.f32 0.0, %v1044
    %v1046 = vpop.f32.mrb[0].mxu0
    %v1047 = vpop.f32.mrb[0].mxu0
    %v1048 = vadd.f32 0.0, %v1047
    %v1049 = vpop.f32.mrb[0].mxu0
    %1050 = vmatprep.mubr.bf16.mxu0 0
    %1051 = vmatmul.mubr.bf16.gmra.mrb[0].mxu0 %v965
    %v1052 = vpop.f32.mrb[0].mxu0
    %v1053 = vadd.f32 0.0, %v1052
    %v1054 = vpop.f32.mrb[0].mxu0
    %v1055 = vpop.f32.mrb[0].mxu0
    %v1056 = vadd.f32 0.0, %v1055
    %v1057 = vpop.f32.mrb[0].mxu0
    %1058 = vmatprep.mubr.bf16.mxu0 0
    %1059 = vmatmul.mubr.bf16.gmra.mrb[0].mxu0 %v968
    %v1060 = vpop.f32.mrb[0].mxu0
    %v1061 = vadd.f32 0.0, %v1060
    %v1062 = vpop.f32.mrb[0].mxu0
    %v1063 = vpop.f32.mrb[0].mxu0
    %v1064 = vadd.f32 0.0, %v1063
    %v1065 = vpop.f32.mrb[0].mxu0
    %1066 = vmatprep.mubr.bf16.mxu0 0
    %1067 = vmatmul.mubr.bf16.gmra.mrb[0].mxu0 %v971
    %v1068 = vpop.f32.mrb[0].mxu0
    %v1069 = vadd.f32 0.0, %v1068
    %v1070 = vpop.f32.mrb[0].mxu0
    %v1071 = vpop.f32.mrb[0].mxu0
    %v1072 = vadd.f32 0.0, %v1071
    %v1073 = vpop.f32.mrb[0].mxu0
    %1074 = vmatprep.mubr.bf16.mxu0 0
    %1075 = vmatmul.mubr.bf16.gmra.mrb[0].mxu0 %v974
    %v1076 = vpop.f32.mrb[0].mxu0
    %v1077 = vadd.f32 0.0, %v1076
    %v1078 = vpop.f32.mrb[0].mxu0
    %v1079 = vpop.f32.mrb[0].mxu0
    %v1080 = vadd.f32 0.0, %v1079
    %v1081 = vpop.f32.mrb[0].mxu0
    %1082 = vmatprep.mubr.bf16.mxu0 0
    %1083 = vmatmul.mubr.bf16.gmra.mrb[0].mxu0 %v977
    %v1084 = vpop.f32.mrb[0].mxu0
    %v1085 = vadd.f32 0.0, %v1084
    %v1086 = vpop.f32.mrb[0].mxu0
    %v1087 = vpop.f32.mrb[0].mxu0
    %v1088 = vadd.f32 0.0, %v1087
    %v1089 = vpop.f32.mrb[0].mxu0
    %1090 = vmatprep.mubr.bf16.mxu0 0
    %1091 = vmatmul.mubr.bf16.gmra.mrb[0].mxu0 %v980
    %v1092 = vpop.f32.mrb[0].mxu0
    %v1093 = vadd.f32 0.0, %v1092
    %v1094 = vpop.f32.mrb[0].mxu0
    %v1095 = vpop.f32.mrb[0].mxu0
    %v1096 = vadd.f32 0.0, %v1095
    %v1097 = vpop.f32.mrb[0].mxu0
    %1098 = vmatprep.mubr.bf16.mxu0 0
    %1099 = vmatmul.mubr.bf16.gmra.mrb[0].mxu0 %v983
    %v1100 = vpop.f32.mrb[0].mxu0
    %v1101 = vadd.f32 0.0, %v1100
    %v1102 = vpop.f32.mrb[0].mxu0
    %v1103 = vpop.f32.mrb[0].mxu0
    %v1104 = vadd.f32 0.0, %v1103
    %v1105 = vpop.f32.mrb[0].mxu0
    %1106 = vmatprep.mubr.bf16.mxu0 0
    %1107 = vmatmul.mubr.bf16.gmra.mrb[0].mxu0 %v986
    %v1108 = vpop.f32.mrb[0].mxu0
    %v1109 = vadd.f32 0.0, %v1108
    %v1110 = vpop.f32.mrb[0].mxu0
    %v1111 = vpop.f32.mrb[0].mxu0
    %v1112 = vadd.f32 0.0, %v1111
    %v1113 = vpop.f32.mrb[0].mxu0
    %1114 = vmatprep.mubr.bf16.mxu0 0
    %1115 = vmatmul.mubr.bf16.gmra.mrb[0].mxu0 %v989
    %v1116 = vpop.f32.mrb[0].mxu0
    %v1117 = vadd.f32 0.0, %v1116
    %v1118 = vpop.f32.mrb[0].mxu0
    %v1119 = vpop.f32.mrb[0].mxu0
    %v1120 = vadd.f32 0.0, %v1119
    %v1121 = vpop.f32.mrb[0].mxu0
    %1122 = vmatprep.mubr.bf16.mxu0 0
    %1123 = vmatmul.mubr.bf16.gmra.mrb[0].mxu0 %v992
    %v1124 = vpop.f32.mrb[0].mxu0
    %v1125 = vadd.f32 0.0, %v1124
    %v1126 = vpop.f32.mrb[0].mxu0
    %v1127 = vpop.f32.mrb[0].mxu0
    %v1128 = vpop.f32.mrb[0].mxu0
    %1129 = vdwg.mxu0
    %v1130 = vadd.f32 %v799, %v1029
    %v1131 = vadd.f32 %v802, %v1032
    %v1132 = vadd.f32 %v807, %v1037
    %v1133 = vadd.f32 %v810, %v1040
    %v1134 = vadd.f32 %v815, %v1045
    %v1135 = vadd.f32 %v818, %v1048
    %v1136 = vadd.f32 %v823, %v1053
    %v1137 = vadd.f32 %v826, %v1056
    %v1138 = vadd.f32 %v831, %v1061
    %v1139 = vadd.f32 %v834, %v1064
    %v1140 = vadd.f32 %v839, %v1069
    %v1141 = vadd.f32 %v842, %v1072
    %v1142 = vadd.f32 %v847, %v1077
    %v1143 = vadd.f32 %v850, %v1080
    %v1144 = vadd.f32 %v855, %v1085
    %v1145 = vadd.f32 %v858, %v1088
    %v1146 = vadd.f32 %v863, %v1093
    %v1147 = vadd.f32 %v866, %v1096
    %v1148 = vadd.f32 %v871, %v1101
    %v1149 = vadd.f32 %v874, %v1104
    %v1150 = vadd.f32 %v879, %v1109
    %v1151 = vadd.f32 %v882, %v1112
    %v1152 = vadd.f32 %v887, %v1117
    %v1153 = vadd.f32 %v890, %v1120
    %v1154 = vadd.f32 %v895, %v1125
    %v1155 = vld [vmem:[#allocation2 + $0x10] sm:$0xff]
    %v1156 = vld [vmem:[#allocation2 + $0x18] sm:$0xff]
    %v1157 = vld [vmem:[#allocation2 + $0x20] sm:$0xff]
    %v1158 = vld [vmem:[#allocation2 + $0x28] sm:$0xff]
    %v1159 = vld [vmem:[#allocation2 + $0x30] sm:$0xff]
    %v1160 = vld [vmem:[#allocation2 + $0x38] sm:$0xff]
    %v1161 = vld [vmem:[#allocation2 + $0x40] sm:$0xff]
    %v1162 = vld [vmem:[#allocation2 + $0x48] sm:$0xff]
    %v1163 = vld [vmem:[#allocation2 + $0x50] sm:$0xff]
    %v1164 = vld [vmem:[#allocation2 + $0x58] sm:$0xff]
    %v1165 = vld [vmem:[#allocation2 + $0x60] sm:$0xff]
    %v1166 = vld [vmem:[#allocation2 + $0x68] sm:$0xff]
    %v1167 = vld [vmem:[#allocation2 + $0x70] sm:$0xff]
    %v1168 = vld [vmem:[#allocation2 + $0x78] sm:$0xff]
    %v1169 = vld [vmem:[#allocation2 + $0x80] sm:$0xff]
    %v1170 = vld [vmem:[#allocation2 + $0x88] sm:$0xff]
    %v1171 = vld [vmem:[#allocation2 + $0x90] sm:$0xff]
    %v1172 = vld [vmem:[#allocation2 + $0x98] sm:$0xff]
    %v1173 = vld [vmem:[#allocation2 + $0xa0] sm:$0xff]
    %v1174 = vld [vmem:[#allocation2 + $0xa8] sm:$0xff]
    %v1175 = vld [vmem:[#allocation2 + $0xb0] sm:$0xff]
    %v1176 = vld [vmem:[#allocation2 + $0xb8] sm:$0xff]
    %v1177 = vld [vmem:[#allocation2 + $0xc0] sm:$0xff]
    %v1178 = vld [vmem:[#allocation2 + $0xc8] sm:$0xff]
    %v1179 = vld [vmem:[#allocation2 + $0xd0] sm:$0xff]
    %v1180 = vpack.c.bf16 %v1156, %v1155
    %v1181 = vpack.c.bf16 %v1158, %v1157
    %v1182 = vpack.c.bf16 %v1160, %v1159
    %v1183 = vpack.c.bf16 %v1162, %v1161
    %v1184 = vpack.c.bf16 %v1164, %v1163
    %v1185 = vpack.c.bf16 %v1166, %v1165
    %v1186 = vpack.c.bf16 %v1168, %v1167
    %v1187 = vpack.c.bf16 %v1170, %v1169
    %v1188 = vpack.c.bf16 %v1172, %v1171
    %v1189 = vpack.c.bf16 %v1174, %v1173
    %v1190 = vpack.c.bf16 %v1176, %v1175
    %v1191 = vpack.c.bf16 %v1178, %v1177
    %v1192 = vpack.c.bf16 %v1179, %v1179
    %s1193 = scalar_lea.vmem %s3, 48
    %v1194 = vld [vmem:[%s1193] sm:$0xf]
    %v1195 = vld [vmem:[%s1193 + $0x4] sm:$0xf]
    %v1196 = vld [vmem:[%s1193 + $0x8] sm:$0xf]
    %v1197 = vld [vmem:[%s1193 + $0xc] sm:$0xf]
    %v1198 = vld [vmem:[#allocation2 + $0x11] sm:$0xff]
    %v1199 = vld [vmem:[#allocation2 + $0x19] sm:$0xff]
    %v1200 = vld [vmem:[#allocation2 + $0x21] sm:$0xff]
    %v1201 = vld [vmem:[#allocation2 + $0x29] sm:$0xff]
    %v1202 = vld [vmem:[#allocation2 + $0x31] sm:$0xff]
    %v1203 = vld [vmem:[#allocation2 + $0x39] sm:$0xff]
    %v1204 = vld [vmem:[#allocation2 + $0x41] sm:$0xff]
    %v1205 = vld [vmem:[#allocation2 + $0x49] sm:$0xff]
    %v1206 = vld [vmem:[#allocation2 + $0x51] sm:$0xff]
    %v1207 = vld [vmem:[#allocation2 + $0x59] sm:$0xff]
    %v1208 = vld [vmem:[#allocation2 + $0x61] sm:$0xff]
    %v1209 = vld [vmem:[#allocation2 + $0x69] sm:$0xff]
    %v1210 = vld [vmem:[#allocation2 + $0x71] sm:$0xff]
    %v1211 = vld [vmem:[#allocation2 + $0x79] sm:$0xff]
    %v1212 = vld [vmem:[#allocation2 + $0x81] sm:$0xff]
    %v1213 = vld [vmem:[#allocation2 + $0x89] sm:$0xff]
    %v1214 = vld [vmem:[#allocation2 + $0x91] sm:$0xff]
    %v1215 = vld [vmem:[#allocation2 + $0x99] sm:$0xff]
    %v1216 = vld [vmem:[#allocation2 + $0xa1] sm:$0xff]
    %v1217 = vld [vmem:[#allocation2 + $0xa9] sm:$0xff]
    %v1218 = vld [vmem:[#allocation2 + $0xb1] sm:$0xff]
    %v1219 = vld [vmem:[#allocation2 + $0xb9] sm:$0xff]
    %v1220 = vld [vmem:[#allocation2 + $0xc1] sm:$0xff]
    %v1221 = vld [vmem:[#allocation2 + $0xc9] sm:$0xff]
    %v1222 = vld [vmem:[#allocation2 + $0xd1] sm:$0xff]
    %v1223 = vpack.c.bf16 %v1199, %v1198
    %v1224 = vpack.c.bf16 %v1201, %v1200
    %v1225 = vpack.c.bf16 %v1203, %v1202
    %v1226 = vpack.c.bf16 %v1205, %v1204
    %v1227 = vpack.c.bf16 %v1207, %v1206
    %v1228 = vpack.c.bf16 %v1209, %v1208
    %v1229 = vpack.c.bf16 %v1211, %v1210
    %v1230 = vpack.c.bf16 %v1213, %v1212
    %v1231 = vpack.c.bf16 %v1215, %v1214
    %v1232 = vpack.c.bf16 %v1217, %v1216
    %v1233 = vpack.c.bf16 %v1219, %v1218
    %v1234 = vpack.c.bf16 %v1221, %v1220
    %v1235 = vpack.c.bf16 %v1222, %v1222
    %s1236 = scalar_lea.vmem %s3, 64
    %v1237 = vld [vmem:[%s1236] sm:$0xf]
    %v1238 = vld [vmem:[%s1236 + $0x4] sm:$0xf]
    %v1239 = vld [vmem:[%s1236 + $0x8] sm:$0xf]
    %v1240 = vld [vmem:[%s1236 + $0xc] sm:$0xf]
    %v1245 = vunpack.c.l.b16 %v1237
    %v1246 = vunpack.c.l.b16 %v1238
    %v1247 = vunpack.c.l.b16 %v1239
    %v1248 = vunpack.c.l.b16 %v1240
    %v1249 = vpack.c.b16 %v1246, %v1245
    %v1250 = vpack.c.b16 %v1248, %v1247
    %v1254 = vsel %vm410, %v1223, 0
    %v1257 = vsel %vm410, %v1224, 0
    %v1260 = vsel %vm410, %v1225, 0
    %v1263 = vsel %vm410, %v1226, 0
    %v1266 = vsel %vm410, %v1227, 0
    %v1269 = vsel %vm410, %v1228, 0
    %v1272 = vsel %vm410, %v1229, 0
    %v1275 = vsel %vm410, %v1230, 0
    %v1278 = vsel %vm410, %v1231, 0
    %v1281 = vsel %vm410, %v1232, 0
    %v1284 = vsel %vm410, %v1233, 0
    %v1287 = vsel %vm410, %v1234, 0
    %v1290 = vsel %vm410, %v1235, 0
    %1292 = vmatprep.subr.bf16.mxu0 0
    %1293 = vmatpush1.bf16.msra.mxu0 %v1249
    %1294 = vmatprep.subr.bf16.mxu0 0
    %1295 = vmatpush1.bf16.msra.mxu0 %v1250
    %1296 = vmatprep.subr.bf16.mxu0 0
    %1297 = vmatpush1.bf16.msra.mxu0 0
    %1298 = vmatprep.subr.bf16.mxu0 0
    %1299 = vmatpush1.bf16.msra.mxu0 0
    %1300 = vmatprep.subr.bf16.mxu0 0
    %1301 = vmatpush1.bf16.msra.mxu0 0
    %1302 = vmatprep.subr.bf16.mxu0 0
    %1303 = vmatpush1.bf16.msra.mxu0 0
    %1304 = vmatprep.subr.bf16.mxu0 0
    %1305 = vmatpush1.bf16.msra.mxu0 0
    %1306 = vmatprep.subr.bf16.mxu0 0
    %1307 = vmatpush1.bf16.msra.mxu0 0
    %1308 = vmatprep.subr.bf16.mxu0 0
    %1309 = vmatpush1.bf16.msra.mxu0 0
    %1310 = vmatprep.subr.bf16.mxu0 0
    %1311 = vmatpush1.bf16.msra.mxu0 0
    %1312 = vmatprep.subr.bf16.mxu0 0
    %1313 = vmatpush1.bf16.msra.mxu0 0
    %1314 = vmatprep.subr.bf16.mxu0 0
    %1315 = vmatpush1.bf16.msra.mxu0 0
    %1316 = vmatprep.subr.bf16.mxu0 0
    %1317 = vmatpush1.bf16.msra.mxu0 0
    %1318 = vmatprep.subr.bf16.mxu0 0
    %1319 = vmatpush1.bf16.msra.mxu0 0
    %1320 = vmatprep.subr.bf16.mxu0 0
    %1321 = vmatpush1.bf16.msra.mxu0 0
    %1322 = vmatprep.subr.bf16.mxu0 0
    %1323 = vmatpush1.bf16.msra.mxu0 0
    %1324 = vmatprep.mubr.bf16.mxu0 0
    %1325 = vmatmul.mubr.bf16.gmra.mrb[0].mxu0 %v1254
    %v1326 = vpop.f32.mrb[0].mxu0
    %v1327 = vadd.f32 0.0, %v1326
    %v1328 = vpop.f32.mrb[0].mxu0
    %v1329 = vpop.f32.mrb[0].mxu0
    %v1330 = vadd.f32 0.0, %v1329
    %v1331 = vpop.f32.mrb[0].mxu0
    %1332 = vmatprep.mubr.bf16.mxu0 0
    %1333 = vmatmul.mubr.bf16.gmra.mrb[0].mxu0 %v1257
    %v1334 = vpop.f32.mrb[0].mxu0
    %v1335 = vadd.f32 0.0, %v1334
    %v1336 = vpop.f32.mrb[0].mxu0
    %v1337 = vpop.f32.mrb[0].mxu0
    %v1338 = vadd.f32 0.0, %v1337
    %v1339 = vpop.f32.mrb[0].mxu0
    %1340 = vmatprep.mubr.bf16.mxu0 0
    %1341 = vmatmul.mubr.bf16.gmra.mrb[0].mxu0 %v1260
    %v1342 = vpop.f32.mrb[0].mxu0
    %v1343 = vadd.f32 0.0, %v1342
    %v1344 = vpop.f32.mrb[0].mxu0
    %v1345 = vpop.f32.mrb[0].mxu0
    %v1346 = vadd.f32 0.0, %v1345
    %v1347 = vpop.f32.mrb[0].mxu0
    %1348 = vmatprep.mubr.bf16.mxu0 0
    %1349 = vmatmul.mubr.bf16.gmra.mrb[0].mxu0 %v1263
    %v1350 = vpop.f32.mrb[0].mxu0
    %v1351 = vadd.f32 0.0, %v1350
    %v1352 = vpop.f32.mrb[0].mxu0
    %v1353 = vpop.f32.mrb[0].mxu0
    %v1354 = vadd.f32 0.0, %v1353
    %v1355 = vpop.f32.mrb[0].mxu0
    %1356 = vmatprep.mubr.bf16.mxu0 0
    %1357 = vmatmul.mubr.bf16.gmra.mrb[0].mxu0 %v1266
    %v1358 = vpop.f32.mrb[0].mxu0
    %v1359 = vadd.f32 0.0, %v1358
    %v1360 = vpop.f32.mrb[0].mxu0
    %v1361 = vpop.f32.mrb[0].mxu0
    %v1362 = vadd.f32 0.0, %v1361
    %v1363 = vpop.f32.mrb[0].mxu0
    %1364 = vmatprep.mubr.bf16.mxu0 0
    %1365 = vmatmul.mubr.bf16.gmra.mrb[0].mxu0 %v1269
    %v1366 = vpop.f32.mrb[0].mxu0
    %v1367 = vadd.f32 0.0, %v1366
    %v1368 = vpop.f32.mrb[0].mxu0
    %v1369 = vpop.f32.mrb[0].mxu0
    %v1370 = vadd.f32 0.0, %v1369
    %v1371 = vpop.f32.mrb[0].mxu0
    %1372 = vmatprep.mubr.bf16.mxu0 0
    %1373 = vmatmul.mubr.bf16.gmra.mrb[0].mxu0 %v1272
    %v1374 = vpop.f32.mrb[0].mxu0
    %v1375 = vadd.f32 0.0, %v1374
    %v1376 = vpop.f32.mrb[0].mxu0
    %v1377 = vpop.f32.mrb[0].mxu0
    %v1378 = vadd.f32 0.0, %v1377
    %v1379 = vpop.f32.mrb[0].mxu0
    %1380 = vmatprep.mubr.bf16.mxu0 0
    %1381 = vmatmul.mubr.bf16.gmra.mrb[0].mxu0 %v1275
    %v1382 = vpop.f32.mrb[0].mxu0
    %v1383 = vadd.f32 0.0, %v1382
    %v1384 = vpop.f32.mrb[0].mxu0
    %v1385 = vpop.f32.mrb[0].mxu0
    %v1386 = vadd.f32 0.0, %v1385
    %v1387 = vpop.f32.mrb[0].mxu0
    %1388 = vmatprep.mubr.bf16.mxu0 0
    %1389 = vmatmul.mubr.bf16.gmra.mrb[0].mxu0 %v1278
    %v1390 = vpop.f32.mrb[0].mxu0
    %v1391 = vadd.f32 0.0, %v1390
    %v1392 = vpop.f32.mrb[0].mxu0
    %v1393 = vpop.f32.mrb[0].mxu0
    %v1394 = vadd.f32 0.0, %v1393
    %v1395 = vpop.f32.mrb[0].mxu0
    %1396 = vmatprep.mubr.bf16.mxu0 0
    %1397 = vmatmul.mubr.bf16.gmra.mrb[0].mxu0 %v1281
    %v1398 = vpop.f32.mrb[0].mxu0
    %v1399 = vadd.f32 0.0, %v1398
    %v1400 = vpop.f32.mrb[0].mxu0
    %v1401 = vpop.f32.mrb[0].mxu0
    %v1402 = vadd.f32 0.0, %v1401
    %v1403 = vpop.f32.mrb[0].mxu0
    %1404 = vmatprep.mubr.bf16.mxu0 0
    %1405 = vmatmul.mubr.bf16.gmra.mrb[0].mxu0 %v1284
    %v1406 = vpop.f32.mrb[0].mxu0
    %v1407 = vadd.f32 0.0, %v1406
    %v1408 = vpop.f32.mrb[0].mxu0
    %v1409 = vpop.f32.mrb[0].mxu0
    %v1410 = vadd.f32 0.0, %v1409
    %v1411 = vpop.f32.mrb[0].mxu0
    %1412 = vmatprep.mubr.bf16.mxu0 0
    %1413 = vmatmul.mubr.bf16.gmra.mrb[0].mxu0 %v1287
    %v1414 = vpop.f32.mrb[0].mxu0
    %v1415 = vadd.f32 0.0, %v1414
    %v1416 = vpop.f32.mrb[0].mxu0
    %v1417 = vpop.f32.mrb[0].mxu0
    %v1418 = vadd.f32 0.0, %v1417
    %v1419 = vpop.f32.mrb[0].mxu0
    %1420 = vmatprep.mubr.bf16.mxu0 0
    %1421 = vmatmul.mubr.bf16.gmra.mrb[0].mxu0 %v1290
    %v1422 = vpop.f32.mrb[0].mxu0
    %v1423 = vadd.f32 0.0, %v1422
    %v1424 = vpop.f32.mrb[0].mxu0
    %v1425 = vpop.f32.mrb[0].mxu0
    %v1426 = vpop.f32.mrb[0].mxu0
    %1427 = vdwg.mxu0
    %v1432 = vunpack.c.l.b16 %v1194
    %v1433 = vunpack.c.l.b16 %v1195
    %v1434 = vunpack.c.l.b16 %v1196
    %v1435 = vunpack.c.l.b16 %v1197
    %v1436 = vpack.c.b16 %v1433, %v1432
    %v1437 = vpack.c.b16 %v1435, %v1434
    %v1441 = vsel %vm410, %v1180, 0
    %v1444 = vsel %vm410, %v1181, 0
    %v1447 = vsel %vm410, %v1182, 0
    %v1450 = vsel %vm410, %v1183, 0
    %v1453 = vsel %vm410, %v1184, 0
    %v1456 = vsel %vm410, %v1185, 0
    %v1459 = vsel %vm410, %v1186, 0
    %v1462 = vsel %vm410, %v1187, 0
    %v1465 = vsel %vm410, %v1188, 0
    %v1468 = vsel %vm410, %v1189, 0
    %v1471 = vsel %vm410, %v1190, 0
    %v1474 = vsel %vm410, %v1191, 0
    %v1477 = vsel %vm410, %v1192, 0
    %1479 = vmatprep.subr.bf16.mxu0 0
    %1480 = vmatpush1.bf16.msra.mxu0 %v1436
    %1481 = vmatprep.subr.bf16.mxu0 0
    %1482 = vmatpush1.bf16.msra.mxu0 %v1437
    %1483 = vmatprep.subr.bf16.mxu0 0
    %1484 = vmatpush1.bf16.msra.mxu0 0
    %1485 = vmatprep.subr.bf16.mxu0 0
    %1486 = vmatpush1.bf16.msra.mxu0 0
    %1487 = vmatprep.subr.bf16.mxu0 0
    %1488 = vmatpush1.bf16.msra.mxu0 0
    %1489 = vmatprep.subr.bf16.mxu0 0
    %1490 = vmatpush1.bf16.msra.mxu0 0
    %1491 = vmatprep.subr.bf16.mxu0 0
    %1492 = vmatpush1.bf16.msra.mxu0 0
    %1493 = vmatprep.subr.bf16.mxu0 0
    %1494 = vmatpush1.bf16.msra.mxu0 0
    %1495 = vmatprep.subr.bf16.mxu0 0
    %1496 = vmatpush1.bf16.msra.mxu0 0
    %1497 = vmatprep.subr.bf16.mxu0 0
    %1498 = vmatpush1.bf16.msra.mxu0 0
    %1499 = vmatprep.subr.bf16.mxu0 0
    %1500 = vmatpush1.bf16.msra.mxu0 0
    %1501 = vmatprep.subr.bf16.mxu0 0
    %1502 = vmatpush1.bf16.msra.mxu0 0
    %1503 = vmatprep.subr.bf16.mxu0 0
    %1504 = vmatpush1.bf16.msra.mxu0 0
    %1505 = vmatprep.subr.bf16.mxu0 0
    %1506 = vmatpush1.bf16.msra.mxu0 0
    %1507 = vmatprep.subr.bf16.mxu0 0
    %1508 = vmatpush1.bf16.msra.mxu0 0
    %1509 = vmatprep.subr.bf16.mxu0 0
    %1510 = vmatpush1.bf16.msra.mxu0 0
    %1511 = vmatprep.mubr.bf16.mxu0 0
    %1512 = vmatmul.mubr.bf16.gmra.mrb[0].mxu0 %v1441
    %v1513 = vpop.f32.mrb[0].mxu0
    %v1514 = vadd.f32 %v1327, %v1513
    %v1515 = vpop.f32.mrb[0].mxu0
    %v1516 = vpop.f32.mrb[0].mxu0
    %v1517 = vadd.f32 %v1330, %v1516
    %v1518 = vpop.f32.mrb[0].mxu0
    %1519 = vmatprep.mubr.bf16.mxu0 0
    %1520 = vmatmul.mubr.bf16.gmra.mrb[0].mxu0 %v1444
    %v1521 = vpop.f32.mrb[0].mxu0
    %v1522 = vadd.f32 %v1335, %v1521
    %v1523 = vpop.f32.mrb[0].mxu0
    %v1524 = vpop.f32.mrb[0].mxu0
    %v1525 = vadd.f32 %v1338, %v1524
    %v1526 = vpop.f32.mrb[0].mxu0
    %1527 = vmatprep.mubr.bf16.mxu0 0
    %1528 = vmatmul.mubr.bf16.gmra.mrb[0].mxu0 %v1447
    %v1529 = vpop.f32.mrb[0].mxu0
    %v1530 = vadd.f32 %v1343, %v1529
    %v1531 = vpop.f32.mrb[0].mxu0
    %v1532 = vpop.f32.mrb[0].mxu0
    %v1533 = vadd.f32 %v1346, %v1532
    %v1534 = vpop.f32.mrb[0].mxu0
    %1535 = vmatprep.mubr.bf16.mxu0 0
    %1536 = vmatmul.mubr.bf16.gmra.mrb[0].mxu0 %v1450
    %v1537 = vpop.f32.mrb[0].mxu0
    %v1538 = vadd.f32 %v1351, %v1537
    %v1539 = vpop.f32.mrb[0].mxu0
    %v1540 = vpop.f32.mrb[0].mxu0
    %v1541 = vadd.f32 %v1354, %v1540
    %v1542 = vpop.f32.mrb[0].mxu0
    %1543 = vmatprep.mubr.bf16.mxu0 0
    %1544 = vmatmul.mubr.bf16.gmra.mrb[0].mxu0 %v1453
    %v1545 = vpop.f32.mrb[0].mxu0
    %v1546 = vadd.f32 %v1359, %v1545
    %v1547 = vpop.f32.mrb[0].mxu0
    %v1548 = vpop.f32.mrb[0].mxu0
    %v1549 = vadd.f32 %v1362, %v1548
    %v1550 = vpop.f32.mrb[0].mxu0
    %1551 = vmatprep.mubr.bf16.mxu0 0
    %1552 = vmatmul.mubr.bf16.gmra.mrb[0].mxu0 %v1456
    %v1553 = vpop.f32.mrb[0].mxu0
    %v1554 = vadd.f32 %v1367, %v1553
    %v1555 = vpop.f32.mrb[0].mxu0
    %v1556 = vpop.f32.mrb[0].mxu0
    %v1557 = vadd.f32 %v1370, %v1556
    %v1558 = vpop.f32.mrb[0].mxu0
    %1559 = vmatprep.mubr.bf16.mxu0 0
    %1560 = vmatmul.mubr.bf16.gmra.mrb[0].mxu0 %v1459
    %v1561 = vpop.f32.mrb[0].mxu0
    %v1562 = vadd.f32 %v1375, %v1561
    %v1563 = vpop.f32.mrb[0].mxu0
    %v1564 = vpop.f32.mrb[0].mxu0
    %v1565 = vadd.f32 %v1378, %v1564
    %v1566 = vpop.f32.mrb[0].mxu0
    %1567 = vmatprep.mubr.bf16.mxu0 0
    %1568 = vmatmul.mubr.bf16.gmra.mrb[0].mxu0 %v1462
    %v1569 = vpop.f32.mrb[0].mxu0
    %v1570 = vadd.f32 %v1383, %v1569
    %v1571 = vpop.f32.mrb[0].mxu0
    %v1572 = vpop.f32.mrb[0].mxu0
    %v1573 = vadd.f32 %v1386, %v1572
    %v1574 = vpop.f32.mrb[0].mxu0
    %1575 = vmatprep.mubr.bf16.mxu0 0
    %1576 = vmatmul.mubr.bf16.gmra.mrb[0].mxu0 %v1465
    %v1577 = vpop.f32.mrb[0].mxu0
    %v1578 = vadd.f32 %v1391, %v1577
    %v1579 = vpop.f32.mrb[0].mxu0
    %v1580 = vpop.f32.mrb[0].mxu0
    %v1581 = vadd.f32 %v1394, %v1580
    %v1582 = vpop.f32.mrb[0].mxu0
    %1583 = vmatprep.mubr.bf16.mxu0 0
    %1584 = vmatmul.mubr.bf16.gmra.mrb[0].mxu0 %v1468
    %v1585 = vpop.f32.mrb[0].mxu0
    %v1586 = vadd.f32 %v1399, %v1585
    %v1587 = vpop.f32.mrb[0].mxu0
    %v1588 = vpop.f32.mrb[0].mxu0
    %v1589 = vadd.f32 %v1402, %v1588
    %v1590 = vpop.f32.mrb[0].mxu0
    %1591 = vmatprep.mubr.bf16.mxu0 0
    %1592 = vmatmul.mubr.bf16.gmra.mrb[0].mxu0 %v1471
    %v1593 = vpop.f32.mrb[0].mxu0
    %v1594 = vadd.f32 %v1407, %v1593
    %v1595 = vpop.f32.mrb[0].mxu0
    %v1596 = vpop.f32.mrb[0].mxu0
    %v1597 = vadd.f32 %v1410, %v1596
    %v1598 = vpop.f32.mrb[0].mxu0
    %1599 = vmatprep.mubr.bf16.mxu0 0
    %1600 = vmatmul.mubr.bf16.gmra.mrb[0].mxu0 %v1474
    %v1601 = vpop.f32.mrb[0].mxu0
    %v1602 = vadd.f32 %v1415, %v1601
    %v1603 = vpop.f32.mrb[0].mxu0
    %v1604 = vpop.f32.mrb[0].mxu0
    %v1605 = vadd.f32 %v1418, %v1604
    %v1606 = vpop.f32.mrb[0].mxu0
    %1607 = vmatprep.mubr.bf16.mxu0 0
    %1608 = vmatmul.mubr.bf16.gmra.mrb[0].mxu0 %v1477
    %v1609 = vpop.f32.mrb[0].mxu0
    %v1610 = vadd.f32 %v1423, %v1609
    %v1611 = vpop.f32.mrb[0].mxu0
    %v1612 = vpop.f32.mrb[0].mxu0
    %v1613 = vpop.f32.mrb[0].mxu0
    %1614 = vdwg.mxu0
    %v1615 = vld [vmem:[#allocation2 + $0x12] sm:$0xff]
    %v1616 = vld [vmem:[#allocation2 + $0x1a] sm:$0xff]
    %v1617 = vld [vmem:[#allocation2 + $0x22] sm:$0xff]
    %v1618 = vld [vmem:[#allocation2 + $0x2a] sm:$0xff]
    %v1619 = vld [vmem:[#allocation2 + $0x32] sm:$0xff]
    %v1620 = vld [vmem:[#allocation2 + $0x3a] sm:$0xff]
    %v1621 = vld [vmem:[#allocation2 + $0x42] sm:$0xff]
    %v1622 = vld [vmem:[#allocation2 + $0x4a] sm:$0xff]
    %v1623 = vld [vmem:[#allocation2 + $0x52] sm:$0xff]
    %v1624 = vld [vmem:[#allocation2 + $0x5a] sm:$0xff]
    %v1625 = vld [vmem:[#allocation2 + $0x62] sm:$0xff]
    %v1626 = vld [vmem:[#allocation2 + $0x6a] sm:$0xff]
    %v1627 = vld [vmem:[#allocation2 + $0x72] sm:$0xff]
    %v1628 = vld [vmem:[#allocation2 + $0x7a] sm:$0xff]
    %v1629 = vld [vmem:[#allocation2 + $0x82] sm:$0xff]
    %v1630 = vld [vmem:[#allocation2 + $0x8a] sm:$0xff]
    %v1631 = vld [vmem:[#allocation2 + $0x92] sm:$0xff]
    %v1632 = vld [vmem:[#allocation2 + $0x9a] sm:$0xff]
    %v1633 = vld [vmem:[#allocation2 + $0xa2] sm:$0xff]
    %v1634 = vld [vmem:[#allocation2 + $0xaa] sm:$0xff]
    %v1635 = vld [vmem:[#allocation2 + $0xb2] sm:$0xff]
    %v1636 = vld [vmem:[#allocation2 + $0xba] sm:$0xff]
    %v1637 = vld [vmem:[#allocation2 + $0xc2] sm:$0xff]
    %v1638 = vld [vmem:[#allocation2 + $0xca] sm:$0xff]
    %v1639 = vld [vmem:[#allocation2 + $0xd2] sm:$0xff]
    %v1640 = vpack.c.bf16 %v1616, %v1615
    %v1641 = vpack.c.bf16 %v1618, %v1617
    %v1642 = vpack.c.bf16 %v1620, %v1619
    %v1643 = vpack.c.bf16 %v1622, %v1621
    %v1644 = vpack.c.bf16 %v1624, %v1623
    %v1645 = vpack.c.bf16 %v1626, %v1625
    %v1646 = vpack.c.bf16 %v1628, %v1627
    %v1647 = vpack.c.bf16 %v1630, %v1629
    %v1648 = vpack.c.bf16 %v1632, %v1631
    %v1649 = vpack.c.bf16 %v1634, %v1633
    %v1650 = vpack.c.bf16 %v1636, %v1635
    %v1651 = vpack.c.bf16 %v1638, %v1637
    %v1652 = vpack.c.bf16 %v1639, %v1639
    %s1653 = scalar_lea.vmem %s3, 80
    %v1654 = vld [vmem:[%s1653] sm:$0xf]
    %v1655 = vld [vmem:[%s1653 + $0x4] sm:$0xf]
    %v1656 = vld [vmem:[%s1653 + $0x8] sm:$0xf]
    %v1657 = vld [vmem:[%s1653 + $0xc] sm:$0xf]
    %v1662 = vunpack.c.l.b16 %v1654
    %v1663 = vunpack.c.l.b16 %v1655
    %v1664 = vunpack.c.l.b16 %v1656
    %v1665 = vunpack.c.l.b16 %v1657
    %v1666 = vpack.c.b16 %v1663, %v1662
    %v1667 = vpack.c.b16 %v1665, %v1664
    %v1671 = vsel %vm410, %v1640, 0
    %v1674 = vsel %vm410, %v1641, 0
    %v1677 = vsel %vm410, %v1642, 0
    %v1680 = vsel %vm410, %v1643, 0
    %v1683 = vsel %vm410, %v1644, 0
    %v1686 = vsel %vm410, %v1645, 0
    %v1689 = vsel %vm410, %v1646, 0
    %v1692 = vsel %vm410, %v1647, 0
    %v1695 = vsel %vm410, %v1648, 0
    %v1698 = vsel %vm410, %v1649, 0
    %v1701 = vsel %vm410, %v1650, 0
    %v1704 = vsel %vm410, %v1651, 0
    %v1707 = vsel %vm410, %v1652, 0
    %1709 = vmatprep.subr.bf16.mxu0 0
    %1710 = vmatpush1.bf16.msra.mxu0 %v1666
    %1711 = vmatprep.subr.bf16.mxu0 0
    %1712 = vmatpush1.bf16.msra.mxu0 %v1667
    %1713 = vmatprep.subr.bf16.mxu0 0
    %1714 = vmatpush1.bf16.msra.mxu0 0
    %1715 = vmatprep.subr.bf16.mxu0 0
    %1716 = vmatpush1.bf16.msra.mxu0 0
    %1717 = vmatprep.subr.bf16.mxu0 0
    %1718 = vmatpush1.bf16.msra.mxu0 0
    %1719 = vmatprep.subr.bf16.mxu0 0
    %1720 = vmatpush1.bf16.msra.mxu0 0
    %1721 = vmatprep.subr.bf16.mxu0 0
    %1722 = vmatpush1.bf16.msra.mxu0 0
    %1723 = vmatprep.subr.bf16.mxu0 0
    %1724 = vmatpush1.bf16.msra.mxu0 0
    %1725 = vmatprep.subr.bf16.mxu0 0
    %1726 = vmatpush1.bf16.msra.mxu0 0
    %1727 = vmatprep.subr.bf16.mxu0 0
    %1728 = vmatpush1.bf16.msra.mxu0 0
    %1729 = vmatprep.subr.bf16.mxu0 0
    %1730 = vmatpush1.bf16.msra.mxu0 0
    %1731 = vmatprep.subr.bf16.mxu0 0
    %1732 = vmatpush1.bf16.msra.mxu0 0
    %1733 = vmatprep.subr.bf16.mxu0 0
    %1734 = vmatpush1.bf16.msra.mxu0 0
    %1735 = vmatprep.subr.bf16.mxu0 0
    %1736 = vmatpush1.bf16.msra.mxu0 0
    %1737 = vmatprep.subr.bf16.mxu0 0
    %1738 = vmatpush1.bf16.msra.mxu0 0
    %1739 = vmatprep.subr.bf16.mxu0 0
    %1740 = vmatpush1.bf16.msra.mxu0 0
    %1741 = vmatprep.mubr.bf16.mxu0 0
    %1742 = vmatmul.mubr.bf16.gmra.mrb[0].mxu0 %v1671
    %v1743 = vpop.f32.mrb[0].mxu0
    %v1744 = vadd.f32 0.0, %v1743
    %v1745 = vpop.f32.mrb[0].mxu0
    %v1746 = vpop.f32.mrb[0].mxu0
    %v1747 = vadd.f32 0.0, %v1746
    %v1748 = vpop.f32.mrb[0].mxu0
    %1749 = vmatprep.mubr.bf16.mxu0 0
    %1750 = vmatmul.mubr.bf16.gmra.mrb[0].mxu0 %v1674
    %v1751 = vpop.f32.mrb[0].mxu0
    %v1752 = vadd.f32 0.0, %v1751
    %v1753 = vpop.f32.mrb[0].mxu0
    %v1754 = vpop.f32.mrb[0].mxu0
    %v1755 = vadd.f32 0.0, %v1754
    %v1756 = vpop.f32.mrb[0].mxu0
    %1757 = vmatprep.mubr.bf16.mxu0 0
    %1758 = vmatmul.mubr.bf16.gmra.mrb[0].mxu0 %v1677
    %v1759 = vpop.f32.mrb[0].mxu0
    %v1760 = vadd.f32 0.0, %v1759
    %v1761 = vpop.f32.mrb[0].mxu0
    %v1762 = vpop.f32.mrb[0].mxu0
    %v1763 = vadd.f32 0.0, %v1762
    %v1764 = vpop.f32.mrb[0].mxu0
    %1765 = vmatprep.mubr.bf16.mxu0 0
    %1766 = vmatmul.mubr.bf16.gmra.mrb[0].mxu0 %v1680
    %v1767 = vpop.f32.mrb[0].mxu0
    %v1768 = vadd.f32 0.0, %v1767
    %v1769 = vpop.f32.mrb[0].mxu0
    %v1770 = vpop.f32.mrb[0].mxu0
    %v1771 = vadd.f32 0.0, %v1770
    %v1772 = vpop.f32.mrb[0].mxu0
    %1773 = vmatprep.mubr.bf16.mxu0 0
    %1774 = vmatmul.mubr.bf16.gmra.mrb[0].mxu0 %v1683
    %v1775 = vpop.f32.mrb[0].mxu0
    %v1776 = vadd.f32 0.0, %v1775
    %v1777 = vpop.f32.mrb[0].mxu0
    %v1778 = vpop.f32.mrb[0].mxu0
    %v1779 = vadd.f32 0.0, %v1778
    %v1780 = vpop.f32.mrb[0].mxu0
    %1781 = vmatprep.mubr.bf16.mxu0 0
    %1782 = vmatmul.mubr.bf16.gmra.mrb[0].mxu0 %v1686
    %v1783 = vpop.f32.mrb[0].mxu0
    %v1784 = vadd.f32 0.0, %v1783
    %v1785 = vpop.f32.mrb[0].mxu0
    %v1786 = vpop.f32.mrb[0].mxu0
    %v1787 = vadd.f32 0.0, %v1786
    %v1788 = vpop.f32.mrb[0].mxu0
    %1789 = vmatprep.mubr.bf16.mxu0 0
    %1790 = vmatmul.mubr.bf16.gmra.mrb[0].mxu0 %v1689
    %v1791 = vpop.f32.mrb[0].mxu0
    %v1792 = vadd.f32 0.0, %v1791
    %v1793 = vpop.f32.mrb[0].mxu0
    %v1794 = vpop.f32.mrb[0].mxu0
    %v1795 = vadd.f32 0.0, %v1794
    %v1796 = vpop.f32.mrb[0].mxu0
    %1797 = vmatprep.mubr.bf16.mxu0 0
    %1798 = vmatmul.mubr.bf16.gmra.mrb[0].mxu0 %v1692
    %v1799 = vpop.f32.mrb[0].mxu0
    %v1800 = vadd.f32 0.0, %v1799
    %v1801 = vpop.f32.mrb[0].mxu0
    %v1802 = vpop.f32.mrb[0].mxu0
    %v1803 = vadd.f32 0.0, %v1802
    %v1804 = vpop.f32.mrb[0].mxu0
    %1805 = vmatprep.mubr.bf16.mxu0 0
    %1806 = vmatmul.mubr.bf16.gmra.mrb[0].mxu0 %v1695
    %v1807 = vpop.f32.mrb[0].mxu0
    %v1808 = vadd.f32 0.0, %v1807
    %v1809 = vpop.f32.mrb[0].mxu0
    %v1810 = vpop.f32.mrb[0].mxu0
    %v1811 = vadd.f32 0.0, %v1810
    %v1812 = vpop.f32.mrb[0].mxu0
    %1813 = vmatprep.mubr.bf16.mxu0 0
    %1814 = vmatmul.mubr.bf16.gmra.mrb[0].mxu0 %v1698
    %v1815 = vpop.f32.mrb[0].mxu0
    %v1816 = vadd.f32 0.0, %v1815
    %v1817 = vpop.f32.mrb[0].mxu0
    %v1818 = vpop.f32.mrb[0].mxu0
    %v1819 = vadd.f32 0.0, %v1818
    %v1820 = vpop.f32.mrb[0].mxu0
    %1821 = vmatprep.mubr.bf16.mxu0 0
    %1822 = vmatmul.mubr.bf16.gmra.mrb[0].mxu0 %v1701
    %v1823 = vpop.f32.mrb[0].mxu0
    %v1824 = vadd.f32 0.0, %v1823
    %v1825 = vpop.f32.mrb[0].mxu0
    %v1826 = vpop.f32.mrb[0].mxu0
    %v1827 = vadd.f32 0.0, %v1826
    %v1828 = vpop.f32.mrb[0].mxu0
    %1829 = vmatprep.mubr.bf16.mxu0 0
    %1830 = vmatmul.mubr.bf16.gmra.mrb[0].mxu0 %v1704
    %v1831 = vpop.f32.mrb[0].mxu0
    %v1832 = vadd.f32 0.0, %v1831
    %v1833 = vpop.f32.mrb[0].mxu0
    %v1834 = vpop.f32.mrb[0].mxu0
    %v1835 = vadd.f32 0.0, %v1834
    %v1836 = vpop.f32.mrb[0].mxu0
    %1837 = vmatprep.mubr.bf16.mxu0 0
    %1838 = vmatmul.mubr.bf16.gmra.mrb[0].mxu0 %v1707
    %v1839 = vpop.f32.mrb[0].mxu0
    %v1840 = vadd.f32 0.0, %v1839
    %v1841 = vpop.f32.mrb[0].mxu0
    %v1842 = vpop.f32.mrb[0].mxu0
    %v1843 = vpop.f32.mrb[0].mxu0
    %1844 = vdwg.mxu0
    %v1845 = vadd.f32 %v1514, %v1744
    %v1846 = vadd.f32 %v1517, %v1747
    %v1847 = vadd.f32 %v1522, %v1752
    %v1848 = vadd.f32 %v1525, %v1755
    %v1849 = vadd.f32 %v1530, %v1760
    %v1850 = vadd.f32 %v1533, %v1763
    %v1851 = vadd.f32 %v1538, %v1768
    %v1852 = vadd.f32 %v1541, %v1771
    %v1853 = vadd.f32 %v1546, %v1776
    %v1854 = vadd.f32 %v1549, %v1779
    %v1855 = vadd.f32 %v1554, %v1784
    %v1856 = vadd.f32 %v1557, %v1787
    %v1857 = vadd.f32 %v1562, %v1792
    %v1858 = vadd.f32 %v1565, %v1795
    %v1859 = vadd.f32 %v1570, %v1800
    %v1860 = vadd.f32 %v1573, %v1803
    %v1861 = vadd.f32 %v1578, %v1808
    %v1862 = vadd.f32 %v1581, %v1811
    %v1863 = vadd.f32 %v1586, %v1816
    %v1864 = vadd.f32 %v1589, %v1819
    %v1865 = vadd.f32 %v1594, %v1824
    %v1866 = vadd.f32 %v1597, %v1827
    %v1867 = vadd.f32 %v1602, %v1832
    %v1868 = vadd.f32 %v1605, %v1835
    %v1869 = vadd.f32 %v1610, %v1840
    %v1870 = vld [vmem:[#allocation2 + $0x20] sm:$0xff]
    %v1871 = vld [vmem:[#allocation2 + $0x28] sm:$0xff]
    %v1872 = vld [vmem:[#allocation2 + $0x30] sm:$0xff]
    %v1873 = vld [vmem:[#allocation2 + $0x38] sm:$0xff]
    %v1874 = vld [vmem:[#allocation2 + $0x40] sm:$0xff]
    %v1875 = vld [vmem:[#allocation2 + $0x48] sm:$0xff]
    %v1876 = vld [vmem:[#allocation2 + $0x50] sm:$0xff]
    %v1877 = vld [vmem:[#allocation2 + $0x58] sm:$0xff]
    %v1878 = vld [vmem:[#allocation2 + $0x60] sm:$0xff]
    %v1879 = vld [vmem:[#allocation2 + $0x68] sm:$0xff]
    %v1880 = vld [vmem:[#allocation2 + $0x70] sm:$0xff]
    %v1881 = vld [vmem:[#allocation2 + $0x78] sm:$0xff]
    %v1882 = vld [vmem:[#allocation2 + $0x80] sm:$0xff]
    %v1883 = vld [vmem:[#allocation2 + $0x88] sm:$0xff]
    %v1884 = vld [vmem:[#allocation2 + $0x90] sm:$0xff]
    %v1885 = vld [vmem:[#allocation2 + $0x98] sm:$0xff]
    %v1886 = vld [vmem:[#allocation2 + $0xa0] sm:$0xff]
    %v1887 = vld [vmem:[#allocation2 + $0xa8] sm:$0xff]
    %v1888 = vld [vmem:[#allocation2 + $0xb0] sm:$0xff]
    %v1889 = vld [vmem:[#allocation2 + $0xb8] sm:$0xff]
    %v1890 = vld [vmem:[#allocation2 + $0xc0] sm:$0xff]
    %v1891 = vld [vmem:[#allocation2 + $0xc8] sm:$0xff]
    %v1892 = vld [vmem:[#allocation2 + $0xd0] sm:$0xff]
    %v1893 = vld [vmem:[#allocation2 + $0xd8] sm:$0xff]
    %v1894 = vld [vmem:[#allocation2 + $0xe0] sm:$0xff]
    %v1895 = vpack.c.bf16 %v1871, %v1870
    %v1896 = vpack.c.bf16 %v1873, %v1872
    %v1897 = vpack.c.bf16 %v1875, %v1874
    %v1898 = vpack.c.bf16 %v1877, %v1876
    %v1899 = vpack.c.bf16 %v1879, %v1878
    %v1900 = vpack.c.bf16 %v1881, %v1880
    %v1901 = vpack.c.bf16 %v1883, %v1882
    %v1902 = vpack.c.bf16 %v1885, %v1884
    %v1903 = vpack.c.bf16 %v1887, %v1886
    %v1904 = vpack.c.bf16 %v1889, %v1888
    %v1905 = vpack.c.bf16 %v1891, %v1890
    %v1906 = vpack.c.bf16 %v1893, %v1892
    %v1907 = vpack.c.bf16 %v1894, %v1894
    %s1908 = scalar_lea.vmem %s3, 96
    %v1909 = vld [vmem:[%s1908] sm:$0xf]
    %v1910 = vld [vmem:[%s1908 + $0x4] sm:$0xf]
    %v1911 = vld [vmem:[%s1908 + $0x8] sm:$0xf]
    %v1912 = vld [vmem:[%s1908 + $0xc] sm:$0xf]
    %v1913 = vld [vmem:[#allocation2 + $0x21] sm:$0xff]
    %v1914 = vld [vmem:[#allocation2 + $0x29] sm:$0xff]
    %v1915 = vld [vmem:[#allocation2 + $0x31] sm:$0xff]
    %v1916 = vld [vmem:[#allocation2 + $0x39] sm:$0xff]
    %v1917 = vld [vmem:[#allocation2 + $0x41] sm:$0xff]
    %v1918 = vld [vmem:[#allocation2 + $0x49] sm:$0xff]
    %v1919 = vld [vmem:[#allocation2 + $0x51] sm:$0xff]
    %v1920 = vld [vmem:[#allocation2 + $0x59] sm:$0xff]
    %v1921 = vld [vmem:[#allocation2 + $0x61] sm:$0xff]
    %v1922 = vld [vmem:[#allocation2 + $0x69] sm:$0xff]
    %v1923 = vld [vmem:[#allocation2 + $0x71] sm:$0xff]
    %v1924 = vld [vmem:[#allocation2 + $0x79] sm:$0xff]
    %v1925 = vld [vmem:[#allocation2 + $0x81] sm:$0xff]
    %v1926 = vld [vmem:[#allocation2 + $0x89] sm:$0xff]
    %v1927 = vld [vmem:[#allocation2 + $0x91] sm:$0xff]
    %v1928 = vld [vmem:[#allocation2 + $0x99] sm:$0xff]
    %v1929 = vld [vmem:[#allocation2 + $0xa1] sm:$0xff]
    %v1930 = vld [vmem:[#allocation2 + $0xa9] sm:$0xff]
    %v1931 = vld [vmem:[#allocation2 + $0xb1] sm:$0xff]
    %v1932 = vld [vmem:[#allocation2 + $0xb9] sm:$0xff]
    %v1933 = vld [vmem:[#allocation2 + $0xc1] sm:$0xff]
    %v1934 = vld [vmem:[#allocation2 + $0xc9] sm:$0xff]
    %v1935 = vld [vmem:[#allocation2 + $0xd1] sm:$0xff]
    %v1936 = vld [vmem:[#allocation2 + $0xd9] sm:$0xff]
    %v1937 = vld [vmem:[#allocation2 + $0xe1] sm:$0xff]
    %v1938 = vpack.c.bf16 %v1914, %v1913
    %v1939 = vpack.c.bf16 %v1916, %v1915
    %v1940 = vpack.c.bf16 %v1918, %v1917
    %v1941 = vpack.c.bf16 %v1920, %v1919
    %v1942 = vpack.c.bf16 %v1922, %v1921
    %v1943 = vpack.c.bf16 %v1924, %v1923
    %v1944 = vpack.c.bf16 %v1926, %v1925
    %v1945 = vpack.c.bf16 %v1928, %v1927
    %v1946 = vpack.c.bf16 %v1930, %v1929
    %v1947 = vpack.c.bf16 %v1932, %v1931
    %v1948 = vpack.c.bf16 %v1934, %v1933
    %v1949 = vpack.c.bf16 %v1936, %v1935
    %v1950 = vpack.c.bf16 %v1937, %v1937
    %s1951 = scalar_lea.vmem %s3, 112
    %v1952 = vld [vmem:[%s1951] sm:$0xf]
    %v1953 = vld [vmem:[%s1951 + $0x4] sm:$0xf]
    %v1954 = vld [vmem:[%s1951 + $0x8] sm:$0xf]
    %v1955 = vld [vmem:[%s1951 + $0xc] sm:$0xf]
    %v1960 = vunpack.c.l.b16 %v1952
    %v1961 = vunpack.c.l.b16 %v1953
    %v1962 = vunpack.c.l.b16 %v1954
    %v1963 = vunpack.c.l.b16 %v1955
    %v1964 = vpack.c.b16 %v1961, %v1960
    %v1965 = vpack.c.b16 %v1963, %v1962
    %v1969 = vsel %vm410, %v1938, 0
    %v1972 = vsel %vm410, %v1939, 0
    %v1975 = vsel %vm410, %v1940, 0
    %v1978 = vsel %vm410, %v1941, 0
    %v1981 = vsel %vm410, %v1942, 0
    %v1984 = vsel %vm410, %v1943, 0
    %v1987 = vsel %vm410, %v1944, 0
    %v1990 = vsel %vm410, %v1945, 0
    %v1993 = vsel %vm410, %v1946, 0
    %v1996 = vsel %vm410, %v1947, 0
    %v1999 = vsel %vm410, %v1948, 0
    %v2002 = vsel %vm410, %v1949, 0
    %v2005 = vsel %vm410, %v1950, 0
    %2007 = vmatprep.subr.bf16.mxu0 0
    %2008 = vmatpush1.bf16.msra.mxu0 %v1964
    %2009 = vmatprep.subr.bf16.mxu0 0
    %2010 = vmatpush1.bf16.msra.mxu0 %v1965
    %2011 = vmatprep.subr.bf16.mxu0 0
    %2012 = vmatpush1.bf16.msra.mxu0 0
    %2013 = vmatprep.subr.bf16.mxu0 0
    %2014 = vmatpush1.bf16.msra.mxu0 0
    %2015 = vmatprep.subr.bf16.mxu0 0
    %2016 = vmatpush1.bf16.msra.mxu0 0
    %2017 = vmatprep.subr.bf16.mxu0 0
    %2018 = vmatpush1.bf16.msra.mxu0 0
    %2019 = vmatprep.subr.bf16.mxu0 0
    %2020 = vmatpush1.bf16.msra.mxu0 0
    %2021 = vmatprep.subr.bf16.mxu0 0
    %2022 = vmatpush1.bf16.msra.mxu0 0
    %2023 = vmatprep.subr.bf16.mxu0 0
    %2024 = vmatpush1.bf16.msra.mxu0 0
    %2025 = vmatprep.subr.bf16.mxu0 0
    %2026 = vmatpush1.bf16.msra.mxu0 0
    %2027 = vmatprep.subr.bf16.mxu0 0
    %2028 = vmatpush1.bf16.msra.mxu0 0
    %2029 = vmatprep.subr.bf16.mxu0 0
    %2030 = vmatpush1.bf16.msra.mxu0 0
    %2031 = vmatprep.subr.bf16.mxu0 0
    %2032 = vmatpush1.bf16.msra.mxu0 0
    %2033 = vmatprep.subr.bf16.mxu0 0
    %2034 = vmatpush1.bf16.msra.mxu0 0
    %2035 = vmatprep.subr.bf16.mxu0 0
    %2036 = vmatpush1.bf16.msra.mxu0 0
    %2037 = vmatprep.subr.bf16.mxu0 0
    %2038 = vmatpush1.bf16.msra.mxu0 0
    %2039 = vmatprep.mubr.bf16.mxu0 0
    %2040 = vmatmul.mubr.bf16.gmra.mrb[0].mxu0 %v1969
    %v2041 = vpop.f32.mrb[0].mxu0
    %v2042 = vadd.f32 0.0, %v2041
    %v2043 = vpop.f32.mrb[0].mxu0
    %v2044 = vpop.f32.mrb[0].mxu0
    %v2045 = vadd.f32 0.0, %v2044
    %v2046 = vpop.f32.mrb[0].mxu0
    %2047 = vmatprep.mubr.bf16.mxu0 0
    %2048 = vmatmul.mubr.bf16.gmra.mrb[0].mxu0 %v1972
    %v2049 = vpop.f32.mrb[0].mxu0
    %v2050 = vadd.f32 0.0, %v2049
    %v2051 = vpop.f32.mrb[0].mxu0
    %v2052 = vpop.f32.mrb[0].mxu0
    %v2053 = vadd.f32 0.0, %v2052
    %v2054 = vpop.f32.mrb[0].mxu0
    %2055 = vmatprep.mubr.bf16.mxu0 0
    %2056 = vmatmul.mubr.bf16.gmra.mrb[0].mxu0 %v1975
    %v2057 = vpop.f32.mrb[0].mxu0
    %v2058 = vadd.f32 0.0, %v2057
    %v2059 = vpop.f32.mrb[0].mxu0
    %v2060 = vpop.f32.mrb[0].mxu0
    %v2061 = vadd.f32 0.0, %v2060
    %v2062 = vpop.f32.mrb[0].mxu0
    %2063 = vmatprep.mubr.bf16.mxu0 0
    %2064 = vmatmul.mubr.bf16.gmra.mrb[0].mxu0 %v1978
    %v2065 = vpop.f32.mrb[0].mxu0
    %v2066 = vadd.f32 0.0, %v2065
    %v2067 = vpop.f32.mrb[0].mxu0
    %v2068 = vpop.f32.mrb[0].mxu0
    %v2069 = vadd.f32 0.0, %v2068
    %v2070 = vpop.f32.mrb[0].mxu0
    %2071 = vmatprep.mubr.bf16.mxu0 0
    %2072 = vmatmul.mubr.bf16.gmra.mrb[0].mxu0 %v1981
    %v2073 = vpop.f32.mrb[0].mxu0
    %v2074 = vadd.f32 0.0, %v2073
    %v2075 = vpop.f32.mrb[0].mxu0
    %v2076 = vpop.f32.mrb[0].mxu0
    %v2077 = vadd.f32 0.0, %v2076
    %v2078 = vpop.f32.mrb[0].mxu0
    %2079 = vmatprep.mubr.bf16.mxu0 0
    %2080 = vmatmul.mubr.bf16.gmra.mrb[0].mxu0 %v1984
    %v2081 = vpop.f32.mrb[0].mxu0
    %v2082 = vadd.f32 0.0, %v2081
    %v2083 = vpop.f32.mrb[0].mxu0
    %v2084 = vpop.f32.mrb[0].mxu0
    %v2085 = vadd.f32 0.0, %v2084
    %v2086 = vpop.f32.mrb[0].mxu0
    %2087 = vmatprep.mubr.bf16.mxu0 0
    %2088 = vmatmul.mubr.bf16.gmra.mrb[0].mxu0 %v1987
    %v2089 = vpop.f32.mrb[0].mxu0
    %v2090 = vadd.f32 0.0, %v2089
    %v2091 = vpop.f32.mrb[0].mxu0
    %v2092 = vpop.f32.mrb[0].mxu0
    %v2093 = vadd.f32 0.0, %v2092
    %v2094 = vpop.f32.mrb[0].mxu0
    %2095 = vmatprep.mubr.bf16.mxu0 0
    %2096 = vmatmul.mubr.bf16.gmra.mrb[0].mxu0 %v1990
    %v2097 = vpop.f32.mrb[0].mxu0
    %v2098 = vadd.f32 0.0, %v2097
    %v2099 = vpop.f32.mrb[0].mxu0
    %v2100 = vpop.f32.mrb[0].mxu0
    %v2101 = vadd.f32 0.0, %v2100
    %v2102 = vpop.f32.mrb[0].mxu0
    %2103 = vmatprep.mubr.bf16.mxu0 0
    %2104 = vmatmul.mubr.bf16.gmra.mrb[0].mxu0 %v1993
    %v2105 = vpop.f32.mrb[0].mxu0
    %v2106 = vadd.f32 0.0, %v2105
    %v2107 = vpop.f32.mrb[0].mxu0
    %v2108 = vpop.f32.mrb[0].mxu0
    %v2109 = vadd.f32 0.0, %v2108
    %v2110 = vpop.f32.mrb[0].mxu0
    %2111 = vmatprep.mubr.bf16.mxu0 0
    %2112 = vmatmul.mubr.bf16.gmra.mrb[0].mxu0 %v1996
    %v2113 = vpop.f32.mrb[0].mxu0
    %v2114 = vadd.f32 0.0, %v2113
    %v2115 = vpop.f32.mrb[0].mxu0
    %v2116 = vpop.f32.mrb[0].mxu0
    %v2117 = vadd.f32 0.0, %v2116
    %v2118 = vpop.f32.mrb[0].mxu0
    %2119 = vmatprep.mubr.bf16.mxu0 0
    %2120 = vmatmul.mubr.bf16.gmra.mrb[0].mxu0 %v1999
    %v2121 = vpop.f32.mrb[0].mxu0
    %v2122 = vadd.f32 0.0, %v2121
    %v2123 = vpop.f32.mrb[0].mxu0
    %v2124 = vpop.f32.mrb[0].mxu0
    %v2125 = vadd.f32 0.0, %v2124
    %v2126 = vpop.f32.mrb[0].mxu0
    %2127 = vmatprep.mubr.bf16.mxu0 0
    %2128 = vmatmul.mubr.bf16.gmra.mrb[0].mxu0 %v2002
    %v2129 = vpop.f32.mrb[0].mxu0
    %v2130 = vadd.f32 0.0, %v2129
    %v2131 = vpop.f32.mrb[0].mxu0
    %v2132 = vpop.f32.mrb[0].mxu0
    %v2133 = vadd.f32 0.0, %v2132
    %v2134 = vpop.f32.mrb[0].mxu0
    %2135 = vmatprep.mubr.bf16.mxu0 0
    %2136 = vmatmul.mubr.bf16.gmra.mrb[0].mxu0 %v2005
    %v2137 = vpop.f32.mrb[0].mxu0
    %v2138 = vadd.f32 0.0, %v2137
    %v2139 = vpop.f32.mrb[0].mxu0
    %v2140 = vpop.f32.mrb[0].mxu0
    %v2141 = vpop.f32.mrb[0].mxu0
    %2142 = vdwg.mxu0
    %v2147 = vunpack.c.l.b16 %v1909
    %v2148 = vunpack.c.l.b16 %v1910
    %v2149 = vunpack.c.l.b16 %v1911
    %v2150 = vunpack.c.l.b16 %v1912
    %v2151 = vpack.c.b16 %v2148, %v2147
    %v2152 = vpack.c.b16 %v2150, %v2149
    %v2156 = vsel %vm410, %v1895, 0
    %v2159 = vsel %vm410, %v1896, 0
    %v2162 = vsel %vm410, %v1897, 0
    %v2165 = vsel %vm410, %v1898, 0
    %v2168 = vsel %vm410, %v1899, 0
    %v2171 = vsel %vm410, %v1900, 0
    %v2174 = vsel %vm410, %v1901, 0
    %v2177 = vsel %vm410, %v1902, 0
    %v2180 = vsel %vm410, %v1903, 0
    %v2183 = vsel %vm410, %v1904, 0
    %v2186 = vsel %vm410, %v1905, 0
    %v2189 = vsel %vm410, %v1906, 0
    %v2192 = vsel %vm410, %v1907, 0
    %2194 = vmatprep.subr.bf16.mxu0 0
    %2195 = vmatpush1.bf16.msra.mxu0 %v2151
    %2196 = vmatprep.subr.bf16.mxu0 0
    %2197 = vmatpush1.bf16.msra.mxu0 %v2152
    %2198 = vmatprep.subr.bf16.mxu0 0
    %2199 = vmatpush1.bf16.msra.mxu0 0
    %2200 = vmatprep.subr.bf16.mxu0 0
    %2201 = vmatpush1.bf16.msra.mxu0 0
    %2202 = vmatprep.subr.bf16.mxu0 0
    %2203 = vmatpush1.bf16.msra.mxu0 0
    %2204 = vmatprep.subr.bf16.mxu0 0
    %2205 = vmatpush1.bf16.msra.mxu0 0
    %2206 = vmatprep.subr.bf16.mxu0 0
    %2207 = vmatpush1.bf16.msra.mxu0 0
    %2208 = vmatprep.subr.bf16.mxu0 0
    %2209 = vmatpush1.bf16.msra.mxu0 0
    %2210 = vmatprep.subr.bf16.mxu0 0
    %2211 = vmatpush1.bf16.msra.mxu0 0
    %2212 = vmatprep.subr.bf16.mxu0 0
    %2213 = vmatpush1.bf16.msra.mxu0 0
    %2214 = vmatprep.subr.bf16.mxu0 0
    %2215 = vmatpush1.bf16.msra.mxu0 0
    %2216 = vmatprep.subr.bf16.mxu0 0
    %2217 = vmatpush1.bf16.msra.mxu0 0
    %2218 = vmatprep.subr.bf16.mxu0 0
    %2219 = vmatpush1.bf16.msra.mxu0 0
    %2220 = vmatprep.subr.bf16.mxu0 0
    %2221 = vmatpush1.bf16.msra.mxu0 0
    %2222 = vmatprep.subr.bf16.mxu0 0
    %2223 = vmatpush1.bf16.msra.mxu0 0
    %2224 = vmatprep.subr.bf16.mxu0 0
    %2225 = vmatpush1.bf16.msra.mxu0 0
    %2226 = vmatprep.mubr.bf16.mxu0 0
    %2227 = vmatmul.mubr.bf16.gmra.mrb[0].mxu0 %v2156
    %v2228 = vpop.f32.mrb[0].mxu0
    %v2229 = vadd.f32 %v2042, %v2228
    %v2230 = vpop.f32.mrb[0].mxu0
    %v2231 = vpop.f32.mrb[0].mxu0
    %v2232 = vadd.f32 %v2045, %v2231
    %v2233 = vpop.f32.mrb[0].mxu0
    %2234 = vmatprep.mubr.bf16.mxu0 0
    %2235 = vmatmul.mubr.bf16.gmra.mrb[0].mxu0 %v2159
    %v2236 = vpop.f32.mrb[0].mxu0
    %v2237 = vadd.f32 %v2050, %v2236
    %v2238 = vpop.f32.mrb[0].mxu0
    %v2239 = vpop.f32.mrb[0].mxu0
    %v2240 = vadd.f32 %v2053, %v2239
    %v2241 = vpop.f32.mrb[0].mxu0
    %2242 = vmatprep.mubr.bf16.mxu0 0
    %2243 = vmatmul.mubr.bf16.gmra.mrb[0].mxu0 %v2162
    %v2244 = vpop.f32.mrb[0].mxu0
    %v2245 = vadd.f32 %v2058, %v2244
    %v2246 = vpop.f32.mrb[0].mxu0
    %v2247 = vpop.f32.mrb[0].mxu0
    %v2248 = vadd.f32 %v2061, %v2247
    %v2249 = vpop.f32.mrb[0].mxu0
    %2250 = vmatprep.mubr.bf16.mxu0 0
    %2251 = vmatmul.mubr.bf16.gmra.mrb[0].mxu0 %v2165
    %v2252 = vpop.f32.mrb[0].mxu0
    %v2253 = vadd.f32 %v2066, %v2252
    %v2254 = vpop.f32.mrb[0].mxu0
    %v2255 = vpop.f32.mrb[0].mxu0
    %v2256 = vadd.f32 %v2069, %v2255
    %v2257 = vpop.f32.mrb[0].mxu0
    %2258 = vmatprep.mubr.bf16.mxu0 0
    %2259 = vmatmul.mubr.bf16.gmra.mrb[0].mxu0 %v2168
    %v2260 = vpop.f32.mrb[0].mxu0
    %v2261 = vadd.f32 %v2074, %v2260
    %v2262 = vpop.f32.mrb[0].mxu0
    %v2263 = vpop.f32.mrb[0].mxu0
    %v2264 = vadd.f32 %v2077, %v2263
    %v2265 = vpop.f32.mrb[0].mxu0
    %2266 = vmatprep.mubr.bf16.mxu0 0
    %2267 = vmatmul.mubr.bf16.gmra.mrb[0].mxu0 %v2171
    %v2268 = vpop.f32.mrb[0].mxu0
    %v2269 = vadd.f32 %v2082, %v2268
    %v2270 = vpop.f32.mrb[0].mxu0
    %v2271 = vpop.f32.mrb[0].mxu0
    %v2272 = vadd.f32 %v2085, %v2271
    %v2273 = vpop.f32.mrb[0].mxu0
    %2274 = vmatprep.mubr.bf16.mxu0 0
    %2275 = vmatmul.mubr.bf16.gmra.mrb[0].mxu0 %v2174
    %v2276 = vpop.f32.mrb[0].mxu0
    %v2277 = vadd.f32 %v2090, %v2276
    %v2278 = vpop.f32.mrb[0].mxu0
    %v2279 = vpop.f32.mrb[0].mxu0
    %v2280 = vadd.f32 %v2093, %v2279
    %v2281 = vpop.f32.mrb[0].mxu0
    %2282 = vmatprep.mubr.bf16.mxu0 0
    %2283 = vmatmul.mubr.bf16.gmra.mrb[0].mxu0 %v2177
    %v2284 = vpop.f32.mrb[0].mxu0
    %v2285 = vadd.f32 %v2098, %v2284
    %v2286 = vpop.f32.mrb[0].mxu0
    %v2287 = vpop.f32.mrb[0].mxu0
    %v2288 = vadd.f32 %v2101, %v2287
    %v2289 = vpop.f32.mrb[0].mxu0
    %2290 = vmatprep.mubr.bf16.mxu0 0
    %2291 = vmatmul.mubr.bf16.gmra.mrb[0].mxu0 %v2180
    %v2292 = vpop.f32.mrb[0].mxu0
    %v2293 = vadd.f32 %v2106, %v2292
    %v2294 = vpop.f32.mrb[0].mxu0
    %v2295 = vpop.f32.mrb[0].mxu0
    %v2296 = vadd.f32 %v2109, %v2295
    %v2297 = vpop.f32.mrb[0].mxu0
    %2298 = vmatprep.mubr.bf16.mxu0 0
    %2299 = vmatmul.mubr.bf16.gmra.mrb[0].mxu0 %v2183
    %v2300 = vpop.f32.mrb[0].mxu0
    %v2301 = vadd.f32 %v2114, %v2300
    %v2302 = vpop.f32.mrb[0].mxu0
    %v2303 = vpop.f32.mrb[0].mxu0
    %v2304 = vadd.f32 %v2117, %v2303
    %v2305 = vpop.f32.mrb[0].mxu0
    %2306 = vmatprep.mubr.bf16.mxu0 0
    %2307 = vmatmul.mubr.bf16.gmra.mrb[0].mxu0 %v2186
    %v2308 = vpop.f32.mrb[0].mxu0
    %v2309 = vadd.f32 %v2122, %v2308
    %v2310 = vpop.f32.mrb[0].mxu0
    %v2311 = vpop.f32.mrb[0].mxu0
    %v2312 = vadd.f32 %v2125, %v2311
    %v2313 = vpop.f32.mrb[0].mxu0
    %2314 = vmatprep.mubr.bf16.mxu0 0
    %2315 = vmatmul.mubr.bf16.gmra.mrb[0].mxu0 %v2189
    %v2316 = vpop.f32.mrb[0].mxu0
    %v2317 = vadd.f32 %v2130, %v2316
    %v2318 = vpop.f32.mrb[0].mxu0
    %v2319 = vpop.f32.mrb[0].mxu0
    %v2320 = vadd.f32 %v2133, %v2319
    %v2321 = vpop.f32.mrb[0].mxu0
    %2322 = vmatprep.mubr.bf16.mxu0 0
    %2323 = vmatmul.mubr.bf16.gmra.mrb[0].mxu0 %v2192
    %v2324 = vpop.f32.mrb[0].mxu0
    %v2325 = vadd.f32 %v2138, %v2324
    %v2326 = vpop.f32.mrb[0].mxu0
    %v2327 = vpop.f32.mrb[0].mxu0
    %v2328 = vpop.f32.mrb[0].mxu0
    %2329 = vdwg.mxu0
    %v2330 = vld [vmem:[#allocation2 + $0x22] sm:$0xff]
    %v2331 = vld [vmem:[#allocation2 + $0x2a] sm:$0xff]
    %v2332 = vld [vmem:[#allocation2 + $0x32] sm:$0xff]
    %v2333 = vld [vmem:[#allocation2 + $0x3a] sm:$0xff]
    %v2334 = vld [vmem:[#allocation2 + $0x42] sm:$0xff]
    %v2335 = vld [vmem:[#allocation2 + $0x4a] sm:$0xff]
    %v2336 = vld [vmem:[#allocation2 + $0x52] sm:$0xff]
    %v2337 = vld [vmem:[#allocation2 + $0x5a] sm:$0xff]
    %v2338 = vld [vmem:[#allocation2 + $0x62] sm:$0xff]
    %v2339 = vld [vmem:[#allocation2 + $0x6a] sm:$0xff]
    %v2340 = vld [vmem:[#allocation2 + $0x72] sm:$0xff]
    %v2341 = vld [vmem:[#allocation2 + $0x7a] sm:$0xff]
    %v2342 = vld [vmem:[#allocation2 + $0x82] sm:$0xff]
    %v2343 = vld [vmem:[#allocation2 + $0x8a] sm:$0xff]
    %v2344 = vld [vmem:[#allocation2 + $0x92] sm:$0xff]
    %v2345 = vld [vmem:[#allocation2 + $0x9a] sm:$0xff]
    %v2346 = vld [vmem:[#allocation2 + $0xa2] sm:$0xff]
    %v2347 = vld [vmem:[#allocation2 + $0xaa] sm:$0xff]
    %v2348 = vld [vmem:[#allocation2 + $0xb2] sm:$0xff]
    %v2349 = vld [vmem:[#allocation2 + $0xba] sm:$0xff]
    %v2350 = vld [vmem:[#allocation2 + $0xc2] sm:$0xff]
    %v2351 = vld [vmem:[#allocation2 + $0xca] sm:$0xff]
    %v2352 = vld [vmem:[#allocation2 + $0xd2] sm:$0xff]
    %v2353 = vld [vmem:[#allocation2 + $0xda] sm:$0xff]
    %v2354 = vld [vmem:[#allocation2 + $0xe2] sm:$0xff]
    %v2355 = vpack.c.bf16 %v2331, %v2330
    %v2356 = vpack.c.bf16 %v2333, %v2332
    %v2357 = vpack.c.bf16 %v2335, %v2334
    %v2358 = vpack.c.bf16 %v2337, %v2336
    %v2359 = vpack.c.bf16 %v2339, %v2338
    %v2360 = vpack.c.bf16 %v2341, %v2340
    %v2361 = vpack.c.bf16 %v2343, %v2342
    %v2362 = vpack.c.bf16 %v2345, %v2344
    %v2363 = vpack.c.bf16 %v2347, %v2346
    %v2364 = vpack.c.bf16 %v2349, %v2348
    %v2365 = vpack.c.bf16 %v2351, %v2350
    %v2366 = vpack.c.bf16 %v2353, %v2352
    %v2367 = vpack.c.bf16 %v2354, %v2354
    %s2368 = scalar_lea.vmem %s3, 128
    %v2369 = vld [vmem:[%s2368] sm:$0xf]
    %v2370 = vld [vmem:[%s2368 + $0x4] sm:$0xf]
    %v2371 = vld [vmem:[%s2368 + $0x8] sm:$0xf]
    %v2372 = vld [vmem:[%s2368 + $0xc] sm:$0xf]
    %v2377 = vunpack.c.l.b16 %v2369
    %v2378 = vunpack.c.l.b16 %v2370
    %v2379 = vunpack.c.l.b16 %v2371
    %v2380 = vunpack.c.l.b16 %v2372
    %v2381 = vpack.c.b16 %v2378, %v2377
    %v2382 = vpack.c.b16 %v2380, %v2379
    %v2386 = vsel %vm410, %v2355, 0
    %v2389 = vsel %vm410, %v2356, 0
    %v2392 = vsel %vm410, %v2357, 0
    %v2395 = vsel %vm410, %v2358, 0
    %v2398 = vsel %vm410, %v2359, 0
    %v2401 = vsel %vm410, %v2360, 0
    %v2404 = vsel %vm410, %v2361, 0
    %v2407 = vsel %vm410, %v2362, 0
    %v2410 = vsel %vm410, %v2363, 0
    %v2413 = vsel %vm410, %v2364, 0
    %v2416 = vsel %vm410, %v2365, 0
    %v2419 = vsel %vm410, %v2366, 0
    %v2422 = vsel %vm410, %v2367, 0
    %2424 = vmatprep.subr.bf16.mxu0 0
    %2425 = vmatpush1.bf16.msra.mxu0 %v2381
    %2426 = vmatprep.subr.bf16.mxu0 0
    %2427 = vmatpush1.bf16.msra.mxu0 %v2382
    %2428 = vmatprep.subr.bf16.mxu0 0
    %2429 = vmatpush1.bf16.msra.mxu0 0
    %2430 = vmatprep.subr.bf16.mxu0 0
    %2431 = vmatpush1.bf16.msra.mxu0 0
    %2432 = vmatprep.subr.bf16.mxu0 0
    %2433 = vmatpush1.bf16.msra.mxu0 0
    %2434 = vmatprep.subr.bf16.mxu0 0
    %2435 = vmatpush1.bf16.msra.mxu0 0
    %2436 = vmatprep.subr.bf16.mxu0 0
    %2437 = vmatpush1.bf16.msra.mxu0 0
    %2438 = vmatprep.subr.bf16.mxu0 0
    %2439 = vmatpush1.bf16.msra.mxu0 0
    %2440 = vmatprep.subr.bf16.mxu0 0
    %2441 = vmatpush1.bf16.msra.mxu0 0
    %2442 = vmatprep.subr.bf16.mxu0 0
    %2443 = vmatpush1.bf16.msra.mxu0 0
    %2444 = vmatprep.subr.bf16.mxu0 0
    %2445 = vmatpush1.bf16.msra.mxu0 0
    %2446 = vmatprep.subr.bf16.mxu0 0
    %2447 = vmatpush1.bf16.msra.mxu0 0
    %2448 = vmatprep.subr.bf16.mxu0 0
    %2449 = vmatpush1.bf16.msra.mxu0 0
    %2450 = vmatprep.subr.bf16.mxu0 0
    %2451 = vmatpush1.bf16.msra.mxu0 0
    %2452 = vmatprep.subr.bf16.mxu0 0
    %2453 = vmatpush1.bf16.msra.mxu0 0
    %2454 = vmatprep.subr.bf16.mxu0 0
    %2455 = vmatpush1.bf16.msra.mxu0 0
    %2456 = vmatprep.mubr.bf16.mxu0 0
    %2457 = vmatmul.mubr.bf16.gmra.mrb[0].mxu0 %v2386
    %v2458 = vpop.f32.mrb[0].mxu0
    %v2459 = vadd.f32 0.0, %v2458
    %v2460 = vpop.f32.mrb[0].mxu0
    %v2461 = vpop.f32.mrb[0].mxu0
    %v2462 = vadd.f32 0.0, %v2461
    %v2463 = vpop.f32.mrb[0].mxu0
    %2464 = vmatprep.mubr.bf16.mxu0 0
    %2465 = vmatmul.mubr.bf16.gmra.mrb[0].mxu0 %v2389
    %v2466 = vpop.f32.mrb[0].mxu0
    %v2467 = vadd.f32 0.0, %v2466
    %v2468 = vpop.f32.mrb[0].mxu0
    %v2469 = vpop.f32.mrb[0].mxu0
    %v2470 = vadd.f32 0.0, %v2469
    %v2471 = vpop.f32.mrb[0].mxu0
    %2472 = vmatprep.mubr.bf16.mxu0 0
    %2473 = vmatmul.mubr.bf16.gmra.mrb[0].mxu0 %v2392
    %v2474 = vpop.f32.mrb[0].mxu0
    %v2475 = vadd.f32 0.0, %v2474
    %v2476 = vpop.f32.mrb[0].mxu0
    %v2477 = vpop.f32.mrb[0].mxu0
    %v2478 = vadd.f32 0.0, %v2477
    %v2479 = vpop.f32.mrb[0].mxu0
    %2480 = vmatprep.mubr.bf16.mxu0 0
    %2481 = vmatmul.mubr.bf16.gmra.mrb[0].mxu0 %v2395
    %v2482 = vpop.f32.mrb[0].mxu0
    %v2483 = vadd.f32 0.0, %v2482
    %v2484 = vpop.f32.mrb[0].mxu0
    %v2485 = vpop.f32.mrb[0].mxu0
    %v2486 = vadd.f32 0.0, %v2485
    %v2487 = vpop.f32.mrb[0].mxu0
    %2488 = vmatprep.mubr.bf16.mxu0 0
    %2489 = vmatmul.mubr.bf16.gmra.mrb[0].mxu0 %v2398
    %v2490 = vpop.f32.mrb[0].mxu0
    %v2491 = vadd.f32 0.0, %v2490
    %v2492 = vpop.f32.mrb[0].mxu0
    %v2493 = vpop.f32.mrb[0].mxu0
    %v2494 = vadd.f32 0.0, %v2493
    %v2495 = vpop.f32.mrb[0].mxu0
    %2496 = vmatprep.mubr.bf16.mxu0 0
    %2497 = vmatmul.mubr.bf16.gmra.mrb[0].mxu0 %v2401
    %v2498 = vpop.f32.mrb[0].mxu0
    %v2499 = vadd.f32 0.0, %v2498
    %v2500 = vpop.f32.mrb[0].mxu0
    %v2501 = vpop.f32.mrb[0].mxu0
    %v2502 = vadd.f32 0.0, %v2501
    %v2503 = vpop.f32.mrb[0].mxu0
    %2504 = vmatprep.mubr.bf16.mxu0 0
    %2505 = vmatmul.mubr.bf16.gmra.mrb[0].mxu0 %v2404
    %v2506 = vpop.f32.mrb[0].mxu0
    %v2507 = vadd.f32 0.0, %v2506
    %v2508 = vpop.f32.mrb[0].mxu0
    %v2509 = vpop.f32.mrb[0].mxu0
    %v2510 = vadd.f32 0.0, %v2509
    %v2511 = vpop.f32.mrb[0].mxu0
    %2512 = vmatprep.mubr.bf16.mxu0 0
    %2513 = vmatmul.mubr.bf16.gmra.mrb[0].mxu0 %v2407
    %v2514 = vpop.f32.mrb[0].mxu0
    %v2515 = vadd.f32 0.0, %v2514
    %v2516 = vpop.f32.mrb[0].mxu0
    %v2517 = vpop.f32.mrb[0].mxu0
    %v2518 = vadd.f32 0.0, %v2517
    %v2519 = vpop.f32.mrb[0].mxu0
    %2520 = vmatprep.mubr.bf16.mxu0 0
    %2521 = vmatmul.mubr.bf16.gmra.mrb[0].mxu0 %v2410
    %v2522 = vpop.f32.mrb[0].mxu0
    %v2523 = vadd.f32 0.0, %v2522
    %v2524 = vpop.f32.mrb[0].mxu0
    %v2525 = vpop.f32.mrb[0].mxu0
    %v2526 = vadd.f32 0.0, %v2525
    %v2527 = vpop.f32.mrb[0].mxu0
    %2528 = vmatprep.mubr.bf16.mxu0 0
    %2529 = vmatmul.mubr.bf16.gmra.mrb[0].mxu0 %v2413
    %v2530 = vpop.f32.mrb[0].mxu0
    %v2531 = vadd.f32 0.0, %v2530
    %v2532 = vpop.f32.mrb[0].mxu0
    %v2533 = vpop.f32.mrb[0].mxu0
    %v2534 = vadd.f32 0.0, %v2533
    %v2535 = vpop.f32.mrb[0].mxu0
    %2536 = vmatprep.mubr.bf16.mxu0 0
    %2537 = vmatmul.mubr.bf16.gmra.mrb[0].mxu0 %v2416
    %v2538 = vpop.f32.mrb[0].mxu0
    %v2539 = vadd.f32 0.0, %v2538
    %v2540 = vpop.f32.mrb[0].mxu0
    %v2541 = vpop.f32.mrb[0].mxu0
    %v2542 = vadd.f32 0.0, %v2541
    %v2543 = vpop.f32.mrb[0].mxu0
    %2544 = vmatprep.mubr.bf16.mxu0 0
    %2545 = vmatmul.mubr.bf16.gmra.mrb[0].mxu0 %v2419
    %v2546 = vpop.f32.mrb[0].mxu0
    %v2547 = vadd.f32 0.0, %v2546
    %v2548 = vpop.f32.mrb[0].mxu0
    %v2549 = vpop.f32.mrb[0].mxu0
    %v2550 = vadd.f32 0.0, %v2549
    %v2551 = vpop.f32.mrb[0].mxu0
    %2552 = vmatprep.mubr.bf16.mxu0 0
    %2553 = vmatmul.mubr.bf16.gmra.mrb[0].mxu0 %v2422
    %v2554 = vpop.f32.mrb[0].mxu0
    %v2555 = vadd.f32 0.0, %v2554
    %v2556 = vpop.f32.mrb[0].mxu0
    %v2557 = vpop.f32.mrb[0].mxu0
    %v2558 = vpop.f32.mrb[0].mxu0
    %2559 = vdwg.mxu0
    %v2560 = vadd.f32 %v2229, %v2459
    %v2561 = vadd.f32 %v2232, %v2462
    %v2562 = vadd.f32 %v2237, %v2467
    %v2563 = vadd.f32 %v2240, %v2470
    %v2564 = vadd.f32 %v2245, %v2475
    %v2565 = vadd.f32 %v2248, %v2478
    %v2566 = vadd.f32 %v2253, %v2483
    %v2567 = vadd.f32 %v2256, %v2486
    %v2568 = vadd.f32 %v2261, %v2491
    %v2569 = vadd.f32 %v2264, %v2494
    %v2570 = vadd.f32 %v2269, %v2499
    %v2571 = vadd.f32 %v2272, %v2502
    %v2572 = vadd.f32 %v2277, %v2507
    %v2573 = vadd.f32 %v2280, %v2510
    %v2574 = vadd.f32 %v2285, %v2515
    %v2575 = vadd.f32 %v2288, %v2518
    %v2576 = vadd.f32 %v2293, %v2523
    %v2577 = vadd.f32 %v2296, %v2526
    %v2578 = vadd.f32 %v2301, %v2531
    %v2579 = vadd.f32 %v2304, %v2534
    %v2580 = vadd.f32 %v2309, %v2539
    %v2581 = vadd.f32 %v2312, %v2542
    %v2582 = vadd.f32 %v2317, %v2547
    %v2583 = vadd.f32 %v2320, %v2550
    %v2584 = vadd.f32 %v2325, %v2555
    %v2585 = vadd.f32 %v1130, %v1845
    %v2586 = vadd.f32 %v1131, %v1846
    %v2587 = vadd.f32 %v1132, %v1847
    %v2588 = vadd.f32 %v1133, %v1848
    %v2589 = vadd.f32 %v1134, %v1849
    %v2590 = vadd.f32 %v1135, %v1850
    %v2591 = vadd.f32 %v1136, %v1851
    %v2592 = vadd.f32 %v1137, %v1852
    %v2593 = vadd.f32 %v1138, %v1853
    %v2594 = vadd.f32 %v1139, %v1854
    %v2595 = vadd.f32 %v1140, %v1855
    %v2596 = vadd.f32 %v1141, %v1856
    %v2597 = vadd.f32 %v1142, %v1857
    %v2598 = vadd.f32 %v1143, %v1858
    %v2599 = vadd.f32 %v1144, %v1859
    %v2600 = vadd.f32 %v1145, %v1860
    %v2601 = vadd.f32 %v1146, %v1861
    %v2602 = vadd.f32 %v1147, %v1862
    %v2603 = vadd.f32 %v1148, %v1863
    %v2604 = vadd.f32 %v1149, %v1864
    %v2605 = vadd.f32 %v1150, %v1865
    %v2606 = vadd.f32 %v1151, %v1866
    %v2607 = vadd.f32 %v1152, %v1867
    %v2608 = vadd.f32 %v1153, %v1868
    %v2609 = vadd.f32 %v1154, %v1869
    %v2610 = vadd.f32 %v2585, %v2560
    %v2611 = vadd.f32 %v2586, %v2561
    %v2612 = vadd.f32 %v2587, %v2562
    %v2613 = vadd.f32 %v2588, %v2563
    %v2614 = vadd.f32 %v2589, %v2564
    %v2615 = vadd.f32 %v2590, %v2565
    %v2616 = vadd.f32 %v2591, %v2566
    %v2617 = vadd.f32 %v2592, %v2567
    %v2618 = vadd.f32 %v2593, %v2568
    %v2619 = vadd.f32 %v2594, %v2569
    %v2620 = vadd.f32 %v2595, %v2570
    %v2621 = vadd.f32 %v2596, %v2571
    %v2622 = vadd.f32 %v2597, %v2572
    %v2623 = vadd.f32 %v2598, %v2573
    %v2624 = vadd.f32 %v2599, %v2574
    %v2625 = vadd.f32 %v2600, %v2575
    %v2626 = vadd.f32 %v2601, %v2576
    %v2627 = vadd.f32 %v2602, %v2577
    %v2628 = vadd.f32 %v2603, %v2578
    %v2629 = vadd.f32 %v2604, %v2579
    %v2630 = vadd.f32 %v2605, %v2580
    %v2631 = vadd.f32 %v2606, %v2581
    %v2632 = vadd.f32 %v2607, %v2582
    %v2633 = vadd.f32 %v2608, %v2583
    %v2634 = vadd.f32 %v2609, %v2584
    %v2635 = vld [vmem:[%s4] sm:$0x1]
    %v2637 = vlaneseq
    %v2638 = vshrl.u32 %v2637, 7
    %v2639 = vsub.s32 0, %v2638
    %v2640 = vrot.slane %v2635, %v2639
    %v2642 = vadd.f32 %v2610, %v2640
    %v2643 = vadd.f32 %v2611, %v2640
    %v2644 = vadd.f32 %v2612, %v2640
    %v2645 = vadd.f32 %v2613, %v2640
    %v2646 = vadd.f32 %v2614, %v2640
    %v2647 = vadd.f32 %v2615, %v2640
    %v2648 = vadd.f32 %v2616, %v2640
    %v2649 = vadd.f32 %v2617, %v2640
    %v2650 = vadd.f32 %v2618, %v2640
    %v2651 = vadd.f32 %v2619, %v2640
    %v2652 = vadd.f32 %v2620, %v2640
    %v2653 = vadd.f32 %v2621, %v2640
    %v2654 = vadd.f32 %v2622, %v2640
    %v2655 = vadd.f32 %v2623, %v2640
    %v2656 = vadd.f32 %v2624, %v2640
    %v2657 = vadd.f32 %v2625, %v2640
    %v2658 = vadd.f32 %v2626, %v2640
    %v2659 = vadd.f32 %v2627, %v2640
    %v2660 = vadd.f32 %v2628, %v2640
    %v2661 = vadd.f32 %v2629, %v2640
    %v2662 = vadd.f32 %v2630, %v2640
    %v2663 = vadd.f32 %v2631, %v2640
    %v2664 = vadd.f32 %v2632, %v2640
    %v2665 = vadd.f32 %v2633, %v2640
    %v2666 = vadd.f32 %v2634, %v2640
    %v2667 = vmax.f32 %v2642, 0.0
    %v2668 = vmax.f32 %v2643, 0.0
    %v2669 = vmax.f32 %v2644, 0.0
    %v2670 = vmax.f32 %v2645, 0.0
    %v2671 = vmax.f32 %v2646, 0.0
    %v2672 = vmax.f32 %v2647, 0.0
    %v2673 = vmax.f32 %v2648, 0.0
    %v2674 = vmax.f32 %v2649, 0.0
    %v2675 = vmax.f32 %v2650, 0.0
    %v2676 = vmax.f32 %v2651, 0.0
    %v2677 = vmax.f32 %v2652, 0.0
    %v2678 = vmax.f32 %v2653, 0.0
    %v2679 = vmax.f32 %v2654, 0.0
    %v2680 = vmax.f32 %v2655, 0.0
    %v2681 = vmax.f32 %v2656, 0.0
    %v2682 = vmax.f32 %v2657, 0.0
    %v2683 = vmax.f32 %v2658, 0.0
    %v2684 = vmax.f32 %v2659, 0.0
    %v2685 = vmax.f32 %v2660, 0.0
    %v2686 = vmax.f32 %v2661, 0.0
    %v2687 = vmax.f32 %v2662, 0.0
    %v2688 = vmax.f32 %v2663, 0.0
    %v2689 = vmax.f32 %v2664, 0.0
    %v2690 = vmax.f32 %v2665, 0.0
    %v2691 = vmax.f32 %v2666, 0.0
    %vm2692 = vcmask 523264
    %2693 = vst.msk [vmem:[#allocation3] sm:$0xff] %vm2692, %v2667
    %2694 = vst.msk [vmem:[#allocation3 + $0x8] sm:$0xff] %vm2692, %v2668
    %2695 = vst.msk [vmem:[#allocation3 + $0x10] sm:$0xff] %vm2692, %v2669
    %2696 = vst.msk [vmem:[#allocation3 + $0x18] sm:$0xff] %vm2692, %v2670
    %2697 = vst.msk [vmem:[#allocation3 + $0x20] sm:$0xff] %vm2692, %v2671
    %2698 = vst.msk [vmem:[#allocation3 + $0x28] sm:$0xff] %vm2692, %v2672
    %2699 = vst.msk [vmem:[#allocation3 + $0x30] sm:$0xff] %vm2692, %v2673
    %2700 = vst.msk [vmem:[#allocation3 + $0x38] sm:$0xff] %vm2692, %v2674
    %2701 = vst.msk [vmem:[#allocation3 + $0x40] sm:$0xff] %vm2692, %v2675
    %2702 = vst.msk [vmem:[#allocation3 + $0x48] sm:$0xff] %vm2692, %v2676
    %2703 = vst.msk [vmem:[#allocation3 + $0x50] sm:$0xff] %vm2692, %v2677
    %2704 = vst.msk [vmem:[#allocation3 + $0x58] sm:$0xff] %vm2692, %v2678
    %2705 = vst.msk [vmem:[#allocation3 + $0x60] sm:$0xff] %vm2692, %v2679
    %2706 = vst.msk [vmem:[#allocation3 + $0x68] sm:$0xff] %vm2692, %v2680
    %2707 = vst.msk [vmem:[#allocation3 + $0x70] sm:$0xff] %vm2692, %v2681
    %2708 = vst.msk [vmem:[#allocation3 + $0x78] sm:$0xff] %vm2692, %v2682
    %2709 = vst.msk [vmem:[#allocation3 + $0x80] sm:$0xff] %vm2692, %v2683
    %2710 = vst.msk [vmem:[#allocation3 + $0x88] sm:$0xff] %vm2692, %v2684
    %2711 = vst.msk [vmem:[#allocation3 + $0x90] sm:$0xff] %vm2692, %v2685
    %2712 = vst.msk [vmem:[#allocation3 + $0x98] sm:$0xff] %vm2692, %v2686
    %2713 = vst.msk [vmem:[#allocation3 + $0xa0] sm:$0xff] %vm2692, %v2687
    %2714 = vst.msk [vmem:[#allocation3 + $0xa8] sm:$0xff] %vm2692, %v2688
    %2715 = vst.msk [vmem:[#allocation3 + $0xb0] sm:$0xff] %vm2692, %v2689
    %2716 = vst.msk [vmem:[#allocation3 + $0xb8] sm:$0xff] %vm2692, %v2690
    %2717 = vst.msk [vmem:[#allocation3 + $0xc0] sm:$0xff] %vm2692, %v2691
    %v2718 = vld [vmem:[#allocation3] sm:$0xff]
    %v2719 = vld [vmem:[#allocation3 + $0x8] sm:$0xff]
    %v2720 = vld [vmem:[#allocation3 + $0x10] sm:$0xff]
    %v2721 = vld [vmem:[#allocation3 + $0x18] sm:$0xff]
    %v2722 = vld [vmem:[#allocation3 + $0x20] sm:$0xff]
    %v2723 = vld [vmem:[#allocation3 + $0x28] sm:$0xff]
    %v2724 = vld [vmem:[#allocation3 + $0x30] sm:$0xff]
    %v2725 = vld [vmem:[#allocation3 + $0x38] sm:$0xff]
    %v2726 = vld [vmem:[#allocation3 + $0x40] sm:$0xff]
    %v2727 = vld [vmem:[#allocation3 + $0x48] sm:$0xff]
    %v2728 = vld [vmem:[#allocation3 + $0x50] sm:$0xff]
    %v2729 = vld [vmem:[#allocation3 + $0x58] sm:$0xff]
    %v2730 = vld [vmem:[#allocation3 + $0x60] sm:$0xff]
    %v2731 = vld [vmem:[#allocation3 + $0x68] sm:$0xff]
    %v2732 = vld [vmem:[#allocation3 + $0x70] sm:$0xff]
    %v2733 = vld [vmem:[#allocation3 + $0x78] sm:$0xff]
    %v2734 = vld [vmem:[#allocation3 + $0x80] sm:$0xff]
    %v2735 = vld [vmem:[#allocation3 + $0x88] sm:$0xff]
    %v2736 = vld [vmem:[#allocation3 + $0x90] sm:$0xff]
    %v2737 = vld [vmem:[#allocation3 + $0x98] sm:$0xff]
    %v2738 = vpack.c.bf16 %v2719, %v2718
    %v2739 = vpack.c.bf16 %v2721, %v2720
    %v2740 = vpack.c.bf16 %v2723, %v2722
    %v2741 = vpack.c.bf16 %v2725, %v2724
    %v2742 = vpack.c.bf16 %v2727, %v2726
    %v2743 = vpack.c.bf16 %v2729, %v2728
    %v2744 = vpack.c.bf16 %v2731, %v2730
    %v2745 = vpack.c.bf16 %v2733, %v2732
    %v2746 = vpack.c.bf16 %v2735, %v2734
    %v2747 = vpack.c.bf16 %v2737, %v2736
    %v2748 = vld [vmem:[%s5] sm:$0xf]
    %v2749 = vld [vmem:[%s5 + $0x4] sm:$0xf]
    %v2750 = vld [vmem:[%s5 + $0x8] sm:$0xf]
    %v2751 = vld [vmem:[%s5 + $0xc] sm:$0xf]
    %v2752 = vld [vmem:[%s5 + $0x10] sm:$0xf]
    %v2753 = vld [vmem:[%s5 + $0x14] sm:$0xf]
    %v2754 = vld [vmem:[%s5 + $0x18] sm:$0xf]
    %v2755 = vld [vmem:[%s5 + $0x1c] sm:$0xf]
    %v2756 = vld [vmem:[#allocation3 + $0x1] sm:$0xff]
    %v2757 = vld [vmem:[#allocation3 + $0x9] sm:$0xff]
    %v2758 = vld [vmem:[#allocation3 + $0x11] sm:$0xff]
    %v2759 = vld [vmem:[#allocation3 + $0x19] sm:$0xff]
    %v2760 = vld [vmem:[#allocation3 + $0x21] sm:$0xff]
    %v2761 = vld [vmem:[#allocation3 + $0x29] sm:$0xff]
    %v2762 = vld [vmem:[#allocation3 + $0x31] sm:$0xff]
    %v2763 = vld [vmem:[#allocation3 + $0x39] sm:$0xff]
    %v2764 = vld [vmem:[#allocation3 + $0x41] sm:$0xff]
    %v2765 = vld [vmem:[#allocation3 + $0x49] sm:$0xff]
    %v2766 = vld [vmem:[#allocation3 + $0x51] sm:$0xff]
    %v2767 = vld [vmem:[#allocation3 + $0x59] sm:$0xff]
    %v2768 = vld [vmem:[#allocation3 + $0x61] sm:$0xff]
    %v2769 = vld [vmem:[#allocation3 + $0x69] sm:$0xff]
    %v2770 = vld [vmem:[#allocation3 + $0x71] sm:$0xff]
    %v2771 = vld [vmem:[#allocation3 + $0x79] sm:$0xff]
    %v2772 = vld [vmem:[#allocation3 + $0x81] sm:$0xff]
    %v2773 = vld [vmem:[#allocation3 + $0x89] sm:$0xff]
    %v2774 = vld [vmem:[#allocation3 + $0x91] sm:$0xff]
    %v2775 = vld [vmem:[#allocation3 + $0x99] sm:$0xff]
    %v2776 = vpack.c.bf16 %v2757, %v2756
    %v2777 = vpack.c.bf16 %v2759, %v2758
    %v2778 = vpack.c.bf16 %v2761, %v2760
    %v2779 = vpack.c.bf16 %v2763, %v2762
    %v2780 = vpack.c.bf16 %v2765, %v2764
    %v2781 = vpack.c.bf16 %v2767, %v2766
    %v2782 = vpack.c.bf16 %v2769, %v2768
    %v2783 = vpack.c.bf16 %v2771, %v2770
    %v2784 = vpack.c.bf16 %v2773, %v2772
    %v2785 = vpack.c.bf16 %v2775, %v2774
    %s2786 = scalar_lea.vmem %s5, 32
    %v2787 = vld [vmem:[%s2786] sm:$0xf]
    %v2788 = vld [vmem:[%s2786 + $0x4] sm:$0xf]
    %v2789 = vld [vmem:[%s2786 + $0x8] sm:$0xf]
    %v2790 = vld [vmem:[%s2786 + $0xc] sm:$0xf]
    %v2791 = vld [vmem:[%s2786 + $0x10] sm:$0xf]
    %v2792 = vld [vmem:[%s2786 + $0x14] sm:$0xf]
    %v2793 = vld [vmem:[%s2786 + $0x18] sm:$0xf]
    %v2794 = vld [vmem:[%s2786 + $0x1c] sm:$0xf]
    %v2803 = vunpack.c.l.b16 %v2787
    %v2804 = vunpack.c.l.b16 %v2788
    %v2805 = vunpack.c.l.b16 %v2789
    %v2806 = vunpack.c.l.b16 %v2790
    %v2807 = vunpack.c.l.b16 %v2791
    %v2808 = vunpack.c.l.b16 %v2792
    %v2809 = vunpack.c.l.b16 %v2793
    %v2810 = vunpack.c.l.b16 %v2794
    %v2811 = vpack.c.b16 %v2804, %v2803
    %v2812 = vpack.c.b16 %v2806, %v2805
    %v2813 = vpack.c.b16 %v2808, %v2807
    %v2814 = vpack.c.b16 %v2810, %v2809
    %v2820 = vsel %vm2692, %v2776, 0
    %v2823 = vsel %vm2692, %v2777, 0
    %v2826 = vsel %vm2692, %v2778, 0
    %v2829 = vsel %vm2692, %v2779, 0
    %v2832 = vsel %vm2692, %v2780, 0
    %v2835 = vsel %vm2692, %v2781, 0
    %v2838 = vsel %vm2692, %v2782, 0
    %v2841 = vsel %vm2692, %v2783, 0
    %v2844 = vsel %vm2692, %v2784, 0
    %v2847 = vsel %vm2692, %v2785, 0
    %2849 = vmatprep.subr.bf16.mxu0 0
    %2850 = vmatpush1.bf16.msra.mxu0 %v2811
    %2851 = vmatprep.subr.bf16.mxu0 0
    %2852 = vmatpush1.bf16.msra.mxu0 %v2812
    %2853 = vmatprep.subr.bf16.mxu0 0
    %2854 = vmatpush1.bf16.msra.mxu0 %v2813
    %2855 = vmatprep.subr.bf16.mxu0 0
    %2856 = vmatpush1.bf16.msra.mxu0 %v2814
    %2857 = vmatprep.subr.bf16.mxu0 0
    %2858 = vmatpush1.bf16.msra.mxu0 0
    %2859 = vmatprep.subr.bf16.mxu0 0
    %2860 = vmatpush1.bf16.msra.mxu0 0
    %2861 = vmatprep.subr.bf16.mxu0 0
    %2862 = vmatpush1.bf16.msra.mxu0 0
    %2863 = vmatprep.subr.bf16.mxu0 0
    %2864 = vmatpush1.bf16.msra.mxu0 0
    %2865 = vmatprep.subr.bf16.mxu0 0
    %2866 = vmatpush1.bf16.msra.mxu0 0
    %2867 = vmatprep.subr.bf16.mxu0 0
    %2868 = vmatpush1.bf16.msra.mxu0 0
    %2869 = vmatprep.subr.bf16.mxu0 0
    %2870 = vmatpush1.bf16.msra.mxu0 0
    %2871 = vmatprep.subr.bf16.mxu0 0
    %2872 = vmatpush1.bf16.msra.mxu0 0
    %2873 = vmatprep.subr.bf16.mxu0 0
    %2874 = vmatpush1.bf16.msra.mxu0 0
    %2875 = vmatprep.subr.bf16.mxu0 0
    %2876 = vmatpush1.bf16.msra.mxu0 0
    %2877 = vmatprep.subr.bf16.mxu0 0
    %2878 = vmatpush1.bf16.msra.mxu0 0
    %2879 = vmatprep.subr.bf16.mxu0 0
    %2880 = vmatpush1.bf16.msra.mxu0 0
    %2881 = vmatprep.mubr.bf16.mxu0 0
    %2882 = vmatmul.mubr.bf16.gmra.mrb[0].mxu0 %v2820
    %v2883 = vpop.f32.mrb[0].mxu0
    %v2884 = vadd.f32 0.0, %v2883
    %v2885 = vpop.f32.mrb[0].mxu0
    %v2886 = vpop.f32.mrb[0].mxu0
    %v2887 = vadd.f32 0.0, %v2886
    %v2888 = vpop.f32.mrb[0].mxu0
    %2889 = vmatprep.mubr.bf16.mxu0 0
    %2890 = vmatmul.mubr.bf16.gmra.mrb[0].mxu0 %v2823
    %v2891 = vpop.f32.mrb[0].mxu0
    %v2892 = vadd.f32 0.0, %v2891
    %v2893 = vpop.f32.mrb[0].mxu0
    %v2894 = vpop.f32.mrb[0].mxu0
    %v2895 = vadd.f32 0.0, %v2894
    %v2896 = vpop.f32.mrb[0].mxu0
    %2897 = vmatprep.mubr.bf16.mxu0 0
    %2898 = vmatmul.mubr.bf16.gmra.mrb[0].mxu0 %v2826
    %v2899 = vpop.f32.mrb[0].mxu0
    %v2900 = vadd.f32 0.0, %v2899
    %v2901 = vpop.f32.mrb[0].mxu0
    %v2902 = vpop.f32.mrb[0].mxu0
    %v2903 = vadd.f32 0.0, %v2902
    %v2904 = vpop.f32.mrb[0].mxu0
    %2905 = vmatprep.mubr.bf16.mxu0 0
    %2906 = vmatmul.mubr.bf16.gmra.mrb[0].mxu0 %v2829
    %v2907 = vpop.f32.mrb[0].mxu0
    %v2908 = vadd.f32 0.0, %v2907
    %v2909 = vpop.f32.mrb[0].mxu0
    %v2910 = vpop.f32.mrb[0].mxu0
    %v2911 = vadd.f32 0.0, %v2910
    %v2912 = vpop.f32.mrb[0].mxu0
    %2913 = vmatprep.mubr.bf16.mxu0 0
    %2914 = vmatmul.mubr.bf16.gmra.mrb[0].mxu0 %v2832
    %v2915 = vpop.f32.mrb[0].mxu0
    %v2916 = vadd.f32 0.0, %v2915
    %v2917 = vpop.f32.mrb[0].mxu0
    %v2918 = vpop.f32.mrb[0].mxu0
    %v2919 = vadd.f32 0.0, %v2918
    %v2920 = vpop.f32.mrb[0].mxu0
    %2921 = vmatprep.mubr.bf16.mxu0 0
    %2922 = vmatmul.mubr.bf16.gmra.mrb[0].mxu0 %v2835
    %v2923 = vpop.f32.mrb[0].mxu0
    %v2924 = vadd.f32 0.0, %v2923
    %v2925 = vpop.f32.mrb[0].mxu0
    %v2926 = vpop.f32.mrb[0].mxu0
    %v2927 = vadd.f32 0.0, %v2926
    %v2928 = vpop.f32.mrb[0].mxu0
    %2929 = vmatprep.mubr.bf16.mxu0 0
    %2930 = vmatmul.mubr.bf16.gmra.mrb[0].mxu0 %v2838
    %v2931 = vpop.f32.mrb[0].mxu0
    %v2932 = vadd.f32 0.0, %v2931
    %v2933 = vpop.f32.mrb[0].mxu0
    %v2934 = vpop.f32.mrb[0].mxu0
    %v2935 = vadd.f32 0.0, %v2934
    %v2936 = vpop.f32.mrb[0].mxu0
    %2937 = vmatprep.mubr.bf16.mxu0 0
    %2938 = vmatmul.mubr.bf16.gmra.mrb[0].mxu0 %v2841
    %v2939 = vpop.f32.mrb[0].mxu0
    %v2940 = vadd.f32 0.0, %v2939
    %v2941 = vpop.f32.mrb[0].mxu0
    %v2942 = vpop.f32.mrb[0].mxu0
    %v2943 = vadd.f32 0.0, %v2942
    %v2944 = vpop.f32.mrb[0].mxu0
    %2945 = vmatprep.mubr.bf16.mxu0 0
    %2946 = vmatmul.mubr.bf16.gmra.mrb[0].mxu0 %v2844
    %v2947 = vpop.f32.mrb[0].mxu0
    %v2948 = vadd.f32 0.0, %v2947
    %v2949 = vpop.f32.mrb[0].mxu0
    %v2950 = vpop.f32.mrb[0].mxu0
    %v2951 = vadd.f32 0.0, %v2950
    %v2952 = vpop.f32.mrb[0].mxu0
    %2953 = vmatprep.mubr.bf16.mxu0 0
    %2954 = vmatmul.mubr.bf16.gmra.mrb[0].mxu0 %v2847
    %v2955 = vpop.f32.mrb[0].mxu0
    %v2956 = vadd.f32 0.0, %v2955
    %v2957 = vpop.f32.mrb[0].mxu0
    %v2958 = vpop.f32.mrb[0].mxu0
    %v2959 = vadd.f32 0.0, %v2958
    %v2960 = vpop.f32.mrb[0].mxu0
    %2961 = vdwg.mxu0
    %v2970 = vunpack.c.l.b16 %v2748
    %v2971 = vunpack.c.l.b16 %v2749
    %v2972 = vunpack.c.l.b16 %v2750
    %v2973 = vunpack.c.l.b16 %v2751
    %v2974 = vunpack.c.l.b16 %v2752
    %v2975 = vunpack.c.l.b16 %v2753
    %v2976 = vunpack.c.l.b16 %v2754
    %v2977 = vunpack.c.l.b16 %v2755
    %v2978 = vpack.c.b16 %v2971, %v2970
    %v2979 = vpack.c.b16 %v2973, %v2972
    %v2980 = vpack.c.b16 %v2975, %v2974
    %v2981 = vpack.c.b16 %v2977, %v2976
    %v2987 = vsel %vm2692, %v2738, 0
    %v2990 = vsel %vm2692, %v2739, 0
    %v2993 = vsel %vm2692, %v2740, 0
    %v2996 = vsel %vm2692, %v2741, 0
    %v2999 = vsel %vm2692, %v2742, 0
    %v3002 = vsel %vm2692, %v2743, 0
    %v3005 = vsel %vm2692, %v2744, 0
    %v3008 = vsel %vm2692, %v2745, 0
    %v3011 = vsel %vm2692, %v2746, 0
    %v3014 = vsel %vm2692, %v2747, 0
    %3016 = vmatprep.subr.bf16.mxu0 0
    %3017 = vmatpush1.bf16.msra.mxu0 %v2978
    %3018 = vmatprep.subr.bf16.mxu0 0
    %3019 = vmatpush1.bf16.msra.mxu0 %v2979
    %3020 = vmatprep.subr.bf16.mxu0 0
    %3021 = vmatpush1.bf16.msra.mxu0 %v2980
    %3022 = vmatprep.subr.bf16.mxu0 0
    %3023 = vmatpush1.bf16.msra.mxu0 %v2981
    %3024 = vmatprep.subr.bf16.mxu0 0
    %3025 = vmatpush1.bf16.msra.mxu0 0
    %3026 = vmatprep.subr.bf16.mxu0 0
    %3027 = vmatpush1.bf16.msra.mxu0 0
    %3028 = vmatprep.subr.bf16.mxu0 0
    %3029 = vmatpush1.bf16.msra.mxu0 0
    %3030 = vmatprep.subr.bf16.mxu0 0
    %3031 = vmatpush1.bf16.msra.mxu0 0
    %3032 = vmatprep.subr.bf16.mxu0 0
    %3033 = vmatpush1.bf16.msra.mxu0 0
    %3034 = vmatprep.subr.bf16.mxu0 0
    %3035 = vmatpush1.bf16.msra.mxu0 0
    %3036 = vmatprep.subr.bf16.mxu0 0
    %3037 = vmatpush1.bf16.msra.mxu0 0
    %3038 = vmatprep.subr.bf16.mxu0 0
    %3039 = vmatpush1.bf16.msra.mxu0 0
    %3040 = vmatprep.subr.bf16.mxu0 0
    %3041 = vmatpush1.bf16.msra.mxu0 0
    %3042 = vmatprep.subr.bf16.mxu0 0
    %3043 = vmatpush1.bf16.msra.mxu0 0
    %3044 = vmatprep.subr.bf16.mxu0 0
    %3045 = vmatpush1.bf16.msra.mxu0 0
    %3046 = vmatprep.subr.bf16.mxu0 0
    %3047 = vmatpush1.bf16.msra.mxu0 0
    %3048 = vmatprep.mubr.bf16.mxu0 0
    %3049 = vmatmul.mubr.bf16.gmra.mrb[0].mxu0 %v2987
    %v3050 = vpop.f32.mrb[0].mxu0
    %v3051 = vadd.f32 %v2884, %v3050
    %v3052 = vpop.f32.mrb[0].mxu0
    %v3053 = vpop.f32.mrb[0].mxu0
    %v3054 = vadd.f32 %v2887, %v3053
    %v3055 = vpop.f32.mrb[0].mxu0
    %3056 = vmatprep.mubr.bf16.mxu0 0
    %3057 = vmatmul.mubr.bf16.gmra.mrb[0].mxu0 %v2990
    %v3058 = vpop.f32.mrb[0].mxu0
    %v3059 = vadd.f32 %v2892, %v3058
    %v3060 = vpop.f32.mrb[0].mxu0
    %v3061 = vpop.f32.mrb[0].mxu0
    %v3062 = vadd.f32 %v2895, %v3061
    %v3063 = vpop.f32.mrb[0].mxu0
    %3064 = vmatprep.mubr.bf16.mxu0 0
    %3065 = vmatmul.mubr.bf16.gmra.mrb[0].mxu0 %v2993
    %v3066 = vpop.f32.mrb[0].mxu0
    %v3067 = vadd.f32 %v2900, %v3066
    %v3068 = vpop.f32.mrb[0].mxu0
    %v3069 = vpop.f32.mrb[0].mxu0
    %v3070 = vadd.f32 %v2903, %v3069
    %v3071 = vpop.f32.mrb[0].mxu0
    %3072 = vmatprep.mubr.bf16.mxu0 0
    %3073 = vmatmul.mubr.bf16.gmra.mrb[0].mxu0 %v2996
    %v3074 = vpop.f32.mrb[0].mxu0
    %v3075 = vadd.f32 %v2908, %v3074
    %v3076 = vpop.f32.mrb[0].mxu0
    %v3077 = vpop.f32.mrb[0].mxu0
    %v3078 = vadd.f32 %v2911, %v3077
    %v3079 = vpop.f32.mrb[0].mxu0
    %3080 = vmatprep.mubr.bf16.mxu0 0
    %3081 = vmatmul.mubr.bf16.gmra.mrb[0].mxu0 %v2999
    %v3082 = vpop.f32.mrb[0].mxu0
    %v3083 = vadd.f32 %v2916, %v3082
    %v3084 = vpop.f32.mrb[0].mxu0
    %v3085 = vpop.f32.mrb[0].mxu0
    %v3086 = vadd.f32 %v2919, %v3085
    %v3087 = vpop.f32.mrb[0].mxu0
    %3088 = vmatprep.mubr.bf16.mxu0 0
    %3089 = vmatmul.mubr.bf16.gmra.mrb[0].mxu0 %v3002
    %v3090 = vpop.f32.mrb[0].mxu0
    %v3091 = vadd.f32 %v2924, %v3090
    %v3092 = vpop.f32.mrb[0].mxu0
    %v3093 = vpop.f32.mrb[0].mxu0
    %v3094 = vadd.f32 %v2927, %v3093
    %v3095 = vpop.f32.mrb[0].mxu0
    %3096 = vmatprep.mubr.bf16.mxu0 0
    %3097 = vmatmul.mubr.bf16.gmra.mrb[0].mxu0 %v3005
    %v3098 = vpop.f32.mrb[0].mxu0
    %v3099 = vadd.f32 %v2932, %v3098
    %v3100 = vpop.f32.mrb[0].mxu0
    %v3101 = vpop.f32.mrb[0].mxu0
    %v3102 = vadd.f32 %v2935, %v3101
    %v3103 = vpop.f32.mrb[0].mxu0
    %3104 = vmatprep.mubr.bf16.mxu0 0
    %3105 = vmatmul.mubr.bf16.gmra.mrb[0].mxu0 %v3008
    %v3106 = vpop.f32.mrb[0].mxu0
    %v3107 = vadd.f32 %v2940, %v3106
    %v3108 = vpop.f32.mrb[0].mxu0
    %v3109 = vpop.f32.mrb[0].mxu0
    %v3110 = vadd.f32 %v2943, %v3109
    %v3111 = vpop.f32.mrb[0].mxu0
    %3112 = vmatprep.mubr.bf16.mxu0 0
    %3113 = vmatmul.mubr.bf16.gmra.mrb[0].mxu0 %v3011
    %v3114 = vpop.f32.mrb[0].mxu0
    %v3115 = vadd.f32 %v2948, %v3114
    %v3116 = vpop.f32.mrb[0].mxu0
    %v3117 = vpop.f32.mrb[0].mxu0
    %v3118 = vadd.f32 %v2951, %v3117
    %v3119 = vpop.f32.mrb[0].mxu0
    %3120 = vmatprep.mubr.bf16.mxu0 0
    %3121 = vmatmul.mubr.bf16.gmra.mrb[0].mxu0 %v3014
    %v3122 = vpop.f32.mrb[0].mxu0
    %v3123 = vadd.f32 %v2956, %v3122
    %v3124 = vpop.f32.mrb[0].mxu0
    %v3125 = vpop.f32.mrb[0].mxu0
    %v3126 = vadd.f32 %v2959, %v3125
    %v3127 = vpop.f32.mrb[0].mxu0
    %3128 = vdwg.mxu0
    %v3129 = vld [vmem:[#allocation3 + $0x2] sm:$0xff]
    %v3130 = vld [vmem:[#allocation3 + $0xa] sm:$0xff]
    %v3131 = vld [vmem:[#allocation3 + $0x12] sm:$0xff]
    %v3132 = vld [vmem:[#allocation3 + $0x1a] sm:$0xff]
    %v3133 = vld [vmem:[#allocation3 + $0x22] sm:$0xff]
    %v3134 = vld [vmem:[#allocation3 + $0x2a] sm:$0xff]
    %v3135 = vld [vmem:[#allocation3 + $0x32] sm:$0xff]
    %v3136 = vld [vmem:[#allocation3 + $0x3a] sm:$0xff]
    %v3137 = vld [vmem:[#allocation3 + $0x42] sm:$0xff]
    %v3138 = vld [vmem:[#allocation3 + $0x4a] sm:$0xff]
    %v3139 = vld [vmem:[#allocation3 + $0x52] sm:$0xff]
    %v3140 = vld [vmem:[#allocation3 + $0x5a] sm:$0xff]
    %v3141 = vld [vmem:[#allocation3 + $0x62] sm:$0xff]
    %v3142 = vld [vmem:[#allocation3 + $0x6a] sm:$0xff]
    %v3143 = vld [vmem:[#allocation3 + $0x72] sm:$0xff]
    %v3144 = vld [vmem:[#allocation3 + $0x7a] sm:$0xff]
    %v3145 = vld [vmem:[#allocation3 + $0x82] sm:$0xff]
    %v3146 = vld [vmem:[#allocation3 + $0x8a] sm:$0xff]
    %v3147 = vld [vmem:[#allocation3 + $0x92] sm:$0xff]
    %v3148 = vld [vmem:[#allocation3 + $0x9a] sm:$0xff]
    %v3149 = vpack.c.bf16 %v3130, %v3129
    %v3150 = vpack.c.bf16 %v3132, %v3131
    %v3151 = vpack.c.bf16 %v3134, %v3133
    %v3152 = vpack.c.bf16 %v3136, %v3135
    %v3153 = vpack.c.bf16 %v3138, %v3137
    %v3154 = vpack.c.bf16 %v3140, %v3139
    %v3155 = vpack.c.bf16 %v3142, %v3141
    %v3156 = vpack.c.bf16 %v3144, %v3143
    %v3157 = vpack.c.bf16 %v3146, %v3145
    %v3158 = vpack.c.bf16 %v3148, %v3147
    %s3159 = scalar_lea.vmem %s5, 64
    %v3160 = vld [vmem:[%s3159] sm:$0xf]
    %v3161 = vld [vmem:[%s3159 + $0x4] sm:$0xf]
    %v3162 = vld [vmem:[%s3159 + $0x8] sm:$0xf]
    %v3163 = vld [vmem:[%s3159 + $0xc] sm:$0xf]
    %v3164 = vld [vmem:[%s3159 + $0x10] sm:$0xf]
    %v3165 = vld [vmem:[%s3159 + $0x14] sm:$0xf]
    %v3166 = vld [vmem:[%s3159 + $0x18] sm:$0xf]
    %v3167 = vld [vmem:[%s3159 + $0x1c] sm:$0xf]
    %v3176 = vunpack.c.l.b16 %v3160
    %v3177 = vunpack.c.l.b16 %v3161
    %v3178 = vunpack.c.l.b16 %v3162
    %v3179 = vunpack.c.l.b16 %v3163
    %v3180 = vunpack.c.l.b16 %v3164
    %v3181 = vunpack.c.l.b16 %v3165
    %v3182 = vunpack.c.l.b16 %v3166
    %v3183 = vunpack.c.l.b16 %v3167
    %v3184 = vpack.c.b16 %v3177, %v3176
    %v3185 = vpack.c.b16 %v3179, %v3178
    %v3186 = vpack.c.b16 %v3181, %v3180
    %v3187 = vpack.c.b16 %v3183, %v3182
    %v3193 = vsel %vm2692, %v3149, 0
    %v3196 = vsel %vm2692, %v3150, 0
    %v3199 = vsel %vm2692, %v3151, 0
    %v3202 = vsel %vm2692, %v3152, 0
    %v3205 = vsel %vm2692, %v3153, 0
    %v3208 = vsel %vm2692, %v3154, 0
    %v3211 = vsel %vm2692, %v3155, 0
    %v3214 = vsel %vm2692, %v3156, 0
    %v3217 = vsel %vm2692, %v3157, 0
    %v3220 = vsel %vm2692, %v3158, 0
    %3222 = vmatprep.subr.bf16.mxu0 0
    %3223 = vmatpush1.bf16.msra.mxu0 %v3184
    %3224 = vmatprep.subr.bf16.mxu0 0
    %3225 = vmatpush1.bf16.msra.mxu0 %v3185
    %3226 = vmatprep.subr.bf16.mxu0 0
    %3227 = vmatpush1.bf16.msra.mxu0 %v3186
    %3228 = vmatprep.subr.bf16.mxu0 0
    %3229 = vmatpush1.bf16.msra.mxu0 %v3187
    %3230 = vmatprep.subr.bf16.mxu0 0
    %3231 = vmatpush1.bf16.msra.mxu0 0
    %3232 = vmatprep.subr.bf16.mxu0 0
    %3233 = vmatpush1.bf16.msra.mxu0 0
    %3234 = vmatprep.subr.bf16.mxu0 0
    %3235 = vmatpush1.bf16.msra.mxu0 0
    %3236 = vmatprep.subr.bf16.mxu0 0
    %3237 = vmatpush1.bf16.msra.mxu0 0
    %3238 = vmatprep.subr.bf16.mxu0 0
    %3239 = vmatpush1.bf16.msra.mxu0 0
    %3240 = vmatprep.subr.bf16.mxu0 0
    %3241 = vmatpush1.bf16.msra.mxu0 0
    %3242 = vmatprep.subr.bf16.mxu0 0
    %3243 = vmatpush1.bf16.msra.mxu0 0
    %3244 = vmatprep.subr.bf16.mxu0 0
    %3245 = vmatpush1.bf16.msra.mxu0 0
    %3246 = vmatprep.subr.bf16.mxu0 0
    %3247 = vmatpush1.bf16.msra.mxu0 0
    %3248 = vmatprep.subr.bf16.mxu0 0
    %3249 = vmatpush1.bf16.msra.mxu0 0
    %3250 = vmatprep.subr.bf16.mxu0 0
    %3251 = vmatpush1.bf16.msra.mxu0 0
    %3252 = vmatprep.subr.bf16.mxu0 0
    %3253 = vmatpush1.bf16.msra.mxu0 0
    %3254 = vmatprep.mubr.bf16.mxu0 0
    %3255 = vmatmul.mubr.bf16.gmra.mrb[0].mxu0 %v3193
    %v3256 = vpop.f32.mrb[0].mxu0
    %v3257 = vadd.f32 0.0, %v3256
    %v3258 = vpop.f32.mrb[0].mxu0
    %v3259 = vpop.f32.mrb[0].mxu0
    %v3260 = vadd.f32 0.0, %v3259
    %v3261 = vpop.f32.mrb[0].mxu0
    %3262 = vmatprep.mubr.bf16.mxu0 0
    %3263 = vmatmul.mubr.bf16.gmra.mrb[0].mxu0 %v3196
    %v3264 = vpop.f32.mrb[0].mxu0
    %v3265 = vadd.f32 0.0, %v3264
    %v3266 = vpop.f32.mrb[0].mxu0
    %v3267 = vpop.f32.mrb[0].mxu0
    %v3268 = vadd.f32 0.0, %v3267
    %v3269 = vpop.f32.mrb[0].mxu0
    %3270 = vmatprep.mubr.bf16.mxu0 0
    %3271 = vmatmul.mubr.bf16.gmra.mrb[0].mxu0 %v3199
    %v3272 = vpop.f32.mrb[0].mxu0
    %v3273 = vadd.f32 0.0, %v3272
    %v3274 = vpop.f32.mrb[0].mxu0
    %v3275 = vpop.f32.mrb[0].mxu0
    %v3276 = vadd.f32 0.0, %v3275
    %v3277 = vpop.f32.mrb[0].mxu0
    %3278 = vmatprep.mubr.bf16.mxu0 0
    %3279 = vmatmul.mubr.bf16.gmra.mrb[0].mxu0 %v3202
    %v3280 = vpop.f32.mrb[0].mxu0
    %v3281 = vadd.f32 0.0, %v3280
    %v3282 = vpop.f32.mrb[0].mxu0
    %v3283 = vpop.f32.mrb[0].mxu0
    %v3284 = vadd.f32 0.0, %v3283
    %v3285 = vpop.f32.mrb[0].mxu0
    %3286 = vmatprep.mubr.bf16.mxu0 0
    %3287 = vmatmul.mubr.bf16.gmra.mrb[0].mxu0 %v3205
    %v3288 = vpop.f32.mrb[0].mxu0
    %v3289 = vadd.f32 0.0, %v3288
    %v3290 = vpop.f32.mrb[0].mxu0
    %v3291 = vpop.f32.mrb[0].mxu0
    %v3292 = vadd.f32 0.0, %v3291
    %v3293 = vpop.f32.mrb[0].mxu0
    %3294 = vmatprep.mubr.bf16.mxu0 0
    %3295 = vmatmul.mubr.bf16.gmra.mrb[0].mxu0 %v3208
    %v3296 = vpop.f32.mrb[0].mxu0
    %v3297 = vadd.f32 0.0, %v3296
    %v3298 = vpop.f32.mrb[0].mxu0
    %v3299 = vpop.f32.mrb[0].mxu0
    %v3300 = vadd.f32 0.0, %v3299
    %v3301 = vpop.f32.mrb[0].mxu0
    %3302 = vmatprep.mubr.bf16.mxu0 0
    %3303 = vmatmul.mubr.bf16.gmra.mrb[0].mxu0 %v3211
    %v3304 = vpop.f32.mrb[0].mxu0
    %v3305 = vadd.f32 0.0, %v3304
    %v3306 = vpop.f32.mrb[0].mxu0
    %v3307 = vpop.f32.mrb[0].mxu0
    %v3308 = vadd.f32 0.0, %v3307
    %v3309 = vpop.f32.mrb[0].mxu0
    %3310 = vmatprep.mubr.bf16.mxu0 0
    %3311 = vmatmul.mubr.bf16.gmra.mrb[0].mxu0 %v3214
    %v3312 = vpop.f32.mrb[0].mxu0
    %v3313 = vadd.f32 0.0, %v3312
    %v3314 = vpop.f32.mrb[0].mxu0
    %v3315 = vpop.f32.mrb[0].mxu0
    %v3316 = vadd.f32 0.0, %v3315
    %v3317 = vpop.f32.mrb[0].mxu0
    %3318 = vmatprep.mubr.bf16.mxu0 0
    %3319 = vmatmul.mubr.bf16.gmra.mrb[0].mxu0 %v3217
    %v3320 = vpop.f32.mrb[0].mxu0
    %v3321 = vadd.f32 0.0, %v3320
    %v3322 = vpop.f32.mrb[0].mxu0
    %v3323 = vpop.f32.mrb[0].mxu0
    %v3324 = vadd.f32 0.0, %v3323
    %v3325 = vpop.f32.mrb[0].mxu0
    %3326 = vmatprep.mubr.bf16.mxu0 0
    %3327 = vmatmul.mubr.bf16.gmra.mrb[0].mxu0 %v3220
    %v3328 = vpop.f32.mrb[0].mxu0
    %v3329 = vadd.f32 0.0, %v3328
    %v3330 = vpop.f32.mrb[0].mxu0
    %v3331 = vpop.f32.mrb[0].mxu0
    %v3332 = vadd.f32 0.0, %v3331
    %v3333 = vpop.f32.mrb[0].mxu0
    %3334 = vdwg.mxu0
    %v3335 = vadd.f32 %v3051, %v3257
    %v3336 = vadd.f32 %v3054, %v3260
    %v3337 = vadd.f32 %v3059, %v3265
    %v3338 = vadd.f32 %v3062, %v3268
    %v3339 = vadd.f32 %v3067, %v3273
    %v3340 = vadd.f32 %v3070, %v3276
    %v3341 = vadd.f32 %v3075, %v3281
    %v3342 = vadd.f32 %v3078, %v3284
    %v3343 = vadd.f32 %v3083, %v3289
    %v3344 = vadd.f32 %v3086, %v3292
    %v3345 = vadd.f32 %v3091, %v3297
    %v3346 = vadd.f32 %v3094, %v3300
    %v3347 = vadd.f32 %v3099, %v3305
    %v3348 = vadd.f32 %v3102, %v3308
    %v3349 = vadd.f32 %v3107, %v3313
    %v3350 = vadd.f32 %v3110, %v3316
    %v3351 = vadd.f32 %v3115, %v3321
    %v3352 = vadd.f32 %v3118, %v3324
    %v3353 = vadd.f32 %v3123, %v3329
    %v3354 = vadd.f32 %v3126, %v3332
    %v3355 = vld [vmem:[#allocation3 + $0x10] sm:$0xff]
    %v3356 = vld [vmem:[#allocation3 + $0x18] sm:$0xff]
    %v3357 = vld [vmem:[#allocation3 + $0x20] sm:$0xff]
    %v3358 = vld [vmem:[#allocation3 + $0x28] sm:$0xff]
    %v3359 = vld [vmem:[#allocation3 + $0x30] sm:$0xff]
    %v3360 = vld [vmem:[#allocation3 + $0x38] sm:$0xff]
    %v3361 = vld [vmem:[#allocation3 + $0x40] sm:$0xff]
    %v3362 = vld [vmem:[#allocation3 + $0x48] sm:$0xff]
    %v3363 = vld [vmem:[#allocation3 + $0x50] sm:$0xff]
    %v3364 = vld [vmem:[#allocation3 + $0x58] sm:$0xff]
    %v3365 = vld [vmem:[#allocation3 + $0x60] sm:$0xff]
    %v3366 = vld [vmem:[#allocation3 + $0x68] sm:$0xff]
    %v3367 = vld [vmem:[#allocation3 + $0x70] sm:$0xff]
    %v3368 = vld [vmem:[#allocation3 + $0x78] sm:$0xff]
    %v3369 = vld [vmem:[#allocation3 + $0x80] sm:$0xff]
    %v3370 = vld [vmem:[#allocation3 + $0x88] sm:$0xff]
    %v3371 = vld [vmem:[#allocation3 + $0x90] sm:$0xff]
    %v3372 = vld [vmem:[#allocation3 + $0x98] sm:$0xff]
    %v3373 = vld [vmem:[#allocation3 + $0xa0] sm:$0xff]
    %v3374 = vld [vmem:[#allocation3 + $0xa8] sm:$0xff]
    %v3375 = vpack.c.bf16 %v3356, %v3355
    %v3376 = vpack.c.bf16 %v3358, %v3357
    %v3377 = vpack.c.bf16 %v3360, %v3359
    %v3378 = vpack.c.bf16 %v3362, %v3361
    %v3379 = vpack.c.bf16 %v3364, %v3363
    %v3380 = vpack.c.bf16 %v3366, %v3365
    %v3381 = vpack.c.bf16 %v3368, %v3367
    %v3382 = vpack.c.bf16 %v3370, %v3369
    %v3383 = vpack.c.bf16 %v3372, %v3371
    %v3384 = vpack.c.bf16 %v3374, %v3373
    %s3385 = scalar_lea.vmem %s5, 96
    %v3386 = vld [vmem:[%s3385] sm:$0xf]
    %v3387 = vld [vmem:[%s3385 + $0x4] sm:$0xf]
    %v3388 = vld [vmem:[%s3385 + $0x8] sm:$0xf]
    %v3389 = vld [vmem:[%s3385 + $0xc] sm:$0xf]
    %v3390 = vld [vmem:[%s3385 + $0x10] sm:$0xf]
    %v3391 = vld [vmem:[%s3385 + $0x14] sm:$0xf]
    %v3392 = vld [vmem:[%s3385 + $0x18] sm:$0xf]
    %v3393 = vld [vmem:[%s3385 + $0x1c] sm:$0xf]
    %v3394 = vld [vmem:[#allocation3 + $0x11] sm:$0xff]
    %v3395 = vld [vmem:[#allocation3 + $0x19] sm:$0xff]
    %v3396 = vld [vmem:[#allocation3 + $0x21] sm:$0xff]
    %v3397 = vld [vmem:[#allocation3 + $0x29] sm:$0xff]
    %v3398 = vld [vmem:[#allocation3 + $0x31] sm:$0xff]
    %v3399 = vld [vmem:[#allocation3 + $0x39] sm:$0xff]
    %v3400 = vld [vmem:[#allocation3 + $0x41] sm:$0xff]
    %v3401 = vld [vmem:[#allocation3 + $0x49] sm:$0xff]
    %v3402 = vld [vmem:[#allocation3 + $0x51] sm:$0xff]
    %v3403 = vld [vmem:[#allocation3 + $0x59] sm:$0xff]
    %v3404 = vld [vmem:[#allocation3 + $0x61] sm:$0xff]
    %v3405 = vld [vmem:[#allocation3 + $0x69] sm:$0xff]
    %v3406 = vld [vmem:[#allocation3 + $0x71] sm:$0xff]
    %v3407 = vld [vmem:[#allocation3 + $0x79] sm:$0xff]
    %v3408 = vld [vmem:[#allocation3 + $0x81] sm:$0xff]
    %v3409 = vld [vmem:[#allocation3 + $0x89] sm:$0xff]
    %v3410 = vld [vmem:[#allocation3 + $0x91] sm:$0xff]
    %v3411 = vld [vmem:[#allocation3 + $0x99] sm:$0xff]
    %v3412 = vld [vmem:[#allocation3 + $0xa1] sm:$0xff]
    %v3413 = vld [vmem:[#allocation3 + $0xa9] sm:$0xff]
    %v3414 = vpack.c.bf16 %v3395, %v3394
    %v3415 = vpack.c.bf16 %v3397, %v3396
    %v3416 = vpack.c.bf16 %v3399, %v3398
    %v3417 = vpack.c.bf16 %v3401, %v3400
    %v3418 = vpack.c.bf16 %v3403, %v3402
    %v3419 = vpack.c.bf16 %v3405, %v3404
    %v3420 = vpack.c.bf16 %v3407, %v3406
    %v3421 = vpack.c.bf16 %v3409, %v3408
    %v3422 = vpack.c.bf16 %v3411, %v3410
    %v3423 = vpack.c.bf16 %v3413, %v3412
    %s3424 = scalar_lea.vmem %s5, 128
    %v3425 = vld [vmem:[%s3424] sm:$0xf]
    %v3426 = vld [vmem:[%s3424 + $0x4] sm:$0xf]
    %v3427 = vld [vmem:[%s3424 + $0x8] sm:$0xf]
    %v3428 = vld [vmem:[%s3424 + $0xc] sm:$0xf]
    %v3429 = vld [vmem:[%s3424 + $0x10] sm:$0xf]
    %v3430 = vld [vmem:[%s3424 + $0x14] sm:$0xf]
    %v3431 = vld [vmem:[%s3424 + $0x18] sm:$0xf]
    %v3432 = vld [vmem:[%s3424 + $0x1c] sm:$0xf]
    %v3441 = vunpack.c.l.b16 %v3425
    %v3442 = vunpack.c.l.b16 %v3426
    %v3443 = vunpack.c.l.b16 %v3427
    %v3444 = vunpack.c.l.b16 %v3428
    %v3445 = vunpack.c.l.b16 %v3429
    %v3446 = vunpack.c.l.b16 %v3430
    %v3447 = vunpack.c.l.b16 %v3431
    %v3448 = vunpack.c.l.b16 %v3432
    %v3449 = vpack.c.b16 %v3442, %v3441
    %v3450 = vpack.c.b16 %v3444, %v3443
    %v3451 = vpack.c.b16 %v3446, %v3445
    %v3452 = vpack.c.b16 %v3448, %v3447
    %v3458 = vsel %vm2692, %v3414, 0
    %v3461 = vsel %vm2692, %v3415, 0
    %v3464 = vsel %vm2692, %v3416, 0
    %v3467 = vsel %vm2692, %v3417, 0
    %v3470 = vsel %vm2692, %v3418, 0
    %v3473 = vsel %vm2692, %v3419, 0
    %v3476 = vsel %vm2692, %v3420, 0
    %v3479 = vsel %vm2692, %v3421, 0
    %v3482 = vsel %vm2692, %v3422, 0
    %v3485 = vsel %vm2692, %v3423, 0
    %3487 = vmatprep.subr.bf16.mxu0 0
    %3488 = vmatpush1.bf16.msra.mxu0 %v3449
    %3489 = vmatprep.subr.bf16.mxu0 0
    %3490 = vmatpush1.bf16.msra.mxu0 %v3450
    %3491 = vmatprep.subr.bf16.mxu0 0
    %3492 = vmatpush1.bf16.msra.mxu0 %v3451
    %3493 = vmatprep.subr.bf16.mxu0 0
    %3494 = vmatpush1.bf16.msra.mxu0 %v3452
    %3495 = vmatprep.subr.bf16.mxu0 0
    %3496 = vmatpush1.bf16.msra.mxu0 0
    %3497 = vmatprep.subr.bf16.mxu0 0
    %3498 = vmatpush1.bf16.msra.mxu0 0
    %3499 = vmatprep.subr.bf16.mxu0 0
    %3500 = vmatpush1.bf16.msra.mxu0 0
    %3501 = vmatprep.subr.bf16.mxu0 0
    %3502 = vmatpush1.bf16.msra.mxu0 0
    %3503 = vmatprep.subr.bf16.mxu0 0
    %3504 = vmatpush1.bf16.msra.mxu0 0
    %3505 = vmatprep.subr.bf16.mxu0 0
    %3506 = vmatpush1.bf16.msra.mxu0 0
    %3507 = vmatprep.subr.bf16.mxu0 0
    %3508 = vmatpush1.bf16.msra.mxu0 0
    %3509 = vmatprep.subr.bf16.mxu0 0
    %3510 = vmatpush1.bf16.msra.mxu0 0
    %3511 = vmatprep.subr.bf16.mxu0 0
    %3512 = vmatpush1.bf16.msra.mxu0 0
    %3513 = vmatprep.subr.bf16.mxu0 0
    %3514 = vmatpush1.bf16.msra.mxu0 0
    %3515 = vmatprep.subr.bf16.mxu0 0
    %3516 = vmatpush1.bf16.msra.mxu0 0
    %3517 = vmatprep.subr.bf16.mxu0 0
    %3518 = vmatpush1.bf16.msra.mxu0 0
    %3519 = vmatprep.mubr.bf16.mxu0 0
    %3520 = vmatmul.mubr.bf16.gmra.mrb[0].mxu0 %v3458
    %v3521 = vpop.f32.mrb[0].mxu0
    %v3522 = vadd.f32 0.0, %v3521
    %v3523 = vpop.f32.mrb[0].mxu0
    %v3524 = vpop.f32.mrb[0].mxu0
    %v3525 = vadd.f32 0.0, %v3524
    %v3526 = vpop.f32.mrb[0].mxu0
    %3527 = vmatprep.mubr.bf16.mxu0 0
    %3528 = vmatmul.mubr.bf16.gmra.mrb[0].mxu0 %v3461
    %v3529 = vpop.f32.mrb[0].mxu0
    %v3530 = vadd.f32 0.0, %v3529
    %v3531 = vpop.f32.mrb[0].mxu0
    %v3532 = vpop.f32.mrb[0].mxu0
    %v3533 = vadd.f32 0.0, %v3532
    %v3534 = vpop.f32.mrb[0].mxu0
    %3535 = vmatprep.mubr.bf16.mxu0 0
    %3536 = vmatmul.mubr.bf16.gmra.mrb[0].mxu0 %v3464
    %v3537 = vpop.f32.mrb[0].mxu0
    %v3538 = vadd.f32 0.0, %v3537
    %v3539 = vpop.f32.mrb[0].mxu0
    %v3540 = vpop.f32.mrb[0].mxu0
    %v3541 = vadd.f32 0.0, %v3540
    %v3542 = vpop.f32.mrb[0].mxu0
    %3543 = vmatprep.mubr.bf16.mxu0 0
    %3544 = vmatmul.mubr.bf16.gmra.mrb[0].mxu0 %v3467
    %v3545 = vpop.f32.mrb[0].mxu0
    %v3546 = vadd.f32 0.0, %v3545
    %v3547 = vpop.f32.mrb[0].mxu0
    %v3548 = vpop.f32.mrb[0].mxu0
    %v3549 = vadd.f32 0.0, %v3548
    %v3550 = vpop.f32.mrb[0].mxu0
    %3551 = vmatprep.mubr.bf16.mxu0 0
    %3552 = vmatmul.mubr.bf16.gmra.mrb[0].mxu0 %v3470
    %v3553 = vpop.f32.mrb[0].mxu0
    %v3554 = vadd.f32 0.0, %v3553
    %v3555 = vpop.f32.mrb[0].mxu0
    %v3556 = vpop.f32.mrb[0].mxu0
    %v3557 = vadd.f32 0.0, %v3556
    %v3558 = vpop.f32.mrb[0].mxu0
    %3559 = vmatprep.mubr.bf16.mxu0 0
    %3560 = vmatmul.mubr.bf16.gmra.mrb[0].mxu0 %v3473
    %v3561 = vpop.f32.mrb[0].mxu0
    %v3562 = vadd.f32 0.0, %v3561
    %v3563 = vpop.f32.mrb[0].mxu0
    %v3564 = vpop.f32.mrb[0].mxu0
    %v3565 = vadd.f32 0.0, %v3564
    %v3566 = vpop.f32.mrb[0].mxu0
    %3567 = vmatprep.mubr.bf16.mxu0 0
    %3568 = vmatmul.mubr.bf16.gmra.mrb[0].mxu0 %v3476
    %v3569 = vpop.f32.mrb[0].mxu0
    %v3570 = vadd.f32 0.0, %v3569
    %v3571 = vpop.f32.mrb[0].mxu0
    %v3572 = vpop.f32.mrb[0].mxu0
    %v3573 = vadd.f32 0.0, %v3572
    %v3574 = vpop.f32.mrb[0].mxu0
    %3575 = vmatprep.mubr.bf16.mxu0 0
    %3576 = vmatmul.mubr.bf16.gmra.mrb[0].mxu0 %v3479
    %v3577 = vpop.f32.mrb[0].mxu0
    %v3578 = vadd.f32 0.0, %v3577
    %v3579 = vpop.f32.mrb[0].mxu0
    %v3580 = vpop.f32.mrb[0].mxu0
    %v3581 = vadd.f32 0.0, %v3580
    %v3582 = vpop.f32.mrb[0].mxu0
    %3583 = vmatprep.mubr.bf16.mxu0 0
    %3584 = vmatmul.mubr.bf16.gmra.mrb[0].mxu0 %v3482
    %v3585 = vpop.f32.mrb[0].mxu0
    %v3586 = vadd.f32 0.0, %v3585
    %v3587 = vpop.f32.mrb[0].mxu0
    %v3588 = vpop.f32.mrb[0].mxu0
    %v3589 = vadd.f32 0.0, %v3588
    %v3590 = vpop.f32.mrb[0].mxu0
    %3591 = vmatprep.mubr.bf16.mxu0 0
    %3592 = vmatmul.mubr.bf16.gmra.mrb[0].mxu0 %v3485
    %v3593 = vpop.f32.mrb[0].mxu0
    %v3594 = vadd.f32 0.0, %v3593
    %v3595 = vpop.f32.mrb[0].mxu0
    %v3596 = vpop.f32.mrb[0].mxu0
    %v3597 = vadd.f32 0.0, %v3596
    %v3598 = vpop.f32.mrb[0].mxu0
    %3599 = vdwg.mxu0
    %v3608 = vunpack.c.l.b16 %v3386
    %v3609 = vunpack.c.l.b16 %v3387
    %v3610 = vunpack.c.l.b16 %v3388
    %v3611 = vunpack.c.l.b16 %v3389
    %v3612 = vunpack.c.l.b16 %v3390
    %v3613 = vunpack.c.l.b16 %v3391
    %v3614 = vunpack.c.l.b16 %v3392
    %v3615 = vunpack.c.l.b16 %v3393
    %v3616 = vpack.c.b16 %v3609, %v3608
    %v3617 = vpack.c.b16 %v3611, %v3610
    %v3618 = vpack.c.b16 %v3613, %v3612
    %v3619 = vpack.c.b16 %v3615, %v3614
    %v3625 = vsel %vm2692, %v3375, 0
    %v3628 = vsel %vm2692, %v3376, 0
    %v3631 = vsel %vm2692, %v3377, 0
    %v3634 = vsel %vm2692, %v3378, 0
    %v3637 = vsel %vm2692, %v3379, 0
    %v3640 = vsel %vm2692, %v3380, 0
    %v3643 = vsel %vm2692, %v3381, 0
    %v3646 = vsel %vm2692, %v3382, 0
    %v3649 = vsel %vm2692, %v3383, 0
    %v3652 = vsel %vm2692, %v3384, 0
    %3654 = vmatprep.subr.bf16.mxu0 0
    %3655 = vmatpush1.bf16.msra.mxu0 %v3616
    %3656 = vmatprep.subr.bf16.mxu0 0
    %3657 = vmatpush1.bf16.msra.mxu0 %v3617
    %3658 = vmatprep.subr.bf16.mxu0 0
    %3659 = vmatpush1.bf16.msra.mxu0 %v3618
    %3660 = vmatprep.subr.bf16.mxu0 0
    %3661 = vmatpush1.bf16.msra.mxu0 %v3619
    %3662 = vmatprep.subr.bf16.mxu0 0
    %3663 = vmatpush1.bf16.msra.mxu0 0
    %3664 = vmatprep.subr.bf16.mxu0 0
    %3665 = vmatpush1.bf16.msra.mxu0 0
    %3666 = vmatprep.subr.bf16.mxu0 0
    %3667 = vmatpush1.bf16.msra.mxu0 0
    %3668 = vmatprep.subr.bf16.mxu0 0
    %3669 = vmatpush1.bf16.msra.mxu0 0
    %3670 = vmatprep.subr.bf16.mxu0 0
    %3671 = vmatpush1.bf16.msra.mxu0 0
    %3672 = vmatprep.subr.bf16.mxu0 0
    %3673 = vmatpush1.bf16.msra.mxu0 0
    %3674 = vmatprep.subr.bf16.mxu0 0
    %3675 = vmatpush1.bf16.msra.mxu0 0
    %3676 = vmatprep.subr.bf16.mxu0 0
    %3677 = vmatpush1.bf16.msra.mxu0 0
    %3678 = vmatprep.subr.bf16.mxu0 0
    %3679 = vmatpush1.bf16.msra.mxu0 0
    %3680 = vmatprep.subr.bf16.mxu0 0
    %3681 = vmatpush1.bf16.msra.mxu0 0
    %3682 = vmatprep.subr.bf16.mxu0 0
    %3683 = vmatpush1.bf16.msra.mxu0 0
    %3684 = vmatprep.subr.bf16.mxu0 0
    %3685 = vmatpush1.bf16.msra.mxu0 0
    %3686 = vmatprep.mubr.bf16.mxu0 0
    %3687 = vmatmul.mubr.bf16.gmra.mrb[0].mxu0 %v3625
    %v3688 = vpop.f32.mrb[0].mxu0
    %v3689 = vadd.f32 %v3522, %v3688
    %v3690 = vpop.f32.mrb[0].mxu0
    %v3691 = vpop.f32.mrb[0].mxu0
    %v3692 = vadd.f32 %v3525, %v3691
    %v3693 = vpop.f32.mrb[0].mxu0
    %3694 = vmatprep.mubr.bf16.mxu0 0
    %3695 = vmatmul.mubr.bf16.gmra.mrb[0].mxu0 %v3628
    %v3696 = vpop.f32.mrb[0].mxu0
    %v3697 = vadd.f32 %v3530, %v3696
    %v3698 = vpop.f32.mrb[0].mxu0
    %v3699 = vpop.f32.mrb[0].mxu0
    %v3700 = vadd.f32 %v3533, %v3699
    %v3701 = vpop.f32.mrb[0].mxu0
    %3702 = vmatprep.mubr.bf16.mxu0 0
    %3703 = vmatmul.mubr.bf16.gmra.mrb[0].mxu0 %v3631
    %v3704 = vpop.f32.mrb[0].mxu0
    %v3705 = vadd.f32 %v3538, %v3704
    %v3706 = vpop.f32.mrb[0].mxu0
    %v3707 = vpop.f32.mrb[0].mxu0
    %v3708 = vadd.f32 %v3541, %v3707
    %v3709 = vpop.f32.mrb[0].mxu0
    %3710 = vmatprep.mubr.bf16.mxu0 0
    %3711 = vmatmul.mubr.bf16.gmra.mrb[0].mxu0 %v3634
    %v3712 = vpop.f32.mrb[0].mxu0
    %v3713 = vadd.f32 %v3546, %v3712
    %v3714 = vpop.f32.mrb[0].mxu0
    %v3715 = vpop.f32.mrb[0].mxu0
    %v3716 = vadd.f32 %v3549, %v3715
    %v3717 = vpop.f32.mrb[0].mxu0
    %3718 = vmatprep.mubr.bf16.mxu0 0
    %3719 = vmatmul.mubr.bf16.gmra.mrb[0].mxu0 %v3637
    %v3720 = vpop.f32.mrb[0].mxu0
    %v3721 = vadd.f32 %v3554, %v3720
    %v3722 = vpop.f32.mrb[0].mxu0
    %v3723 = vpop.f32.mrb[0].mxu0
    %v3724 = vadd.f32 %v3557, %v3723
    %v3725 = vpop.f32.mrb[0].mxu0
    %3726 = vmatprep.mubr.bf16.mxu0 0
    %3727 = vmatmul.mubr.bf16.gmra.mrb[0].mxu0 %v3640
    %v3728 = vpop.f32.mrb[0].mxu0
    %v3729 = vadd.f32 %v3562, %v3728
    %v3730 = vpop.f32.mrb[0].mxu0
    %v3731 = vpop.f32.mrb[0].mxu0
    %v3732 = vadd.f32 %v3565, %v3731
    %v3733 = vpop.f32.mrb[0].mxu0
    %3734 = vmatprep.mubr.bf16.mxu0 0
    %3735 = vmatmul.mubr.bf16.gmra.mrb[0].mxu0 %v3643
    %v3736 = vpop.f32.mrb[0].mxu0
    %v3737 = vadd.f32 %v3570, %v3736
    %v3738 = vpop.f32.mrb[0].mxu0
    %v3739 = vpop.f32.mrb[0].mxu0
    %v3740 = vadd.f32 %v3573, %v3739
    %v3741 = vpop.f32.mrb[0].mxu0
    %3742 = vmatprep.mubr.bf16.mxu0 0
    %3743 = vmatmul.mubr.bf16.gmra.mrb[0].mxu0 %v3646
    %v3744 = vpop.f32.mrb[0].mxu0
    %v3745 = vadd.f32 %v3578, %v3744
    %v3746 = vpop.f32.mrb[0].mxu0
    %v3747 = vpop.f32.mrb[0].mxu0
    %v3748 = vadd.f32 %v3581, %v3747
    %v3749 = vpop.f32.mrb[0].mxu0
    %3750 = vmatprep.mubr.bf16.mxu0 0
    %3751 = vmatmul.mubr.bf16.gmra.mrb[0].mxu0 %v3649
    %v3752 = vpop.f32.mrb[0].mxu0
    %v3753 = vadd.f32 %v3586, %v3752
    %v3754 = vpop.f32.mrb[0].mxu0
    %v3755 = vpop.f32.mrb[0].mxu0
    %v3756 = vadd.f32 %v3589, %v3755
    %v3757 = vpop.f32.mrb[0].mxu0
    %3758 = vmatprep.mubr.bf16.mxu0 0
    %3759 = vmatmul.mubr.bf16.gmra.mrb[0].mxu0 %v3652
    %v3760 = vpop.f32.mrb[0].mxu0
    %v3761 = vadd.f32 %v3594, %v3760
    %v3762 = vpop.f32.mrb[0].mxu0
    %v3763 = vpop.f32.mrb[0].mxu0
    %v3764 = vadd.f32 %v3597, %v3763
    %v3765 = vpop.f32.mrb[0].mxu0
    %3766 = vdwg.mxu0
    %v3767 = vld [vmem:[#allocation3 + $0x12] sm:$0xff]
    %v3768 = vld [vmem:[#allocation3 + $0x1a] sm:$0xff]
    %v3769 = vld [vmem:[#allocation3 + $0x22] sm:$0xff]
    %v3770 = vld [vmem:[#allocation3 + $0x2a] sm:$0xff]
    %v3771 = vld [vmem:[#allocation3 + $0x32] sm:$0xff]
    %v3772 = vld [vmem:[#allocation3 + $0x3a] sm:$0xff]
    %v3773 = vld [vmem:[#allocation3 + $0x42] sm:$0xff]
    %v3774 = vld [vmem:[#allocation3 + $0x4a] sm:$0xff]
    %v3775 = vld [vmem:[#allocation3 + $0x52] sm:$0xff]
    %v3776 = vld [vmem:[#allocation3 + $0x5a] sm:$0xff]
    %v3777 = vld [vmem:[#allocation3 + $0x62] sm:$0xff]
    %v3778 = vld [vmem:[#allocation3 + $0x6a] sm:$0xff]
    %v3779 = vld [vmem:[#allocation3 + $0x72] sm:$0xff]
    %v3780 = vld [vmem:[#allocation3 + $0x7a] sm:$0xff]
    %v3781 = vld [vmem:[#allocation3 + $0x82] sm:$0xff]
    %v3782 = vld [vmem:[#allocation3 + $0x8a] sm:$0xff]
    %v3783 = vld [vmem:[#allocation3 + $0x92] sm:$0xff]
    %v3784 = vld [vmem:[#allocation3 + $0x9a] sm:$0xff]
    %v3785 = vld [vmem:[#allocation3 + $0xa2] sm:$0xff]
    %v3786 = vld [vmem:[#allocation3 + $0xaa] sm:$0xff]
    %v3787 = vpack.c.bf16 %v3768, %v3767
    %v3788 = vpack.c.bf16 %v3770, %v3769
    %v3789 = vpack.c.bf16 %v3772, %v3771
    %v3790 = vpack.c.bf16 %v3774, %v3773
    %v3791 = vpack.c.bf16 %v3776, %v3775
    %v3792 = vpack.c.bf16 %v3778, %v3777
    %v3793 = vpack.c.bf16 %v3780, %v3779
    %v3794 = vpack.c.bf16 %v3782, %v3781
    %v3795 = vpack.c.bf16 %v3784, %v3783
    %v3796 = vpack.c.bf16 %v3786, %v3785
    %s3797 = scalar_lea.vmem %s5, 160
    %v3798 = vld [vmem:[%s3797] sm:$0xf]
    %v3799 = vld [vmem:[%s3797 + $0x4] sm:$0xf]
    %v3800 = vld [vmem:[%s3797 + $0x8] sm:$0xf]
    %v3801 = vld [vmem:[%s3797 + $0xc] sm:$0xf]
    %v3802 = vld [vmem:[%s3797 + $0x10] sm:$0xf]
    %v3803 = vld [vmem:[%s3797 + $0x14] sm:$0xf]
    %v3804 = vld [vmem:[%s3797 + $0x18] sm:$0xf]
    %v3805 = vld [vmem:[%s3797 + $0x1c] sm:$0xf]
    %v3814 = vunpack.c.l.b16 %v3798
    %v3815 = vunpack.c.l.b16 %v3799
    %v3816 = vunpack.c.l.b16 %v3800
    %v3817 = vunpack.c.l.b16 %v3801
    %v3818 = vunpack.c.l.b16 %v3802
    %v3819 = vunpack.c.l.b16 %v3803
    %v3820 = vunpack.c.l.b16 %v3804
    %v3821 = vunpack.c.l.b16 %v3805
    %v3822 = vpack.c.b16 %v3815, %v3814
    %v3823 = vpack.c.b16 %v3817, %v3816
    %v3824 = vpack.c.b16 %v3819, %v3818
    %v3825 = vpack.c.b16 %v3821, %v3820
    %v3831 = vsel %vm2692, %v3787, 0
    %v3834 = vsel %vm2692, %v3788, 0
    %v3837 = vsel %vm2692, %v3789, 0
    %v3840 = vsel %vm2692, %v3790, 0
    %v3843 = vsel %vm2692, %v3791, 0
    %v3846 = vsel %vm2692, %v3792, 0
    %v3849 = vsel %vm2692, %v3793, 0
    %v3852 = vsel %vm2692, %v3794, 0
    %v3855 = vsel %vm2692, %v3795, 0
    %v3858 = vsel %vm2692, %v3796, 0
    %3860 = vmatprep.subr.bf16.mxu0 0
    %3861 = vmatpush1.bf16.msra.mxu0 %v3822
    %3862 = vmatprep.subr.bf16.mxu0 0
    %3863 = vmatpush1.bf16.msra.mxu0 %v3823
    %3864 = vmatprep.subr.bf16.mxu0 0
    %3865 = vmatpush1.bf16.msra.mxu0 %v3824
    %3866 = vmatprep.subr.bf16.mxu0 0
    %3867 = vmatpush1.bf16.msra.mxu0 %v3825
    %3868 = vmatprep.subr.bf16.mxu0 0
    %3869 = vmatpush1.bf16.msra.mxu0 0
    %3870 = vmatprep.subr.bf16.mxu0 0
    %3871 = vmatpush1.bf16.msra.mxu0 0
    %3872 = vmatprep.subr.bf16.mxu0 0
    %3873 = vmatpush1.bf16.msra.mxu0 0
    %3874 = vmatprep.subr.bf16.mxu0 0
    %3875 = vmatpush1.bf16.msra.mxu0 0
    %3876 = vmatprep.subr.bf16.mxu0 0
    %3877 = vmatpush1.bf16.msra.mxu0 0
    %3878 = vmatprep.subr.bf16.mxu0 0
    %3879 = vmatpush1.bf16.msra.mxu0 0
    %3880 = vmatprep.subr.bf16.mxu0 0
    %3881 = vmatpush1.bf16.msra.mxu0 0
    %3882 = vmatprep.subr.bf16.mxu0 0
    %3883 = vmatpush1.bf16.msra.mxu0 0
    %3884 = vmatprep.subr.bf16.mxu0 0
    %3885 = vmatpush1.bf16.msra.mxu0 0
    %3886 = vmatprep.subr.bf16.mxu0 0
    %3887 = vmatpush1.bf16.msra.mxu0 0
    %3888 = vmatprep.subr.bf16.mxu0 0
    %3889 = vmatpush1.bf16.msra.mxu0 0
    %3890 = vmatprep.subr.bf16.mxu0 0
    %3891 = vmatpush1.bf16.msra.mxu0 0
    %3892 = vmatprep.mubr.bf16.mxu0 0
    %3893 = vmatmul.mubr.bf16.gmra.mrb[0].mxu0 %v3831
    %v3894 = vpop.f32.mrb[0].mxu0
    %v3895 = vadd.f32 0.0, %v3894
    %v3896 = vpop.f32.mrb[0].mxu0
    %v3897 = vpop.f32.mrb[0].mxu0
    %v3898 = vadd.f32 0.0, %v3897
    %v3899 = vpop.f32.mrb[0].mxu0
    %3900 = vmatprep.mubr.bf16.mxu0 0
    %3901 = vmatmul.mubr.bf16.gmra.mrb[0].mxu0 %v3834
    %v3902 = vpop.f32.mrb[0].mxu0
    %v3903 = vadd.f32 0.0, %v3902
    %v3904 = vpop.f32.mrb[0].mxu0
    %v3905 = vpop.f32.mrb[0].mxu0
    %v3906 = vadd.f32 0.0, %v3905
    %v3907 = vpop.f32.mrb[0].mxu0
    %3908 = vmatprep.mubr.bf16.mxu0 0
    %3909 = vmatmul.mubr.bf16.gmra.mrb[0].mxu0 %v3837
    %v3910 = vpop.f32.mrb[0].mxu0
    %v3911 = vadd.f32 0.0, %v3910
    %v3912 = vpop.f32.mrb[0].mxu0
    %v3913 = vpop.f32.mrb[0].mxu0
    %v3914 = vadd.f32 0.0, %v3913
    %v3915 = vpop.f32.mrb[0].mxu0
    %3916 = vmatprep.mubr.bf16.mxu0 0
    %3917 = vmatmul.mubr.bf16.gmra.mrb[0].mxu0 %v3840
    %v3918 = vpop.f32.mrb[0].mxu0
    %v3919 = vadd.f32 0.0, %v3918
    %v3920 = vpop.f32.mrb[0].mxu0
    %v3921 = vpop.f32.mrb[0].mxu0
    %v3922 = vadd.f32 0.0, %v3921
    %v3923 = vpop.f32.mrb[0].mxu0
    %3924 = vmatprep.mubr.bf16.mxu0 0
    %3925 = vmatmul.mubr.bf16.gmra.mrb[0].mxu0 %v3843
    %v3926 = vpop.f32.mrb[0].mxu0
    %v3927 = vadd.f32 0.0, %v3926
    %v3928 = vpop.f32.mrb[0].mxu0
    %v3929 = vpop.f32.mrb[0].mxu0
    %v3930 = vadd.f32 0.0, %v3929
    %v3931 = vpop.f32.mrb[0].mxu0
    %3932 = vmatprep.mubr.bf16.mxu0 0
    %3933 = vmatmul.mubr.bf16.gmra.mrb[0].mxu0 %v3846
    %v3934 = vpop.f32.mrb[0].mxu0
    %v3935 = vadd.f32 0.0, %v3934
    %v3936 = vpop.f32.mrb[0].mxu0
    %v3937 = vpop.f32.mrb[0].mxu0
    %v3938 = vadd.f32 0.0, %v3937
    %v3939 = vpop.f32.mrb[0].mxu0
    %3940 = vmatprep.mubr.bf16.mxu0 0
    %3941 = vmatmul.mubr.bf16.gmra.mrb[0].mxu0 %v3849
    %v3942 = vpop.f32.mrb[0].mxu0
    %v3943 = vadd.f32 0.0, %v3942
    %v3944 = vpop.f32.mrb[0].mxu0
    %v3945 = vpop.f32.mrb[0].mxu0
    %v3946 = vadd.f32 0.0, %v3945
    %v3947 = vpop.f32.mrb[0].mxu0
    %3948 = vmatprep.mubr.bf16.mxu0 0
    %3949 = vmatmul.mubr.bf16.gmra.mrb[0].mxu0 %v3852
    %v3950 = vpop.f32.mrb[0].mxu0
    %v3951 = vadd.f32 0.0, %v3950
    %v3952 = vpop.f32.mrb[0].mxu0
    %v3953 = vpop.f32.mrb[0].mxu0
    %v3954 = vadd.f32 0.0, %v3953
    %v3955 = vpop.f32.mrb[0].mxu0
    %3956 = vmatprep.mubr.bf16.mxu0 0
    %3957 = vmatmul.mubr.bf16.gmra.mrb[0].mxu0 %v3855
    %v3958 = vpop.f32.mrb[0].mxu0
    %v3959 = vadd.f32 0.0, %v3958
    %v3960 = vpop.f32.mrb[0].mxu0
    %v3961 = vpop.f32.mrb[0].mxu0
    %v3962 = vadd.f32 0.0, %v3961
    %v3963 = vpop.f32.mrb[0].mxu0
    %3964 = vmatprep.mubr.bf16.mxu0 0
    %3965 = vmatmul.mubr.bf16.gmra.mrb[0].mxu0 %v3858
    %v3966 = vpop.f32.mrb[0].mxu0
    %v3967 = vadd.f32 0.0, %v3966
    %v3968 = vpop.f32.mrb[0].mxu0
    %v3969 = vpop.f32.mrb[0].mxu0
    %v3970 = vadd.f32 0.0, %v3969
    %v3971 = vpop.f32.mrb[0].mxu0
    %3972 = vdwg.mxu0
    %v3973 = vadd.f32 %v3689, %v3895
    %v3974 = vadd.f32 %v3692, %v3898
    %v3975 = vadd.f32 %v3697, %v3903
    %v3976 = vadd.f32 %v3700, %v3906
    %v3977 = vadd.f32 %v3705, %v3911
    %v3978 = vadd.f32 %v3708, %v3914
    %v3979 = vadd.f32 %v3713, %v3919
    %v3980 = vadd.f32 %v3716, %v3922
    %v3981 = vadd.f32 %v3721, %v3927
    %v3982 = vadd.f32 %v3724, %v3930
    %v3983 = vadd.f32 %v3729, %v3935
    %v3984 = vadd.f32 %v3732, %v3938
    %v3985 = vadd.f32 %v3737, %v3943
    %v3986 = vadd.f32 %v3740, %v3946
    %v3987 = vadd.f32 %v3745, %v3951
    %v3988 = vadd.f32 %v3748, %v3954
    %v3989 = vadd.f32 %v3753, %v3959
    %v3990 = vadd.f32 %v3756, %v3962
    %v3991 = vadd.f32 %v3761, %v3967
    %v3992 = vadd.f32 %v3764, %v3970
    %v3993 = vld [vmem:[#allocation3 + $0x20] sm:$0xff]
    %v3994 = vld [vmem:[#allocation3 + $0x28] sm:$0xff]
    %v3995 = vld [vmem:[#allocation3 + $0x30] sm:$0xff]
    %v3996 = vld [vmem:[#allocation3 + $0x38] sm:$0xff]
    %v3997 = vld [vmem:[#allocation3 + $0x40] sm:$0xff]
    %v3998 = vld [vmem:[#allocation3 + $0x48] sm:$0xff]
    %v3999 = vld [vmem:[#allocation3 + $0x50] sm:$0xff]
    %v4000 = vld [vmem:[#allocation3 + $0x58] sm:$0xff]
    %v4001 = vld [vmem:[#allocation3 + $0x60] sm:$0xff]
    %v4002 = vld [vmem:[#allocation3 + $0x68] sm:$0xff]
    %v4003 = vld [vmem:[#allocation3 + $0x70] sm:$0xff]
    %v4004 = vld [vmem:[#allocation3 + $0x78] sm:$0xff]
    %v4005 = vld [vmem:[#allocation3 + $0x80] sm:$0xff]
    %v4006 = vld [vmem:[#allocation3 + $0x88] sm:$0xff]
    %v4007 = vld [vmem:[#allocation3 + $0x90] sm:$0xff]
    %v4008 = vld [vmem:[#allocation3 + $0x98] sm:$0xff]
    %v4009 = vld [vmem:[#allocation3 + $0xa0] sm:$0xff]
    %v4010 = vld [vmem:[#allocation3 + $0xa8] sm:$0xff]
    %v4011 = vld [vmem:[#allocation3 + $0xb0] sm:$0xff]
    %v4012 = vld [vmem:[#allocation3 + $0xb8] sm:$0xff]
    %v4013 = vpack.c.bf16 %v3994, %v3993
    %v4014 = vpack.c.bf16 %v3996, %v3995
    %v4015 = vpack.c.bf16 %v3998, %v3997
    %v4016 = vpack.c.bf16 %v4000, %v3999
    %v4017 = vpack.c.bf16 %v4002, %v4001
    %v4018 = vpack.c.bf16 %v4004, %v4003
    %v4019 = vpack.c.bf16 %v4006, %v4005
    %v4020 = vpack.c.bf16 %v4008, %v4007
    %v4021 = vpack.c.bf16 %v4010, %v4009
    %v4022 = vpack.c.bf16 %v4012, %v4011
    %s4023 = scalar_lea.vmem %s5, 192
    %v4024 = vld [vmem:[%s4023] sm:$0xf]
    %v4025 = vld [vmem:[%s4023 + $0x4] sm:$0xf]
    %v4026 = vld [vmem:[%s4023 + $0x8] sm:$0xf]
    %v4027 = vld [vmem:[%s4023 + $0xc] sm:$0xf]
    %v4028 = vld [vmem:[%s4023 + $0x10] sm:$0xf]
    %v4029 = vld [vmem:[%s4023 + $0x14] sm:$0xf]
    %v4030 = vld [vmem:[%s4023 + $0x18] sm:$0xf]
    %v4031 = vld [vmem:[%s4023 + $0x1c] sm:$0xf]
    %v4032 = vld [vmem:[#allocation3 + $0x21] sm:$0xff]
    %v4033 = vld [vmem:[#allocation3 + $0x29] sm:$0xff]
    %v4034 = vld [vmem:[#allocation3 + $0x31] sm:$0xff]
    %v4035 = vld [vmem:[#allocation3 + $0x39] sm:$0xff]
    %v4036 = vld [vmem:[#allocation3 + $0x41] sm:$0xff]
    %v4037 = vld [vmem:[#allocation3 + $0x49] sm:$0xff]
    %v4038 = vld [vmem:[#allocation3 + $0x51] sm:$0xff]
    %v4039 = vld [vmem:[#allocation3 + $0x59] sm:$0xff]
    %v4040 = vld [vmem:[#allocation3 + $0x61] sm:$0xff]
    %v4041 = vld [vmem:[#allocation3 + $0x69] sm:$0xff]
    %v4042 = vld [vmem:[#allocation3 + $0x71] sm:$0xff]
    %v4043 = vld [vmem:[#allocation3 + $0x79] sm:$0xff]
    %v4044 = vld [vmem:[#allocation3 + $0x81] sm:$0xff]
    %v4045 = vld [vmem:[#allocation3 + $0x89] sm:$0xff]
    %v4046 = vld [vmem:[#allocation3 + $0x91] sm:$0xff]
    %v4047 = vld [vmem:[#allocation3 + $0x99] sm:$0xff]
    %v4048 = vld [vmem:[#allocation3 + $0xa1] sm:$0xff]
    %v4049 = vld [vmem:[#allocation3 + $0xa9] sm:$0xff]
    %v4050 = vld [vmem:[#allocation3 + $0xb1] sm:$0xff]
    %v4051 = vld [vmem:[#allocation3 + $0xb9] sm:$0xff]
    %v4052 = vpack.c.bf16 %v4033, %v4032
    %v4053 = vpack.c.bf16 %v4035, %v4034
    %v4054 = vpack.c.bf16 %v4037, %v4036
    %v4055 = vpack.c.bf16 %v4039, %v4038
    %v4056 = vpack.c.bf16 %v4041, %v4040
    %v4057 = vpack.c.bf16 %v4043, %v4042
    %v4058 = vpack.c.bf16 %v4045, %v4044
    %v4059 = vpack.c.bf16 %v4047, %v4046
    %v4060 = vpack.c.bf16 %v4049, %v4048
    %v4061 = vpack.c.bf16 %v4051, %v4050
    %s4062 = scalar_lea.vmem %s5, 224
    %v4063 = vld [vmem:[%s4062] sm:$0xf]
    %v4064 = vld [vmem:[%s4062 + $0x4] sm:$0xf]
    %v4065 = vld [vmem:[%s4062 + $0x8] sm:$0xf]
    %v4066 = vld [vmem:[%s4062 + $0xc] sm:$0xf]
    %v4067 = vld [vmem:[%s4062 + $0x10] sm:$0xf]
    %v4068 = vld [vmem:[%s4062 + $0x14] sm:$0xf]
    %v4069 = vld [vmem:[%s4062 + $0x18] sm:$0xf]
    %v4070 = vld [vmem:[%s4062 + $0x1c] sm:$0xf]
    %v4079 = vunpack.c.l.b16 %v4063
    %v4080 = vunpack.c.l.b16 %v4064
    %v4081 = vunpack.c.l.b16 %v4065
    %v4082 = vunpack.c.l.b16 %v4066
    %v4083 = vunpack.c.l.b16 %v4067
    %v4084 = vunpack.c.l.b16 %v4068
    %v4085 = vunpack.c.l.b16 %v4069
    %v4086 = vunpack.c.l.b16 %v4070
    %v4087 = vpack.c.b16 %v4080, %v4079
    %v4088 = vpack.c.b16 %v4082, %v4081
    %v4089 = vpack.c.b16 %v4084, %v4083
    %v4090 = vpack.c.b16 %v4086, %v4085
    %v4096 = vsel %vm2692, %v4052, 0
    %v4099 = vsel %vm2692, %v4053, 0
    %v4102 = vsel %vm2692, %v4054, 0
    %v4105 = vsel %vm2692, %v4055, 0
    %v4108 = vsel %vm2692, %v4056, 0
    %v4111 = vsel %vm2692, %v4057, 0
    %v4114 = vsel %vm2692, %v4058, 0
    %v4117 = vsel %vm2692, %v4059, 0
    %v4120 = vsel %vm2692, %v4060, 0
    %v4123 = vsel %vm2692, %v4061, 0
    %4125 = vmatprep.subr.bf16.mxu0 0
    %4126 = vmatpush1.bf16.msra.mxu0 %v4087
    %4127 = vmatprep.subr.bf16.mxu0 0
    %4128 = vmatpush1.bf16.msra.mxu0 %v4088
    %4129 = vmatprep.subr.bf16.mxu0 0
    %4130 = vmatpush1.bf16.msra.mxu0 %v4089
    %4131 = vmatprep.subr.bf16.mxu0 0
    %4132 = vmatpush1.bf16.msra.mxu0 %v4090
    %4133 = vmatprep.subr.bf16.mxu0 0
    %4134 = vmatpush1.bf16.msra.mxu0 0
    %4135 = vmatprep.subr.bf16.mxu0 0
    %4136 = vmatpush1.bf16.msra.mxu0 0
    %4137 = vmatprep.subr.bf16.mxu0 0
    %4138 = vmatpush1.bf16.msra.mxu0 0
    %4139 = vmatprep.subr.bf16.mxu0 0
    %4140 = vmatpush1.bf16.msra.mxu0 0
    %4141 = vmatprep.subr.bf16.mxu0 0
    %4142 = vmatpush1.bf16.msra.mxu0 0
    %4143 = vmatprep.subr.bf16.mxu0 0
    %4144 = vmatpush1.bf16.msra.mxu0 0
    %4145 = vmatprep.subr.bf16.mxu0 0
    %4146 = vmatpush1.bf16.msra.mxu0 0
    %4147 = vmatprep.subr.bf16.mxu0 0
    %4148 = vmatpush1.bf16.msra.mxu0 0
    %4149 = vmatprep.subr.bf16.mxu0 0
    %4150 = vmatpush1.bf16.msra.mxu0 0
    %4151 = vmatprep.subr.bf16.mxu0 0
    %4152 = vmatpush1.bf16.msra.mxu0 0
    %4153 = vmatprep.subr.bf16.mxu0 0
    %4154 = vmatpush1.bf16.msra.mxu0 0
    %4155 = vmatprep.subr.bf16.mxu0 0
    %4156 = vmatpush1.bf16.msra.mxu0 0
    %4157 = vmatprep.mubr.bf16.mxu0 0
    %4158 = vmatmul.mubr.bf16.gmra.mrb[0].mxu0 %v4096
    %v4159 = vpop.f32.mrb[0].mxu0
    %v4160 = vadd.f32 0.0, %v4159
    %v4161 = vpop.f32.mrb[0].mxu0
    %v4162 = vpop.f32.mrb[0].mxu0
    %v4163 = vadd.f32 0.0, %v4162
    %v4164 = vpop.f32.mrb[0].mxu0
    %4165 = vmatprep.mubr.bf16.mxu0 0
    %4166 = vmatmul.mubr.bf16.gmra.mrb[0].mxu0 %v4099
    %v4167 = vpop.f32.mrb[0].mxu0
    %v4168 = vadd.f32 0.0, %v4167
    %v4169 = vpop.f32.mrb[0].mxu0
    %v4170 = vpop.f32.mrb[0].mxu0
    %v4171 = vadd.f32 0.0, %v4170
    %v4172 = vpop.f32.mrb[0].mxu0
    %4173 = vmatprep.mubr.bf16.mxu0 0
    %4174 = vmatmul.mubr.bf16.gmra.mrb[0].mxu0 %v4102
    %v4175 = vpop.f32.mrb[0].mxu0
    %v4176 = vadd.f32 0.0, %v4175
    %v4177 = vpop.f32.mrb[0].mxu0
    %v4178 = vpop.f32.mrb[0].mxu0
    %v4179 = vadd.f32 0.0, %v4178
    %v4180 = vpop.f32.mrb[0].mxu0
    %4181 = vmatprep.mubr.bf16.mxu0 0
    %4182 = vmatmul.mubr.bf16.gmra.mrb[0].mxu0 %v4105
    %v4183 = vpop.f32.mrb[0].mxu0
    %v4184 = vadd.f32 0.0, %v4183
    %v4185 = vpop.f32.mrb[0].mxu0
    %v4186 = vpop.f32.mrb[0].mxu0
    %v4187 = vadd.f32 0.0, %v4186
    %v4188 = vpop.f32.mrb[0].mxu0
    %4189 = vmatprep.mubr.bf16.mxu0 0
    %4190 = vmatmul.mubr.bf16.gmra.mrb[0].mxu0 %v4108
    %v4191 = vpop.f32.mrb[0].mxu0
    %v4192 = vadd.f32 0.0, %v4191
    %v4193 = vpop.f32.mrb[0].mxu0
    %v4194 = vpop.f32.mrb[0].mxu0
    %v4195 = vadd.f32 0.0, %v4194
    %v4196 = vpop.f32.mrb[0].mxu0
    %4197 = vmatprep.mubr.bf16.mxu0 0
    %4198 = vmatmul.mubr.bf16.gmra.mrb[0].mxu0 %v4111
    %v4199 = vpop.f32.mrb[0].mxu0
    %v4200 = vadd.f32 0.0, %v4199
    %v4201 = vpop.f32.mrb[0].mxu0
    %v4202 = vpop.f32.mrb[0].mxu0
    %v4203 = vadd.f32 0.0, %v4202
    %v4204 = vpop.f32.mrb[0].mxu0
    %4205 = vmatprep.mubr.bf16.mxu0 0
    %4206 = vmatmul.mubr.bf16.gmra.mrb[0].mxu0 %v4114
    %v4207 = vpop.f32.mrb[0].mxu0
    %v4208 = vadd.f32 0.0, %v4207
    %v4209 = vpop.f32.mrb[0].mxu0
    %v4210 = vpop.f32.mrb[0].mxu0
    %v4211 = vadd.f32 0.0, %v4210
    %v4212 = vpop.f32.mrb[0].mxu0
    %4213 = vmatprep.mubr.bf16.mxu0 0
    %4214 = vmatmul.mubr.bf16.gmra.mrb[0].mxu0 %v4117
    %v4215 = vpop.f32.mrb[0].mxu0
    %v4216 = vadd.f32 0.0, %v4215
    %v4217 = vpop.f32.mrb[0].mxu0
    %v4218 = vpop.f32.mrb[0].mxu0
    %v4219 = vadd.f32 0.0, %v4218
    %v4220 = vpop.f32.mrb[0].mxu0
    %4221 = vmatprep.mubr.bf16.mxu0 0
    %4222 = vmatmul.mubr.bf16.gmra.mrb[0].mxu0 %v4120
    %v4223 = vpop.f32.mrb[0].mxu0
    %v4224 = vadd.f32 0.0, %v4223
    %v4225 = vpop.f32.mrb[0].mxu0
    %v4226 = vpop.f32.mrb[0].mxu0
    %v4227 = vadd.f32 0.0, %v4226
    %v4228 = vpop.f32.mrb[0].mxu0
    %4229 = vmatprep.mubr.bf16.mxu0 0
    %4230 = vmatmul.mubr.bf16.gmra.mrb[0].mxu0 %v4123
    %v4231 = vpop.f32.mrb[0].mxu0
    %v4232 = vadd.f32 0.0, %v4231
    %v4233 = vpop.f32.mrb[0].mxu0
    %v4234 = vpop.f32.mrb[0].mxu0
    %v4235 = vadd.f32 0.0, %v4234
    %v4236 = vpop.f32.mrb[0].mxu0
    %4237 = vdwg.mxu0
    %v4246 = vunpack.c.l.b16 %v4024
    %v4247 = vunpack.c.l.b16 %v4025
    %v4248 = vunpack.c.l.b16 %v4026
    %v4249 = vunpack.c.l.b16 %v4027
    %v4250 = vunpack.c.l.b16 %v4028
    %v4251 = vunpack.c.l.b16 %v4029
    %v4252 = vunpack.c.l.b16 %v4030
    %v4253 = vunpack.c.l.b16 %v4031
    %v4254 = vpack.c.b16 %v4247, %v4246
    %v4255 = vpack.c.b16 %v4249, %v4248
    %v4256 = vpack.c.b16 %v4251, %v4250
    %v4257 = vpack.c.b16 %v4253, %v4252
    %v4263 = vsel %vm2692, %v4013, 0
    %v4266 = vsel %vm2692, %v4014, 0
    %v4269 = vsel %vm2692, %v4015, 0
    %v4272 = vsel %vm2692, %v4016, 0
    %v4275 = vsel %vm2692, %v4017, 0
    %v4278 = vsel %vm2692, %v4018, 0
    %v4281 = vsel %vm2692, %v4019, 0
    %v4284 = vsel %vm2692, %v4020, 0
    %v4287 = vsel %vm2692, %v4021, 0
    %v4290 = vsel %vm2692, %v4022, 0
    %4292 = vmatprep.subr.bf16.mxu0 0
    %4293 = vmatpush1.bf16.msra.mxu0 %v4254
    %4294 = vmatprep.subr.bf16.mxu0 0
    %4295 = vmatpush1.bf16.msra.mxu0 %v4255
    %4296 = vmatprep.subr.bf16.mxu0 0
    %4297 = vmatpush1.bf16.msra.mxu0 %v4256
    %4298 = vmatprep.subr.bf16.mxu0 0
    %4299 = vmatpush1.bf16.msra.mxu0 %v4257
    %4300 = vmatprep.subr.bf16.mxu0 0
    %4301 = vmatpush1.bf16.msra.mxu0 0
    %4302 = vmatprep.subr.bf16.mxu0 0
    %4303 = vmatpush1.bf16.msra.mxu0 0
    %4304 = vmatprep.subr.bf16.mxu0 0
    %4305 = vmatpush1.bf16.msra.mxu0 0
    %4306 = vmatprep.subr.bf16.mxu0 0
    %4307 = vmatpush1.bf16.msra.mxu0 0
    %4308 = vmatprep.subr.bf16.mxu0 0
    %4309 = vmatpush1.bf16.msra.mxu0 0
    %4310 = vmatprep.subr.bf16.mxu0 0
    %4311 = vmatpush1.bf16.msra.mxu0 0
    %4312 = vmatprep.subr.bf16.mxu0 0
    %4313 = vmatpush1.bf16.msra.mxu0 0
    %4314 = vmatprep.subr.bf16.mxu0 0
    %4315 = vmatpush1.bf16.msra.mxu0 0
    %4316 = vmatprep.subr.bf16.mxu0 0
    %4317 = vmatpush1.bf16.msra.mxu0 0
    %4318 = vmatprep.subr.bf16.mxu0 0
    %4319 = vmatpush1.bf16.msra.mxu0 0
    %4320 = vmatprep.subr.bf16.mxu0 0
    %4321 = vmatpush1.bf16.msra.mxu0 0
    %4322 = vmatprep.subr.bf16.mxu0 0
    %4323 = vmatpush1.bf16.msra.mxu0 0
    %4324 = vmatprep.mubr.bf16.mxu0 0
    %4325 = vmatmul.mubr.bf16.gmra.mrb[0].mxu0 %v4263
    %v4326 = vpop.f32.mrb[0].mxu0
    %v4327 = vadd.f32 %v4160, %v4326
    %v4328 = vpop.f32.mrb[0].mxu0
    %v4329 = vpop.f32.mrb[0].mxu0
    %v4330 = vadd.f32 %v4163, %v4329
    %v4331 = vpop.f32.mrb[0].mxu0
    %4332 = vmatprep.mubr.bf16.mxu0 0
    %4333 = vmatmul.mubr.bf16.gmra.mrb[0].mxu0 %v4266
    %v4334 = vpop.f32.mrb[0].mxu0
    %v4335 = vadd.f32 %v4168, %v4334
    %v4336 = vpop.f32.mrb[0].mxu0
    %v4337 = vpop.f32.mrb[0].mxu0
    %v4338 = vadd.f32 %v4171, %v4337
    %v4339 = vpop.f32.mrb[0].mxu0
    %4340 = vmatprep.mubr.bf16.mxu0 0
    %4341 = vmatmul.mubr.bf16.gmra.mrb[0].mxu0 %v4269
    %v4342 = vpop.f32.mrb[0].mxu0
    %v4343 = vadd.f32 %v4176, %v4342
    %v4344 = vpop.f32.mrb[0].mxu0
    %v4345 = vpop.f32.mrb[0].mxu0
    %v4346 = vadd.f32 %v4179, %v4345
    %v4347 = vpop.f32.mrb[0].mxu0
    %4348 = vmatprep.mubr.bf16.mxu0 0
    %4349 = vmatmul.mubr.bf16.gmra.mrb[0].mxu0 %v4272
    %v4350 = vpop.f32.mrb[0].mxu0
    %v4351 = vadd.f32 %v4184, %v4350
    %v4352 = vpop.f32.mrb[0].mxu0
    %v4353 = vpop.f32.mrb[0].mxu0
    %v4354 = vadd.f32 %v4187, %v4353
    %v4355 = vpop.f32.mrb[0].mxu0
    %4356 = vmatprep.mubr.bf16.mxu0 0
    %4357 = vmatmul.mubr.bf16.gmra.mrb[0].mxu0 %v4275
    %v4358 = vpop.f32.mrb[0].mxu0
    %v4359 = vadd.f32 %v4192, %v4358
    %v4360 = vpop.f32.mrb[0].mxu0
    %v4361 = vpop.f32.mrb[0].mxu0
    %v4362 = vadd.f32 %v4195, %v4361
    %v4363 = vpop.f32.mrb[0].mxu0
    %4364 = vmatprep.mubr.bf16.mxu0 0
    %4365 = vmatmul.mubr.bf16.gmra.mrb[0].mxu0 %v4278
    %v4366 = vpop.f32.mrb[0].mxu0
    %v4367 = vadd.f32 %v4200, %v4366
    %v4368 = vpop.f32.mrb[0].mxu0
    %v4369 = vpop.f32.mrb[0].mxu0
    %v4370 = vadd.f32 %v4203, %v4369
    %v4371 = vpop.f32.mrb[0].mxu0
    %4372 = vmatprep.mubr.bf16.mxu0 0
    %4373 = vmatmul.mubr.bf16.gmra.mrb[0].mxu0 %v4281
    %v4374 = vpop.f32.mrb[0].mxu0
    %v4375 = vadd.f32 %v4208, %v4374
    %v4376 = vpop.f32.mrb[0].mxu0
    %v4377 = vpop.f32.mrb[0].mxu0
    %v4378 = vadd.f32 %v4211, %v4377
    %v4379 = vpop.f32.mrb[0].mxu0
    %4380 = vmatprep.mubr.bf16.mxu0 0
    %4381 = vmatmul.mubr.bf16.gmra.mrb[0].mxu0 %v4284
    %v4382 = vpop.f32.mrb[0].mxu0
    %v4383 = vadd.f32 %v4216, %v4382
    %v4384 = vpop.f32.mrb[0].mxu0
    %v4385 = vpop.f32.mrb[0].mxu0
    %v4386 = vadd.f32 %v4219, %v4385
    %v4387 = vpop.f32.mrb[0].mxu0
    %4388 = vmatprep.mubr.bf16.mxu0 0
    %4389 = vmatmul.mubr.bf16.gmra.mrb[0].mxu0 %v4287
    %v4390 = vpop.f32.mrb[0].mxu0
    %v4391 = vadd.f32 %v4224, %v4390
    %v4392 = vpop.f32.mrb[0].mxu0
    %v4393 = vpop.f32.mrb[0].mxu0
    %v4394 = vadd.f32 %v4227, %v4393
    %v4395 = vpop.f32.mrb[0].mxu0
    %4396 = vmatprep.mubr.bf16.mxu0 0
    %4397 = vmatmul.mubr.bf16.gmra.mrb[0].mxu0 %v4290
    %v4398 = vpop.f32.mrb[0].mxu0
    %v4399 = vadd.f32 %v4232, %v4398
    %v4400 = vpop.f32.mrb[0].mxu0
    %v4401 = vpop.f32.mrb[0].mxu0
    %v4402 = vadd.f32 %v4235, %v4401
    %v4403 = vpop.f32.mrb[0].mxu0
    %4404 = vdwg.mxu0
    %v4405 = vld [vmem:[#allocation3 + $0x22] sm:$0xff]
    %v4406 = vld [vmem:[#allocation3 + $0x2a] sm:$0xff]
    %v4407 = vld [vmem:[#allocation3 + $0x32] sm:$0xff]
    %v4408 = vld [vmem:[#allocation3 + $0x3a] sm:$0xff]
    %v4409 = vld [vmem:[#allocation3 + $0x42] sm:$0xff]
    %v4410 = vld [vmem:[#allocation3 + $0x4a] sm:$0xff]
    %v4411 = vld [vmem:[#allocation3 + $0x52] sm:$0xff]
    %v4412 = vld [vmem:[#allocation3 + $0x5a] sm:$0xff]
    %v4413 = vld [vmem:[#allocation3 + $0x62] sm:$0xff]
    %v4414 = vld [vmem:[#allocation3 + $0x6a] sm:$0xff]
    %v4415 = vld [vmem:[#allocation3 + $0x72] sm:$0xff]
    %v4416 = vld [vmem:[#allocation3 + $0x7a] sm:$0xff]
    %v4417 = vld [vmem:[#allocation3 + $0x82] sm:$0xff]
    %v4418 = vld [vmem:[#allocation3 + $0x8a] sm:$0xff]
    %v4419 = vld [vmem:[#allocation3 + $0x92] sm:$0xff]
    %v4420 = vld [vmem:[#allocation3 + $0x9a] sm:$0xff]
    %v4421 = vld [vmem:[#allocation3 + $0xa2] sm:$0xff]
    %v4422 = vld [vmem:[#allocation3 + $0xaa] sm:$0xff]
    %v4423 = vld [vmem:[#allocation3 + $0xb2] sm:$0xff]
    %v4424 = vld [vmem:[#allocation3 + $0xba] sm:$0xff]
    %v4425 = vpack.c.bf16 %v4406, %v4405
    %v4426 = vpack.c.bf16 %v4408, %v4407
    %v4427 = vpack.c.bf16 %v4410, %v4409
    %v4428 = vpack.c.bf16 %v4412, %v4411
    %v4429 = vpack.c.bf16 %v4414, %v4413
    %v4430 = vpack.c.bf16 %v4416, %v4415
    %v4431 = vpack.c.bf16 %v4418, %v4417
    %v4432 = vpack.c.bf16 %v4420, %v4419
    %v4433 = vpack.c.bf16 %v4422, %v4421
    %v4434 = vpack.c.bf16 %v4424, %v4423
    %s4435 = scalar_lea.vmem %s5, 256
    %v4436 = vld [vmem:[%s4435] sm:$0xf]
    %v4437 = vld [vmem:[%s4435 + $0x4] sm:$0xf]
    %v4438 = vld [vmem:[%s4435 + $0x8] sm:$0xf]
    %v4439 = vld [vmem:[%s4435 + $0xc] sm:$0xf]
    %v4440 = vld [vmem:[%s4435 + $0x10] sm:$0xf]
    %v4441 = vld [vmem:[%s4435 + $0x14] sm:$0xf]
    %v4442 = vld [vmem:[%s4435 + $0x18] sm:$0xf]
    %v4443 = vld [vmem:[%s4435 + $0x1c] sm:$0xf]
    %v4452 = vunpack.c.l.b16 %v4436
    %v4453 = vunpack.c.l.b16 %v4437
    %v4454 = vunpack.c.l.b16 %v4438
    %v4455 = vunpack.c.l.b16 %v4439
    %v4456 = vunpack.c.l.b16 %v4440
    %v4457 = vunpack.c.l.b16 %v4441
    %v4458 = vunpack.c.l.b16 %v4442
    %v4459 = vunpack.c.l.b16 %v4443
    %v4460 = vpack.c.b16 %v4453, %v4452
    %v4461 = vpack.c.b16 %v4455, %v4454
    %v4462 = vpack.c.b16 %v4457, %v4456
    %v4463 = vpack.c.b16 %v4459, %v4458
    %v4469 = vsel %vm2692, %v4425, 0
    %v4472 = vsel %vm2692, %v4426, 0
    %v4475 = vsel %vm2692, %v4427, 0
    %v4478 = vsel %vm2692, %v4428, 0
    %v4481 = vsel %vm2692, %v4429, 0
    %v4484 = vsel %vm2692, %v4430, 0
    %v4487 = vsel %vm2692, %v4431, 0
    %v4490 = vsel %vm2692, %v4432, 0
    %v4493 = vsel %vm2692, %v4433, 0
    %v4496 = vsel %vm2692, %v4434, 0
    %4498 = vmatprep.subr.bf16.mxu0 0
    %4499 = vmatpush1.bf16.msra.mxu0 %v4460
    %4500 = vmatprep.subr.bf16.mxu0 0
    %4501 = vmatpush1.bf16.msra.mxu0 %v4461
    %4502 = vmatprep.subr.bf16.mxu0 0
    %4503 = vmatpush1.bf16.msra.mxu0 %v4462
    %4504 = vmatprep.subr.bf16.mxu0 0
    %4505 = vmatpush1.bf16.msra.mxu0 %v4463
    %4506 = vmatprep.subr.bf16.mxu0 0
    %4507 = vmatpush1.bf16.msra.mxu0 0
    %4508 = vmatprep.subr.bf16.mxu0 0
    %4509 = vmatpush1.bf16.msra.mxu0 0
    %4510 = vmatprep.subr.bf16.mxu0 0
    %4511 = vmatpush1.bf16.msra.mxu0 0
    %4512 = vmatprep.subr.bf16.mxu0 0
    %4513 = vmatpush1.bf16.msra.mxu0 0
    %4514 = vmatprep.subr.bf16.mxu0 0
    %4515 = vmatpush1.bf16.msra.mxu0 0
    %4516 = vmatprep.subr.bf16.mxu0 0
    %4517 = vmatpush1.bf16.msra.mxu0 0
    %4518 = vmatprep.subr.bf16.mxu0 0
    %4519 = vmatpush1.bf16.msra.mxu0 0
    %4520 = vmatprep.subr.bf16.mxu0 0
    %4521 = vmatpush1.bf16.msra.mxu0 0
    %4522 = vmatprep.subr.bf16.mxu0 0
    %4523 = vmatpush1.bf16.msra.mxu0 0
    %4524 = vmatprep.subr.bf16.mxu0 0
    %4525 = vmatpush1.bf16.msra.mxu0 0
    %4526 = vmatprep.subr.bf16.mxu0 0
    %4527 = vmatpush1.bf16.msra.mxu0 0
    %4528 = vmatprep.subr.bf16.mxu0 0
    %4529 = vmatpush1.bf16.msra.mxu0 0
    %4530 = vmatprep.mubr.bf16.mxu0 0
    %4531 = vmatmul.mubr.bf16.gmra.mrb[0].mxu0 %v4469
    %v4532 = vpop.f32.mrb[0].mxu0
    %v4533 = vadd.f32 0.0, %v4532
    %v4534 = vpop.f32.mrb[0].mxu0
    %v4535 = vpop.f32.mrb[0].mxu0
    %v4536 = vadd.f32 0.0, %v4535
    %v4537 = vpop.f32.mrb[0].mxu0
    %4538 = vmatprep.mubr.bf16.mxu0 0
    %4539 = vmatmul.mubr.bf16.gmra.mrb[0].mxu0 %v4472
    %v4540 = vpop.f32.mrb[0].mxu0
    %v4541 = vadd.f32 0.0, %v4540
    %v4542 = vpop.f32.mrb[0].mxu0
    %v4543 = vpop.f32.mrb[0].mxu0
    %v4544 = vadd.f32 0.0, %v4543
    %v4545 = vpop.f32.mrb[0].mxu0
    %4546 = vmatprep.mubr.bf16.mxu0 0
    %4547 = vmatmul.mubr.bf16.gmra.mrb[0].mxu0 %v4475
    %v4548 = vpop.f32.mrb[0].mxu0
    %v4549 = vadd.f32 0.0, %v4548
    %v4550 = vpop.f32.mrb[0].mxu0
    %v4551 = vpop.f32.mrb[0].mxu0
    %v4552 = vadd.f32 0.0, %v4551
    %v4553 = vpop.f32.mrb[0].mxu0
    %4554 = vmatprep.mubr.bf16.mxu0 0
    %4555 = vmatmul.mubr.bf16.gmra.mrb[0].mxu0 %v4478
    %v4556 = vpop.f32.mrb[0].mxu0
    %v4557 = vadd.f32 0.0, %v4556
    %v4558 = vpop.f32.mrb[0].mxu0
    %v4559 = vpop.f32.mrb[0].mxu0
    %v4560 = vadd.f32 0.0, %v4559
    %v4561 = vpop.f32.mrb[0].mxu0
    %4562 = vmatprep.mubr.bf16.mxu0 0
    %4563 = vmatmul.mubr.bf16.gmra.mrb[0].mxu0 %v4481
    %v4564 = vpop.f32.mrb[0].mxu0
    %v4565 = vadd.f32 0.0, %v4564
    %v4566 = vpop.f32.mrb[0].mxu0
    %v4567 = vpop.f32.mrb[0].mxu0
    %v4568 = vadd.f32 0.0, %v4567
    %v4569 = vpop.f32.mrb[0].mxu0
    %4570 = vmatprep.mubr.bf16.mxu0 0
    %4571 = vmatmul.mubr.bf16.gmra.mrb[0].mxu0 %v4484
    %v4572 = vpop.f32.mrb[0].mxu0
    %v4573 = vadd.f32 0.0, %v4572
    %v4574 = vpop.f32.mrb[0].mxu0
    %v4575 = vpop.f32.mrb[0].mxu0
    %v4576 = vadd.f32 0.0, %v4575
    %v4577 = vpop.f32.mrb[0].mxu0
    %4578 = vmatprep.mubr.bf16.mxu0 0
    %4579 = vmatmul.mubr.bf16.gmra.mrb[0].mxu0 %v4487
    %v4580 = vpop.f32.mrb[0].mxu0
    %v4581 = vadd.f32 0.0, %v4580
    %v4582 = vpop.f32.mrb[0].mxu0
    %v4583 = vpop.f32.mrb[0].mxu0
    %v4584 = vadd.f32 0.0, %v4583
    %v4585 = vpop.f32.mrb[0].mxu0
    %4586 = vmatprep.mubr.bf16.mxu0 0
    %4587 = vmatmul.mubr.bf16.gmra.mrb[0].mxu0 %v4490
    %v4588 = vpop.f32.mrb[0].mxu0
    %v4589 = vadd.f32 0.0, %v4588
    %v4590 = vpop.f32.mrb[0].mxu0
    %v4591 = vpop.f32.mrb[0].mxu0
    %v4592 = vadd.f32 0.0, %v4591
    %v4593 = vpop.f32.mrb[0].mxu0
    %4594 = vmatprep.mubr.bf16.mxu0 0
    %4595 = vmatmul.mubr.bf16.gmra.mrb[0].mxu0 %v4493
    %v4596 = vpop.f32.mrb[0].mxu0
    %v4597 = vadd.f32 0.0, %v4596
    %v4598 = vpop.f32.mrb[0].mxu0
    %v4599 = vpop.f32.mrb[0].mxu0
    %v4600 = vadd.f32 0.0, %v4599
    %v4601 = vpop.f32.mrb[0].mxu0
    %4602 = vmatprep.mubr.bf16.mxu0 0
    %4603 = vmatmul.mubr.bf16.gmra.mrb[0].mxu0 %v4496
    %v4604 = vpop.f32.mrb[0].mxu0
    %v4605 = vadd.f32 0.0, %v4604
    %v4606 = vpop.f32.mrb[0].mxu0
    %v4607 = vpop.f32.mrb[0].mxu0
    %v4608 = vadd.f32 0.0, %v4607
    %v4609 = vpop.f32.mrb[0].mxu0
    %4610 = vdwg.mxu0
    %v4611 = vadd.f32 %v4327, %v4533
    %v4612 = vadd.f32 %v4330, %v4536
    %v4613 = vadd.f32 %v4335, %v4541
    %v4614 = vadd.f32 %v4338, %v4544
    %v4615 = vadd.f32 %v4343, %v4549
    %v4616 = vadd.f32 %v4346, %v4552
    %v4617 = vadd.f32 %v4351, %v4557
    %v4618 = vadd.f32 %v4354, %v4560
    %v4619 = vadd.f32 %v4359, %v4565
    %v4620 = vadd.f32 %v4362, %v4568
    %v4621 = vadd.f32 %v4367, %v4573
    %v4622 = vadd.f32 %v4370, %v4576
    %v4623 = vadd.f32 %v4375, %v4581
    %v4624 = vadd.f32 %v4378, %v4584
    %v4625 = vadd.f32 %v4383, %v4589
    %v4626 = vadd.f32 %v4386, %v4592
    %v4627 = vadd.f32 %v4391, %v4597
    %v4628 = vadd.f32 %v4394, %v4600
    %v4629 = vadd.f32 %v4399, %v4605
    %v4630 = vadd.f32 %v4402, %v4608
    %v4631 = vadd.f32 %v3335, %v3973
    %v4632 = vadd.f32 %v3336, %v3974
    %v4633 = vadd.f32 %v3337, %v3975
    %v4634 = vadd.f32 %v3338, %v3976
    %v4635 = vadd.f32 %v3339, %v3977
    %v4636 = vadd.f32 %v3340, %v3978
    %v4637 = vadd.f32 %v3341, %v3979
    %v4638 = vadd.f32 %v3342, %v3980
    %v4639 = vadd.f32 %v3343, %v3981
    %v4640 = vadd.f32 %v3344, %v3982
    %v4641 = vadd.f32 %v3345, %v3983
    %v4642 = vadd.f32 %v3346, %v3984
    %v4643 = vadd.f32 %v3347, %v3985
    %v4644 = vadd.f32 %v3348, %v3986
    %v4645 = vadd.f32 %v3349, %v3987
    %v4646 = vadd.f32 %v3350, %v3988
    %v4647 = vadd.f32 %v3351, %v3989
    %v4648 = vadd.f32 %v3352, %v3990
    %v4649 = vadd.f32 %v3353, %v3991
    %v4650 = vadd.f32 %v3354, %v3992
    %v4651 = vadd.f32 %v4631, %v4611
    %v4652 = vadd.f32 %v4632, %v4612
    %v4653 = vadd.f32 %v4633, %v4613
    %v4654 = vadd.f32 %v4634, %v4614
    %v4655 = vadd.f32 %v4635, %v4615
    %v4656 = vadd.f32 %v4636, %v4616
    %v4657 = vadd.f32 %v4637, %v4617
    %v4658 = vadd.f32 %v4638, %v4618
    %v4659 = vadd.f32 %v4639, %v4619
    %v4660 = vadd.f32 %v4640, %v4620
    %v4661 = vadd.f32 %v4641, %v4621
    %v4662 = vadd.f32 %v4642, %v4622
    %v4663 = vadd.f32 %v4643, %v4623
    %v4664 = vadd.f32 %v4644, %v4624
    %v4665 = vadd.f32 %v4645, %v4625
    %v4666 = vadd.f32 %v4646, %v4626
    %v4667 = vadd.f32 %v4647, %v4627
    %v4668 = vadd.f32 %v4648, %v4628
    %v4669 = vadd.f32 %v4649, %v4629
    %v4670 = vadd.f32 %v4650, %v4630
    %v4671 = vld [vmem:[%s6] sm:$0x1]
    %v4673 = vlaneseq
    %v4674 = vshrl.u32 %v4673, 7
    %v4675 = vsub.s32 0, %v4674
    %v4676 = vrot.slane %v4671, %v4675
    %v4678 = vadd.f32 %v4651, %v4676
    %v4679 = vadd.f32 %v4652, %v4676
    %v4680 = vadd.f32 %v4653, %v4676
    %v4681 = vadd.f32 %v4654, %v4676
    %v4682 = vadd.f32 %v4655, %v4676
    %v4683 = vadd.f32 %v4656, %v4676
    %v4684 = vadd.f32 %v4657, %v4676
    %v4685 = vadd.f32 %v4658, %v4676
    %v4686 = vadd.f32 %v4659, %v4676
    %v4687 = vadd.f32 %v4660, %v4676
    %v4688 = vadd.f32 %v4661, %v4676
    %v4689 = vadd.f32 %v4662, %v4676
    %v4690 = vadd.f32 %v4663, %v4676
    %v4691 = vadd.f32 %v4664, %v4676
    %v4692 = vadd.f32 %v4665, %v4676
    %v4693 = vadd.f32 %v4666, %v4676
    %v4694 = vadd.f32 %v4667, %v4676
    %v4695 = vadd.f32 %v4668, %v4676
    %v4696 = vadd.f32 %v4669, %v4676
    %v4697 = vadd.f32 %v4670, %v4676
    %v4698 = vmax.f32 %v4678, 0.0
    %v4699 = vmax.f32 %v4679, 0.0
    %v4700 = vmax.f32 %v4680, 0.0
    %v4701 = vmax.f32 %v4681, 0.0
    %v4702 = vmax.f32 %v4682, 0.0
    %v4703 = vmax.f32 %v4683, 0.0
    %v4704 = vmax.f32 %v4684, 0.0
    %v4705 = vmax.f32 %v4685, 0.0
    %v4706 = vmax.f32 %v4686, 0.0
    %v4707 = vmax.f32 %v4687, 0.0
    %v4708 = vmax.f32 %v4688, 0.0
    %v4709 = vmax.f32 %v4689, 0.0
    %v4710 = vmax.f32 %v4690, 0.0
    %v4711 = vmax.f32 %v4691, 0.0
    %v4712 = vmax.f32 %v4692, 0.0
    %v4713 = vmax.f32 %v4693, 0.0
    %v4714 = vmax.f32 %v4694, 0.0
    %v4715 = vmax.f32 %v4695, 0.0
    %v4716 = vmax.f32 %v4696, 0.0
    %v4717 = vmax.f32 %v4697, 0.0
    %v4718 = vld [vmem:[%s7] sm:$0xff]
    %v4719 = vld [vmem:[%s7 + $0x8] sm:$0xff]
    %v4720 = vld [vmem:[%s7 + $0x10] sm:$0xff]
    %v4721 = vld [vmem:[%s7 + $0x18] sm:$0xff]
    %v4722 = vld [vmem:[%s7 + $0x20] sm:$0xff]
    %v4723 = vld [vmem:[%s7 + $0x28] sm:$0xff]
    %v4724 = vld [vmem:[%s7 + $0x30] sm:$0xff]
    %v4725 = vld [vmem:[%s7 + $0x38] sm:$0xff]
    %v4726 = vld [vmem:[%s7 + $0x40] sm:$0xff]
    %v4727 = vld [vmem:[%s7 + $0x48] sm:$0xff]
    %v4728 = vld [vmem:[%s7 + $0x50] sm:$0xff]
    %v4729 = vld [vmem:[%s7 + $0x58] sm:$0xff]
    %v4730 = vld [vmem:[%s7 + $0x60] sm:$0xff]
    %v4731 = vld [vmem:[%s7 + $0x68] sm:$0xff]
    %v4732 = vld [vmem:[%s7 + $0x70] sm:$0xff]
    %v4733 = vld [vmem:[%s7 + $0x78] sm:$0xff]
    %v4734 = vld [vmem:[%s7 + $0x80] sm:$0xff]
    %v4735 = vld [vmem:[%s7 + $0x88] sm:$0xff]
    %v4736 = vld [vmem:[%s7 + $0x90] sm:$0xff]
    %v4737 = vld [vmem:[%s7 + $0x98] sm:$0xff]
    %v4738 = vpack.c.bf16 %v4699, %v4698
    %v4739 = vpack.c.bf16 %v4701, %v4700
    %v4740 = vpack.c.bf16 %v4703, %v4702
    %v4741 = vpack.c.bf16 %v4705, %v4704
    %v4742 = vpack.c.bf16 %v4707, %v4706
    %v4743 = vpack.c.bf16 %v4709, %v4708
    %v4744 = vpack.c.bf16 %v4711, %v4710
    %v4745 = vpack.c.bf16 %v4713, %v4712
    %v4746 = vpack.c.bf16 %v4715, %v4714
    %v4747 = vpack.c.bf16 %v4717, %v4716
    %v4768 = vunpack.c.l.b16 %v4718
    %v4769 = vunpack.c.h.b16 %v4718
    %v4770 = vunpack.c.l.b16 %v4719
    %v4771 = vunpack.c.h.b16 %v4719
    %v4772 = vunpack.c.l.b16 %v4720
    %v4773 = vunpack.c.h.b16 %v4720
    %v4774 = vunpack.c.l.b16 %v4721
    %v4775 = vunpack.c.h.b16 %v4721
    %v4776 = vunpack.c.l.b16 %v4722
    %v4777 = vunpack.c.h.b16 %v4722
    %v4778 = vunpack.c.l.b16 %v4723
    %v4779 = vunpack.c.h.b16 %v4723
    %v4780 = vunpack.c.l.b16 %v4724
    %v4781 = vunpack.c.h.b16 %v4724
    %v4782 = vunpack.c.l.b16 %v4725
    %v4783 = vunpack.c.h.b16 %v4725
    %v4784 = vunpack.c.l.b16 %v4726
    %v4785 = vunpack.c.h.b16 %v4726
    %v4786 = vunpack.c.l.b16 %v4727
    %v4787 = vunpack.c.h.b16 %v4727
    %v4788 = vunpack.c.l.b16 %v4728
    %v4789 = vunpack.c.h.b16 %v4728
    %v4790 = vunpack.c.l.b16 %v4729
    %v4791 = vunpack.c.h.b16 %v4729
    %v4792 = vunpack.c.l.b16 %v4730
    %v4793 = vunpack.c.h.b16 %v4730
    %v4794 = vunpack.c.l.b16 %v4731
    %v4795 = vunpack.c.h.b16 %v4731
    %v4796 = vunpack.c.l.b16 %v4732
    %v4797 = vunpack.c.h.b16 %v4732
    %v4798 = vunpack.c.l.b16 %v4733
    %v4799 = vunpack.c.h.b16 %v4733
    %v4800 = vunpack.c.l.b16 %v4734
    %v4801 = vunpack.c.h.b16 %v4734
    %v4802 = vunpack.c.l.b16 %v4735
    %v4803 = vunpack.c.h.b16 %v4735
    %v4804 = vunpack.c.l.b16 %v4736
    %v4805 = vunpack.c.h.b16 %v4736
    %v4806 = vunpack.c.l.b16 %v4737
    %v4807 = vunpack.c.h.b16 %v4737
    %v4808 = vpack.c.b16 %v4770, %v4768
    %v4809 = vpack.c.b16 %v4771, %v4769
    %v4810 = vpack.c.b16 %v4774, %v4772
    %v4811 = vpack.c.b16 %v4775, %v4773
    %v4812 = vpack.c.b16 %v4778, %v4776
    %v4813 = vpack.c.b16 %v4779, %v4777
    %v4814 = vpack.c.b16 %v4782, %v4780
    %v4815 = vpack.c.b16 %v4783, %v4781
    %v4816 = vpack.c.b16 %v4786, %v4784
    %v4817 = vpack.c.b16 %v4787, %v4785
    %v4818 = vpack.c.b16 %v4790, %v4788
    %v4819 = vpack.c.b16 %v4791, %v4789
    %v4820 = vpack.c.b16 %v4794, %v4792
    %v4821 = vpack.c.b16 %v4795, %v4793
    %v4822 = vpack.c.b16 %v4798, %v4796
    %v4823 = vpack.c.b16 %v4799, %v4797
    %v4824 = vpack.c.b16 %v4802, %v4800
    %v4825 = vpack.c.b16 %v4803, %v4801
    %v4826 = vpack.c.b16 %v4806, %v4804
    %v4827 = vpack.c.b16 %v4807, %v4805
    %v4839 = vsel %vm410, %v4809, 0
    %v4842 = vsel %vm410, %v4811, 0
    %v4845 = vsel %vm410, %v4813, 0
    %v4848 = vsel %vm410, %v4815, 0
    %v4851 = vsel %vm410, %v4817, 0
    %v4854 = vsel %vm410, %v4819, 0
    %v4857 = vsel %vm410, %v4821, 0
    %v4860 = vsel %vm410, %v4823, 0
    %v4863 = vsel %vm410, %v4825, 0
    %v4866 = vsel %vm410, %v4827, 0
    %4868 = vmatprep.subr.bf16.mxu0 0
    %4869 = vmatpush1.bf16.msra.mxu0 %v4738
    %4870 = vmatprep.subr.bf16.mxu0 0
    %4871 = vmatpush1.bf16.msra.mxu0 %v4739
    %4872 = vmatprep.subr.bf16.mxu0 0
    %4873 = vmatpush1.bf16.msra.mxu0 %v4740
    %4874 = vmatprep.subr.bf16.mxu0 0
    %4875 = vmatpush1.bf16.msra.mxu0 %v4741
    %4876 = vmatprep.subr.bf16.mxu0 0
    %4877 = vmatpush1.bf16.msra.mxu0 %v4742
    %4878 = vmatprep.subr.bf16.mxu0 0
    %4879 = vmatpush1.bf16.msra.mxu0 %v4743
    %4880 = vmatprep.subr.bf16.mxu0 0
    %4881 = vmatpush1.bf16.msra.mxu0 %v4744
    %4882 = vmatprep.subr.bf16.mxu0 0
    %4883 = vmatpush1.bf16.msra.mxu0 %v4745
    %4884 = vmatprep.subr.bf16.mxu0 0
    %4885 = vmatpush1.bf16.msra.mxu0 %v4746
    %4886 = vmatprep.subr.bf16.mxu0 0
    %4887 = vmatpush1.bf16.msra.mxu0 %v4747
    %4888 = vmatprep.subr.bf16.mxu0 0
    %4889 = vmatpush1.bf16.msra.mxu0 0
    %4890 = vmatprep.subr.bf16.mxu0 0
    %4891 = vmatpush1.bf16.msra.mxu0 0
    %4892 = vmatprep.subr.bf16.mxu0 0
    %4893 = vmatpush1.bf16.msra.mxu0 0
    %4894 = vmatprep.subr.bf16.mxu0 0
    %4895 = vmatpush1.bf16.msra.mxu0 0
    %4896 = vmatprep.subr.bf16.mxu0 0
    %4897 = vmatpush1.bf16.msra.mxu0 0
    %4898 = vmatprep.subr.bf16.mxu0 0
    %4899 = vmatpush1.bf16.msra.mxu0 0
    %4900 = vmatprep.mubr.bf16.mxu0 %v4839
    %4901 = vmatmul.mubr.bf16.gmra.mrb[0].mxu0 %v4808
    %v4902 = vpop.f32.mrb[0].mxu0
    %v4903 = vadd.f32 0.0, %v4902
    %v4904 = vpop.f32.mrb[0].mxu0
    %v4905 = vpop.f32.mrb[0].mxu0
    %v4906 = vadd.f32 0.0, %v4905
    %v4907 = vpop.f32.mrb[0].mxu0
    %4908 = vmatprep.mubr.bf16.mxu0 %v4842
    %4909 = vmatmul.mubr.bf16.gmra.mrb[0].mxu0 %v4810
    %v4910 = vpop.f32.mrb[0].mxu0
    %v4911 = vadd.f32 0.0, %v4910
    %v4912 = vpop.f32.mrb[0].mxu0
    %v4913 = vpop.f32.mrb[0].mxu0
    %v4914 = vadd.f32 0.0, %v4913
    %v4915 = vpop.f32.mrb[0].mxu0
    %4916 = vmatprep.mubr.bf16.mxu0 %v4845
    %4917 = vmatmul.mubr.bf16.gmra.mrb[0].mxu0 %v4812
    %v4918 = vpop.f32.mrb[0].mxu0
    %v4919 = vadd.f32 0.0, %v4918
    %v4920 = vpop.f32.mrb[0].mxu0
    %v4921 = vpop.f32.mrb[0].mxu0
    %v4922 = vadd.f32 0.0, %v4921
    %v4923 = vpop.f32.mrb[0].mxu0
    %4924 = vmatprep.mubr.bf16.mxu0 %v4848
    %4925 = vmatmul.mubr.bf16.gmra.mrb[0].mxu0 %v4814
    %v4926 = vpop.f32.mrb[0].mxu0
    %v4927 = vadd.f32 0.0, %v4926
    %v4928 = vpop.f32.mrb[0].mxu0
    %v4929 = vpop.f32.mrb[0].mxu0
    %v4930 = vadd.f32 0.0, %v4929
    %v4931 = vpop.f32.mrb[0].mxu0
    %4932 = vmatprep.mubr.bf16.mxu0 %v4851
    %4933 = vmatmul.mubr.bf16.gmra.mrb[0].mxu0 %v4816
    %v4934 = vpop.f32.mrb[0].mxu0
    %v4935 = vadd.f32 0.0, %v4934
    %v4936 = vpop.f32.mrb[0].mxu0
    %v4937 = vpop.f32.mrb[0].mxu0
    %v4938 = vadd.f32 0.0, %v4937
    %v4939 = vpop.f32.mrb[0].mxu0
    %4940 = vmatprep.mubr.bf16.mxu0 %v4854
    %4941 = vmatmul.mubr.bf16.gmra.mrb[0].mxu0 %v4818
    %v4942 = vpop.f32.mrb[0].mxu0
    %v4943 = vadd.f32 0.0, %v4942
    %v4944 = vpop.f32.mrb[0].mxu0
    %v4945 = vpop.f32.mrb[0].mxu0
    %v4946 = vadd.f32 0.0, %v4945
    %v4947 = vpop.f32.mrb[0].mxu0
    %4948 = vmatprep.mubr.bf16.mxu0 %v4857
    %4949 = vmatmul.mubr.bf16.gmra.mrb[0].mxu0 %v4820
    %v4950 = vpop.f32.mrb[0].mxu0
    %v4951 = vadd.f32 0.0, %v4950
    %v4952 = vpop.f32.mrb[0].mxu0
    %v4953 = vpop.f32.mrb[0].mxu0
    %v4954 = vadd.f32 0.0, %v4953
    %v4955 = vpop.f32.mrb[0].mxu0
    %4956 = vmatprep.mubr.bf16.mxu0 %v4860
    %4957 = vmatmul.mubr.bf16.gmra.mrb[0].mxu0 %v4822
    %v4958 = vpop.f32.mrb[0].mxu0
    %v4959 = vadd.f32 0.0, %v4958
    %v4960 = vpop.f32.mrb[0].mxu0
    %v4961 = vpop.f32.mrb[0].mxu0
    %v4962 = vadd.f32 0.0, %v4961
    %v4963 = vpop.f32.mrb[0].mxu0
    %4964 = vmatprep.mubr.bf16.mxu0 %v4863
    %4965 = vmatmul.mubr.bf16.gmra.mrb[0].mxu0 %v4824
    %v4966 = vpop.f32.mrb[0].mxu0
    %v4967 = vadd.f32 0.0, %v4966
    %v4968 = vpop.f32.mrb[0].mxu0
    %v4969 = vpop.f32.mrb[0].mxu0
    %v4970 = vadd.f32 0.0, %v4969
    %v4971 = vpop.f32.mrb[0].mxu0
    %4972 = vmatprep.mubr.bf16.mxu0 %v4866
    %4973 = vmatmul.mubr.bf16.gmra.mrb[0].mxu0 %v4826
    %v4974 = vpop.f32.mrb[0].mxu0
    %v4975 = vadd.f32 0.0, %v4974
    %v4976 = vpop.f32.mrb[0].mxu0
    %v4977 = vpop.f32.mrb[0].mxu0
    %v4978 = vadd.f32 0.0, %v4977
    %v4979 = vpop.f32.mrb[0].mxu0
    %4980 = vdwg.mxu0
    %v4981 = vlaneseq
    %v4982 = vshrl.u32 %v4981, 7
    %v4983 = vadd.s32 %v4982, 8
    %v4984 = vadd.s32 %v4982, 16
    %v4985 = vadd.s32 %v4982, 24
    %v4986 = vadd.s32 %v4982, 32
    %v4987 = vadd.s32 %v4982, 40
    %v4988 = vadd.s32 %v4982, 48
    %v4989 = vadd.s32 %v4982, 56
    %v4990 = vadd.s32 %v4982, 64
    %v4991 = vadd.s32 %v4982, 72
    %v4992 = vadd.s32 %v4982, 80
    %v4993 = vadd.s32 %v4982, 88
    %v4994 = vadd.s32 %v4982, 96
    %v4995 = vadd.s32 %v4982, 104
    %v4996 = vadd.s32 %v4982, 112
    %v4997 = vadd.s32 %v4982, 120
    %v4998 = vadd.s32 %v4982, 128
    %v4999 = vadd.s32 %v4982, 136
    %v5000 = vadd.s32 %v4982, 144
    %v5001 = vadd.s32 %v4982, 152
    %v5002 = vlaneseq
    %v5003 = vand.u32 %v5002, 127
    %v5004 = vand.u32 %v4982, 31
    %v5005 = vand.u32 %v4983, 31
    %v5006 = vand.u32 %v4984, 31
    %v5007 = vand.u32 %v4985, 31
    %v5008 = vand.u32 %v4986, 31
    %v5009 = vand.u32 %v4987, 31
    %v5010 = vand.u32 %v4988, 31
    %v5011 = vand.u32 %v4989, 31
    %v5012 = vand.u32 %v4990, 31
    %v5013 = vand.u32 %v4991, 31
    %v5014 = vand.u32 %v4992, 31
    %v5015 = vand.u32 %v4993, 31
    %v5016 = vand.u32 %v4994, 31
    %v5017 = vand.u32 %v4995, 31
    %v5018 = vand.u32 %v4996, 31
    %v5019 = vand.u32 %v4997, 31
    %v5020 = vand.u32 %v4998, 31
    %v5021 = vand.u32 %v4999, 31
    %v5022 = vand.u32 %v5000, 31
    %v5023 = vand.u32 %v5001, 31
    %vm5024 = vcmp.ge.s32.totalorder %v4982, 128
    %vm5025 = vcmp.ge.s32.totalorder %v4983, 128
    %vm5026 = vcmp.ge.s32.totalorder %v4984, 128
    %vm5027 = vcmp.ge.s32.totalorder %v4985, 128
    %vm5028 = vcmp.ge.s32.totalorder %v4986, 128
    %vm5029 = vcmp.ge.s32.totalorder %v4987, 128
    %vm5030 = vcmp.ge.s32.totalorder %v4988, 128
    %vm5031 = vcmp.ge.s32.totalorder %v4989, 128
    %vm5032 = vcmp.ge.s32.totalorder %v4990, 128
    %vm5033 = vcmp.ge.s32.totalorder %v4991, 128
    %vm5034 = vcmp.ge.s32.totalorder %v4992, 128
    %vm5035 = vcmp.ge.s32.totalorder %v4993, 128
    %vm5036 = vcmp.ge.s32.totalorder %v4994, 128
    %vm5037 = vcmp.ge.s32.totalorder %v4995, 128
    %vm5038 = vcmp.ge.s32.totalorder %v4996, 128
    %vm5039 = vcmp.ge.s32.totalorder %v4997, 128
    %vm5040 = vcmp.ge.s32.totalorder %v4998, 128
    %vm5041 = vcmp.ge.s32.totalorder %v4999, 128
    %vm5042 = vcmp.ge.s32.totalorder %v5000, 128
    %vm5043 = vcmp.ge.s32.totalorder %v5001, 128
    %v5044 = vsel %vm5024, 32, 0
    %v5045 = vsel %vm5025, 32, 0
    %v5046 = vsel %vm5026, 32, 0
    %v5047 = vsel %vm5027, 32, 0
    %v5048 = vsel %vm5028, 32, 0
    %v5049 = vsel %vm5029, 32, 0
    %v5050 = vsel %vm5030, 32, 0
    %v5051 = vsel %vm5031, 32, 0
    %v5052 = vsel %vm5032, 32, 0
    %v5053 = vsel %vm5033, 32, 0
    %v5054 = vsel %vm5034, 32, 0
    %v5055 = vsel %vm5035, 32, 0
    %v5056 = vsel %vm5036, 32, 0
    %v5057 = vsel %vm5037, 32, 0
    %v5058 = vsel %vm5038, 32, 0
    %v5059 = vsel %vm5039, 32, 0
    %v5060 = vsel %vm5040, 32, 0
    %v5061 = vsel %vm5041, 32, 0
    %v5062 = vsel %vm5042, 32, 0
    %v5063 = vsel %vm5043, 32, 0
    %v5064 = vadd.s32 %v5004, %v5044
    %v5065 = vadd.s32 %v5005, %v5045
    %v5066 = vadd.s32 %v5006, %v5046
    %v5067 = vadd.s32 %v5007, %v5047
    %v5068 = vadd.s32 %v5008, %v5048
    %v5069 = vadd.s32 %v5009, %v5049
    %v5070 = vadd.s32 %v5010, %v5050
    %v5071 = vadd.s32 %v5011, %v5051
    %v5072 = vadd.s32 %v5012, %v5052
    %v5073 = vadd.s32 %v5013, %v5053
    %v5074 = vadd.s32 %v5014, %v5054
    %v5075 = vadd.s32 %v5015, %v5055
    %v5076 = vadd.s32 %v5016, %v5056
    %v5077 = vadd.s32 %v5017, %v5057
    %v5078 = vadd.s32 %v5018, %v5058
    %v5079 = vadd.s32 %v5019, %v5059
    %v5080 = vadd.s32 %v5020, %v5060
    %v5081 = vadd.s32 %v5021, %v5061
    %v5082 = vadd.s32 %v5022, %v5062
    %v5083 = vadd.s32 %v5023, %v5063
    %vm5084 = vcmp.eq.s32.totalorder %v5003, %v5064
    %vm5085 = vcmp.eq.s32.totalorder %v5003, %v5065
    %vm5086 = vcmp.eq.s32.totalorder %v5003, %v5066
    %vm5087 = vcmp.eq.s32.totalorder %v5003, %v5067
    %vm5088 = vcmp.eq.s32.totalorder %v5003, %v5068
    %vm5089 = vcmp.eq.s32.totalorder %v5003, %v5069
    %vm5090 = vcmp.eq.s32.totalorder %v5003, %v5070
    %vm5091 = vcmp.eq.s32.totalorder %v5003, %v5071
    %vm5092 = vcmp.eq.s32.totalorder %v5003, %v5072
    %vm5093 = vcmp.eq.s32.totalorder %v5003, %v5073
    %vm5094 = vcmp.eq.s32.totalorder %v5003, %v5074
    %vm5095 = vcmp.eq.s32.totalorder %v5003, %v5075
    %vm5096 = vcmp.eq.s32.totalorder %v5003, %v5076
    %vm5097 = vcmp.eq.s32.totalorder %v5003, %v5077
    %vm5098 = vcmp.eq.s32.totalorder %v5003, %v5078
    %vm5099 = vcmp.eq.s32.totalorder %v5003, %v5079
    %vm5100 = vcmp.eq.s32.totalorder %v5003, %v5080
    %vm5101 = vcmp.eq.s32.totalorder %v5003, %v5081
    %vm5102 = vcmp.eq.s32.totalorder %v5003, %v5082
    %vm5103 = vcmp.eq.s32.totalorder %v5003, %v5083
    %v5104 = vsel %vm5084, %v4903, 0.0
    %v5105 = vsel %vm5085, %v4906, 0.0
    %v5106 = vsel %vm5086, %v4911, 0.0
    %v5107 = vsel %vm5087, %v4914, 0.0
    %v5108 = vsel %vm5088, %v4919, 0.0
    %v5109 = vsel %vm5089, %v4922, 0.0
    %v5110 = vsel %vm5090, %v4927, 0.0
    %v5111 = vsel %vm5091, %v4930, 0.0
    %v5112 = vsel %vm5092, %v4935, 0.0
    %v5113 = vsel %vm5093, %v4938, 0.0
    %v5114 = vsel %vm5094, %v4943, 0.0
    %v5115 = vsel %vm5095, %v4946, 0.0
    %v5116 = vsel %vm5096, %v4951, 0.0
    %v5117 = vsel %vm5097, %v4954, 0.0
    %v5118 = vsel %vm5098, %v4959, 0.0
    %v5119 = vsel %vm5099, %v4962, 0.0
    %v5120 = vsel %vm5100, %v4967, 0.0
    %v5121 = vsel %vm5101, %v4970, 0.0
    %v5122 = vsel %vm5102, %v4975, 0.0
    %v5123 = vsel %vm5103, %v4978, 0.0
    %v5124 = vld [vmem:[%s8] sm:$0x1f]
    %v5125 = vld [vmem:[%s8 + $0x8] sm:$0x1f]
    %v5127 = vsel %vm410, %v5125, 0
    %5129 = vmatprep.subr.mxu0 0.0
    %5130 = vmatpush1.msra.mxu0 %v5104
    %5131 = vmatprep.subr.mxu0 0.0
    %5132 = vmatpush1.msra.mxu0 %v5105
    %5133 = vmatprep.subr.mxu0 0.0
    %5134 = vmatpush1.msra.mxu0 %v5106
    %5135 = vmatprep.subr.mxu0 0.0
    %5136 = vmatpush1.msra.mxu0 %v5107
    %5137 = vmatprep.subr.mxu0 0.0
    %5138 = vmatpush1.msra.mxu0 %v5108
    %5139 = vmatprep.subr.mxu0 0.0
    %5140 = vmatpush1.msra.mxu0 %v5109
    %5141 = vmatprep.subr.mxu0 0.0
    %5142 = vmatpush1.msra.mxu0 %v5110
    %5143 = vmatprep.subr.mxu0 0.0
    %5144 = vmatpush1.msra.mxu0 %v5111
    %5145 = vmatprep.subr.mxu0 0.0
    %5146 = vmatpush1.msra.mxu0 %v5112
    %5147 = vmatprep.subr.mxu0 0.0
    %5148 = vmatpush1.msra.mxu0 %v5113
    %5149 = vmatprep.subr.mxu0 0.0
    %5150 = vmatpush1.msra.mxu0 %v5114
    %5151 = vmatprep.subr.mxu0 0.0
    %5152 = vmatpush1.msra.mxu0 %v5115
    %5153 = vmatprep.subr.mxu0 0.0
    %5154 = vmatpush1.msra.mxu0 %v5116
    %5155 = vmatprep.subr.mxu0 0.0
    %5156 = vmatpush1.msra.mxu0 %v5117
    %5157 = vmatprep.subr.mxu0 0.0
    %5158 = vmatpush1.msra.mxu0 %v5118
    %5159 = vmatprep.subr.mxu0 0.0
    %5160 = vmatpush1.msra.mxu0 %v5119
    %5161 = vmatprep.subr.mxu0 0.0
    %5162 = vmatpush1.msra.mxu0 %v5120
    %5163 = vmatprep.subr.mxu0 0.0
    %5164 = vmatpush1.msra.mxu0 %v5121
    %5165 = vmatprep.subr.mxu0 0.0
    %5166 = vmatpush1.msra.mxu0 %v5122
    %5167 = vmatprep.subr.mxu0 0.0
    %5168 = vmatpush1.msra.mxu0 %v5123
    %5169 = vmatprep.subr.mxu0 0.0
    %5170 = vmatpush1.msra.mxu0 0.0
    %5171 = vmatprep.subr.mxu0 0.0
    %5172 = vmatpush1.msra.mxu0 0.0
    %5173 = vmatprep.subr.mxu0 0.0
    %5174 = vmatpush1.msra.mxu0 0.0
    %5175 = vmatprep.subr.mxu0 0.0
    %5176 = vmatpush1.msra.mxu0 0.0
    %5177 = vmatprep.subr.mxu0 0.0
    %5178 = vmatpush1.msra.mxu0 0.0
    %5179 = vmatprep.subr.mxu0 0.0
    %5180 = vmatpush1.msra.mxu0 0.0
    %5181 = vmatprep.subr.mxu0 0.0
    %5182 = vmatpush1.msra.mxu0 0.0
    %5183 = vmatprep.subr.mxu0 0.0
    %5184 = vmatpush1.msra.mxu0 0.0
    %5185 = vmatprep.subr.mxu0 0.0
    %5186 = vmatpush1.msra.mxu0 0.0
    %5187 = vmatprep.subr.mxu0 0.0
    %5188 = vmatpush1.msra.mxu0 0.0
    %5189 = vmatprep.subr.mxu0 0.0
    %5190 = vmatpush1.msra.mxu0 0.0
    %5191 = vmatprep.subr.mxu0 0.0
    %5192 = vmatpush1.msra.mxu0 0.0
    %5193 = vmatprep.mubr.f32.mxu0 %v5127
    %5194 = vmatmul.mubr.f32.gmra.mrb[0].mxu0 %v5124
    %v5195 = vpop.f32.mrb[0].mxu0
    %v5196 = vadd.f32 0.0, %v5195
    %v5197 = vpop.f32.mrb[0].mxu0
    %5198 = vdwg.mxu0
    %vm5199 = vcmask 520192
    %v5200 = vsel %vm5199, %v5196, 0.0
    %5201 = vadd.xlane.f32.xlu0 %v5200
    %v5202 = vpop.xlane.xlu0 %5201
    %v5203 = vld [vmem:[%s9] sm:$0x1f]
    %v5204 = vadd.f32 %v5202, %v5203
    %vm5205 = vcmask 3072
    %v5206 = vsel %vm5205, %v5204, -inf
    %v5207 = vrot.slane %v5206, 4
    %v5208 = vmax.f32 %v5206, %v5207
    %v5209 = vrot.slane %v5208, 2
    %v5210 = vmax.f32 %v5208, %v5209
    %v5211 = vrot.slane %v5210, 1
    %v5212 = vmax.f32 %v5210, %v5211
    %v5213 = vsub.f32 %v5204, %v5212
    %v5214 = vmul.f32 %v5213, 1.442695
    %v5215 = vpow.pop %v5214
    %v5216 = vsel %vm5205, %v5215, 0.0
    %v5217 = vrot.slane %v5216, 4
    %v5218 = vadd.f32 %v5216, %v5217
    %v5219 = vrot.slane %v5218, 2
    %v5220 = vadd.f32 %v5218, %v5219
    %v5221 = vrot.slane %v5220, 1
    %v5222 = vadd.f32 %v5220, %v5221
    %v5223 = vrcp.pop %v5222
    %v5224 = vmul.f32 %v5215, %v5223
    %5225 = vst.msk [vmem:[%s10] sm:$0xf] %vm5205, %v5224
    %v5226 = vmax.f32 %v5204, 0.0
    %vm5227 = vcmask 4100
    %5228 = vst.msk [vmem:[#allocation4 - $0x4] sm:$0x10] %vm5227, %v5226
    // Predicated region
    $region42: #{_lambda_.1} parent=1 // pred_check
      _
    $region43: #{_lambda_.1} parent=1 // pred_check_branch
      %5230 = sbr.rel (0) target = $region45
    $region44: #{_lambda_.1} parent=1 // pred_region
      _
    $region45: #{_lambda_.1} parent=1 // pred_fallthru
      _
    // Predicated region
    $region46: #{_lambda_.1} parent=1 // pred_check
      _
    $region47: #{_lambda_.1} parent=1 // pred_check_branch
      %5232 = sbr.rel (0) target = $region49
    $region48: #{_lambda_.1} parent=1 // pred_region
      %s5234 = ssub.s32 16, 16
      %5235 = vsyncadd [#allocation5], %s5234
      %s5237 = sshll.u32 [#allocation4], 4
      %s5238 = int_to_ptr.vmem [resolvable:$true] %s5237
      %5240 = dma.vmem_to_hbm [thread:$0]  %s5238, 16, %s11, [#allocation5]
    $region49: #{_lambda_.1} parent=1 // pred_fallthru
      _
    // Predicated region
    $region50: #{_lambda_.1} parent=1 // pred_check
      _
    $region51: #{_lambda_.1} parent=1 // pred_check_branch
      %5242 = sbr.rel (0) target = $region53
    $region52: #{_lambda_.1} parent=1 // pred_region
      _
    $region53: #{_lambda_.1} parent=1 // pred_fallthru
      _
    // Predicated region
    $region54: #{_lambda_.1} parent=1 // pred_check
      _
    $region55: #{_lambda_.1} parent=1 // pred_check_branch
      %5244 = sbr.rel (0) target = $region57
    $region56: #{_lambda_.1} parent=1 // pred_region
      %5245 = dma.done [#allocation5], 16
    $region57: #{_lambda_.1} parent=1 // pred_fallthru
      _
    %5246 = vsyncpa [#allocation5], 1

</llo_original>
